<compile_context>
chip_gen: v5e
topology: v5e:2x2
jax: 0.10.0
libtpu: 0.0.40
codegen_flags: <defaults>
</compile_context>

<pallas_src>
import math
from functools import partial

import jax
import jax.numpy as jnp
from jax.experimental import pallas as pl
from jax.experimental.pallas import tpu as pltpu


def _f32(shape):
    return jax.ShapeDtypeStruct(shape, jnp.float32)


# ----------------------- fused decoder-stack kernel -------------------------
def _decoder_stack_kernel(
        # shared activations / pad vectors (resident)
        x0_ref, enc_ref, dec_pad_ref, enc_pad_ref,
        # per-layer stacked weights (leading axis = layer, blocked by grid)
        wqkv_ref, bqkv_ref, wso_ref, bso_ref,
        wcq_ref, bcq_ref, wckv_ref, bckv_ref, wco_ref, bco_ref,
        wf1_ref, bf1_ref, wf2_ref, bf2_ref,
        ln_ref,
        # outputs
        xout_ref, sattn_ref, eattn_ref,
        # scratch
        x_scr,
        *, n_heads, d_k, B, Lq, Lk, n_layers):
    H = n_heads
    D = H * d_k
    M = B * Lq
    bf16 = jnp.bfloat16
    l = pl.program_id(0)

    # Layer 0: load the embedded input into the VMEM activation carry.
    @pl.when(l == 0)
    def _():
        x_scr[...] = x0_ref[...]

    inv_scale = 1.0 / math.sqrt(float(d_k))

    # Additive mask biases rebuilt per layer from tiny pad vectors (VPU filler).
    q_idx = jax.lax.broadcasted_iota(jnp.int32, (Lq, Lq), 0)
    k_idx = jax.lax.broadcasted_iota(jnp.int32, (Lq, Lq), 1)
    causal = k_idx > q_idx                                         # (Lq, Lq)
    dec_pad = dec_pad_ref[...] > 0.5                               # (B, Lq)
    enc_pad = enc_pad_ref[...] > 0.5                               # (B, Lk)
    self_mask = jnp.logical_or(causal[None, :, :], dec_pad[:, None, :])
    self_bias = jnp.where(self_mask, -1.0e9, 0.0).astype(jnp.float32)   # (B,Lq,Lq)
    cross_bias = jnp.where(enc_pad[:, None, :], -1.0e9, 0.0)            # (B,1,Lk)
    cross_bias = cross_bias.astype(jnp.float32)

    def layernorm(x, gamma, beta):
        mean = jnp.mean(x, axis=-1, keepdims=True)
        xc = x - mean
        var = jnp.mean(xc * xc, axis=-1, keepdims=True)
        inv = jax.lax.rsqrt(var + 1e-5)                            # EUP rsqrt
        return xc * inv * gamma + beta

    def split_heads(x3):
        # (B, L, D) f32 -> (H*B, L, d_k) bf16, head-major along the leading axis.
        return jnp.concatenate(
            [x3[:, :, h * d_k:(h + 1) * d_k] for h in range(H)], axis=0
        ).astype(bf16)

    def attention(q3, k3, v3, bias, attn_ref, lk):
        # q3: (B,Lq,D) f32; k3/v3: (B,lk,D) f32; bias broadcastable to (H,B,Lq,lk).
        Qh = split_heads(q3)
        Kh = split_heads(k3)
        Vh = split_heads(v3)
        # single batched score matmul over the fused (H*B) axis, f32 accumulate
        s = jnp.einsum('bqd,bkd->bqk', Qh, Kh,
                       preferred_element_type=jnp.float32)         # (H*B,Lq,lk)
        s = s.reshape(H, B, Lq, lk) * inv_scale + bias[None]
        s = s - jnp.max(s, axis=-1, keepdims=True)
        p = jnp.exp(s)
        probs = p / jnp.sum(p, axis=-1, keepdims=True)             # exact softmax
        probs = probs.reshape(H * B, Lq, lk)
        attn_ref[...] = probs                                      # one dense store
        # bf16 probs/V into the MXU, f32 accumulate (flash-attn pattern)
        ctx = jnp.einsum('bqk,bkd->bqd', probs.astype(bf16), Vh,
                         preferred_element_type=jnp.float32)       # (H*B,Lq,d_k)
        ctx = ctx.reshape(H, B, Lq, d_k)
        ctx = jnp.concatenate([ctx[h] for h in range(H)], axis=-1)  # (B,Lq,D)
        return ctx.reshape(M, D)

    ln = ln_ref[0]                                   # (6, D): g1,b1,g2,b2,g3,b3
    g1, be1 = ln[0:1], ln[1:2]
    g2, be2 = ln[2:3], ln[3:4]
    g3, be3 = ln[4:5], ln[5:6]

    x = x_scr[...]                                   # (M, D) f32 residual carry

    # ------------------------- self attention -------------------------------
    qkv = jnp.dot(x.astype(bf16), wqkv_ref[0],
                  preferred_element_type=jnp.float32) + bqkv_ref[0]
    Q3 = qkv[:, 0:D].reshape(B, Lq, D)
    K3 = qkv[:, D:2 * D].reshape(B, Lq, D)
    V3 = qkv[:, 2 * D:3 * D].reshape(B, Lq, D)
    ctx = attention(Q3, K3, V3, self_bias, sattn_ref, Lq)
    y = jnp.dot(ctx.astype(bf16), wso_ref[0],
                preferred_element_type=jnp.float32) + bso_ref[0]
    x = layernorm(y + x, g1, be1)

    # ------------------------- cross attention ------------------------------
    q = jnp.dot(x.astype(bf16), wcq_ref[0],
                preferred_element_type=jnp.float32) + bcq_ref[0]
    kv = jnp.dot(enc_ref[...], wckv_ref[0],
                 preferred_element_type=jnp.float32) + bckv_ref[0]
    Q3 = q.reshape(B, Lq, D)
    K3 = kv[:, 0:D].reshape(B, Lk, D)
    V3 = kv[:, D:2 * D].reshape(B, Lk, D)
    ctx = attention(Q3, K3, V3, cross_bias, eattn_ref, Lk)
    y = jnp.dot(ctx.astype(bf16), wco_ref[0],
                preferred_element_type=jnp.float32) + bco_ref[0]
    x = layernorm(y + x, g2, be2)

    # ---------------------------- poswise FFN -------------------------------
    h1 = jnp.dot(x.astype(bf16), wf1_ref[0],
                 preferred_element_type=jnp.float32) + bf1_ref[0]
    h1 = jnp.maximum(h1, 0.0)
    y = jnp.dot(h1.astype(bf16), wf2_ref[0],
                preferred_element_type=jnp.float32) + bf2_ref[0]
    x = layernorm(y + x, g3, be3)

    x_scr[...] = x                                   # carry to next layer

    @pl.when(l == n_layers - 1)
    def _():
        xout_ref[...] = x                            # final hidden state


def decoder_stack(x0_flat, enc_flat_bf16, dec_pad, enc_pad, stack,
                  *, n_heads, n_layers, B, Lq, Lk):
    M, D = x0_flat.shape
    d_ff = stack["w_f1"].shape[2]
    d_k = D // n_heads
    H = n_heads

    def shared(*shape):
        return pl.BlockSpec(shape, lambda l, n=len(shape): (0,) * n)

    def per_layer(*trailing):
        return pl.BlockSpec((1,) + trailing,
                            lambda l, n=len(trailing): (l,) + (0,) * n)

    kernel = partial(_decoder_stack_kernel, n_heads=H, d_k=d_k,
                     B=B, Lq=Lq, Lk=Lk, n_layers=n_layers)

    out_shape = (
        _f32((M, D)),                          # final hidden state (flat rows)
        _f32((n_layers * H * B, Lq, Lq)),      # self-attn probs, (layer,head,batch)-major
        _f32((n_layers * H * B, Lq, Lk)),      # cross-attn probs
    )
    out_specs = (
        pl.BlockSpec((M, D), lambda l: (0, 0)),
        pl.BlockSpec((H * B, Lq, Lq), lambda l: (l, 0, 0)),
        pl.BlockSpec((H * B, Lq, Lk), lambda l: (l, 0, 0)),
    )
    in_specs = [
        shared(M, D),                       # embedded dec inputs (f32)
        shared(B * Lk, D),                  # encoder outputs (bf16)
        shared(B, Lq),                      # dec pad indicator
        shared(B, Lk),                      # enc pad indicator
        per_layer(D, 3 * D), per_layer(1, 3 * D),    # packed self QKV (bf16 / f32 bias)
        per_layer(D, D), per_layer(1, D),            # self output proj
        per_layer(D, D), per_layer(1, D),            # cross Q
        per_layer(D, 2 * D), per_layer(1, 2 * D),    # packed cross KV
        per_layer(D, D), per_layer(1, D),            # cross output proj
        per_layer(D, d_ff), per_layer(1, d_ff),      # FFN linear1
        per_layer(d_ff, D), per_layer(1, D),         # FFN linear2
        per_layer(6, D),                             # packed LN gamma/beta x3 (f32)
    ]

    return pl.pallas_call(
        kernel,
        out_shape=out_shape,
        grid=(n_layers,),
        in_specs=in_specs,
        out_specs=out_specs,
        scratch_shapes=[pltpu.VMEM((M, D), jnp.float32)],   # f32 activation carry
        compiler_params=pltpu.CompilerParams(
            dimension_semantics=("arbitrary",),             # sequential layer carry
            vmem_limit_bytes=64 * 1024 * 1024),
    )(x0_flat, enc_flat_bf16, dec_pad, enc_pad,
      stack["w_sqkv"], stack["b_sqkv"], stack["w_so"], stack["b_so"],
      stack["w_cq"], stack["b_cq"], stack["w_ckv"], stack["b_ckv"],
      stack["w_co"], stack["b_co"],
      stack["w_f1"], stack["b_f1"], stack["w_f2"], stack["b_f2"],
      stack["ln"])


# --------------------- final vocab projection (own call) --------------------
def _projection_kernel(x_ref, w_ref, b_ref, o_ref):
    o_ref[...] = (jnp.dot(x_ref[...].astype(jnp.bfloat16), w_ref[...],
                          preferred_element_type=jnp.float32) + b_ref[...])


def vocab_projection(x, w_bf16, b):
    M, D = x.shape
    V = w_bf16.shape[1]
    # lane-dense N tiles when V is 128-aligned, otherwise one full block
    tn = 512 if V % 512 == 0 else (128 if V % 128 == 0 else V)
    return pl.pallas_call(
        _projection_kernel,
        out_shape=_f32((M, V)),
        grid=(V // tn,),
        in_specs=[pl.BlockSpec((M, D), lambda j: (0, 0)),
                  pl.BlockSpec((D, tn), lambda j: (0, j)),
                  pl.BlockSpec((1, tn), lambda j: (0, j))],
        out_specs=pl.BlockSpec((M, tn), lambda j: (0, j)),
        compiler_params=pltpu.CompilerParams(
            dimension_semantics=("parallel",)),
    )(x, w_bf16, b)


# ------------------------------ Parameters ----------------------------------
def _linear_params(key, din, dout):
    kw, kb = jax.random.split(key)
    lim = 1.0 / math.sqrt(din)
    w = jax.random.uniform(kw, (din, dout), jnp.float32, -lim, lim)
    b = jax.random.uniform(kb, (1, dout), jnp.float32, -lim, lim)
    return w, b


def init_decoder_params(key, vocab, d_model, n_heads, d_ff, n_layers, max_len=100):
    keys = jax.random.split(key, n_layers + 2)
    emb = jax.random.normal(keys[0], (vocab, d_model), jnp.float32)

    # positional-encoding table (matches the PyTorch PositionalEncoding)
    pos = jnp.arange(max_len, dtype=jnp.float32)[:, None]
    angle = jnp.power(10000.0, jnp.arange(0, d_model, 2, dtype=jnp.float32) / d_model)
    pe = jnp.stack([jnp.sin(pos / angle), jnp.cos(pos / angle)], axis=-1)
    pe = pe.reshape(max_len, d_model)

    ones = jnp.ones((1, d_model), jnp.float32)
    zeros = jnp.zeros((1, d_model), jnp.float32)

    def layer_params(k):
        ks = jax.random.split(k, 10)
        wq, bq = _linear_params(ks[0], d_model, d_model)
        wk, bk = _linear_params(ks[1], d_model, d_model)
        wv, bv = _linear_params(ks[2], d_model, d_model)
        wo, bo = _linear_params(ks[3], d_model, d_model)
        cwq, cbq = _linear_params(ks[4], d_model, d_model)
        cwk, cbk = _linear_params(ks[5], d_model, d_model)
        cwv, cbv = _linear_params(ks[6], d_model, d_model)
        cwo, cbo = _linear_params(ks[7], d_model, d_model)
        w1, b1 = _linear_params(ks[8], d_model, d_ff)
        w2, b2 = _linear_params(ks[9], d_ff, d_model)
        return {
            "w_sqkv": jnp.concatenate([wq, wk, wv], axis=1),   # packed (D, 3D)
            "b_sqkv": jnp.concatenate([bq, bk, bv], axis=1),
            "w_so": wo, "b_so": bo,
            "w_cq": cwq, "b_cq": cbq,
            "w_ckv": jnp.concatenate([cwk, cwv], axis=1),      # packed (D, 2D)
            "b_ckv": jnp.concatenate([cbk, cbv], axis=1),
            "w_co": cwo, "b_co": cbo,
            "w_f1": w1, "b_f1": b1, "w_f2": w2, "b_f2": b2,
            # LayerNorm params packed: [g1, b1, g2, b2, g3, b3] -> (6, D)
            "ln": jnp.concatenate([ones, zeros, ones, zeros, ones, zeros], axis=0),
        }

    layers = [layer_params(keys[1 + i]) for i in range(n_layers)]
    stack = jax.tree_util.tree_map(lambda *xs: jnp.stack(xs, axis=0), *layers)

    pw, pb = _linear_params(keys[-1], d_model, vocab)
    return {"emb": emb, "pe": pe, "stack": stack, "proj": {"w": pw, "b": pb}}


# ------------------------------ Decoder forward ------------------------------
def decoder_forward(params, dec_inputs, enc_inputs, enc_outputs,
                    src_pad_idx, trg_pad_idx, n_heads):
    B, Lq = dec_inputs.shape
    Lk = enc_inputs.shape[1]
    d_model = params["emb"].shape[1]
    n_layers = params["stack"]["ln"].shape[0]
    H = n_heads
    bf16 = jnp.bfloat16

    # embedding + scaling + positional encoding (glue)
    x = jnp.take(params["emb"], dec_inputs.astype(jnp.int32), axis=0)
    x = x * jnp.sqrt(jnp.float32(d_model)) + params["pe"][None, :Lq, :]

    # tiny pad indicators; additive masks are rebuilt in-kernel
    dec_pad = (dec_inputs == trg_pad_idx).astype(jnp.float32)       # (B, Lq)
    enc_pad = (enc_inputs == src_pad_idx).astype(jnp.float32)       # (B, Lk)

    # bf16 weight copies in HBM for the MXU (biases / LN stay f32)
    stack = dict(params["stack"])
    for name in ("w_sqkv", "w_so", "w_cq", "w_ckv", "w_co", "w_f1", "w_f2"):
        stack[name] = stack[name].astype(bf16)

    x_fin, sa_flat, ea_flat = decoder_stack(
        x.reshape(B * Lq, d_model).astype(jnp.float32),
        enc_outputs.reshape(B * Lk, d_model).astype(bf16),
        dec_pad, enc_pad, stack,
        n_heads=H, n_layers=n_layers, B=B, Lq=Lq, Lk=Lk)

    logits = vocab_projection(
        x_fin, params["proj"]["w"].astype(bf16), params["proj"]["b"]
    ).reshape(B, Lq, -1)

    sa = sa_flat.reshape(n_layers, H, B, Lq, Lq).transpose(0, 2, 1, 3, 4)
    ea = ea_flat.reshape(n_layers, H, B, Lq, Lk).transpose(0, 2, 1, 3, 4)
    self_attns = [sa[i] for i in range(n_layers)]
    enc_attns = [ea[i] for i in range(n_layers)]
    return logits, self_attns, enc_attns


if __name__ == "__main__":
    # small shapes consistent with the module
    vocab, d_model, n_heads, d_ff, n_layers = 16, 32, 4, 64, 2
    B, trg_len, src_len = 2, 8, 8
    src_pad_idx, trg_pad_idx = 0, 0

    key = jax.random.PRNGKey(0)
    k_par, k_dec, k_enc, k_encout = jax.random.split(key, 4)
    params = init_decoder_params(k_par, vocab, d_model, n_heads, d_ff, n_layers)

    dec_inputs = jax.random.randint(k_dec, (B, trg_len), 1, vocab, dtype=jnp.int32)
    dec_inputs = dec_inputs.at[:, -2:].set(trg_pad_idx)       # pad tail to exercise mask
    enc_inputs = jax.random.randint(k_enc, (B, src_len), 1, vocab, dtype=jnp.int32)
    enc_inputs = enc_inputs.at[:, -1:].set(src_pad_idx)
    enc_outputs = jax.random.normal(k_encout, (B, src_len, d_model), jnp.float32)

    logits, self_attns, enc_attns = decoder_forward(
        params, dec_inputs, enc_inputs, enc_outputs,
        src_pad_idx, trg_pad_idx, n_heads)

    jax.block_until_ready(logits)
    jax.block_until_ready(self_attns)
    jax.block_until_ready(enc_attns)
    assert logits.shape == (B, trg_len, vocab)
    assert self_attns[0].shape == (B, n_heads, trg_len, trg_len)
    assert enc_attns[0].shape == (B, n_heads, trg_len, src_len)
    assert bool(jnp.all(jnp.isfinite(logits)))
    print("KERNEL_OK")
</pallas_src>

<mosaic_0001>
module attributes {stable_mosaic.version = 11 : i64} {
  func.func @_decoder_stack_kernel(%arg0: i32, %arg1: memref<16x32xf32, #tpu.memory_space<vmem>>, %arg2: memref<16x32xbf16, #tpu.memory_space<vmem>>, %arg3: memref<2x8xf32, #tpu.memory_space<vmem>>, %arg4: memref<2x8xf32, #tpu.memory_space<vmem>>, %arg5: memref<1x32x96xbf16, #tpu.memory_space<vmem>>, %arg6: memref<1x1x96xf32, #tpu.memory_space<vmem>>, %arg7: memref<1x32x32xbf16, #tpu.memory_space<vmem>>, %arg8: memref<1x1x32xf32, #tpu.memory_space<vmem>>, %arg9: memref<1x32x32xbf16, #tpu.memory_space<vmem>>, %arg10: memref<1x1x32xf32, #tpu.memory_space<vmem>>, %arg11: memref<1x32x64xbf16, #tpu.memory_space<vmem>>, %arg12: memref<1x1x64xf32, #tpu.memory_space<vmem>>, %arg13: memref<1x32x32xbf16, #tpu.memory_space<vmem>>, %arg14: memref<1x1x32xf32, #tpu.memory_space<vmem>>, %arg15: memref<1x32x64xbf16, #tpu.memory_space<vmem>>, %arg16: memref<1x1x64xf32, #tpu.memory_space<vmem>>, %arg17: memref<1x64x32xbf16, #tpu.memory_space<vmem>>, %arg18: memref<1x1x32xf32, #tpu.memory_space<vmem>>, %arg19: memref<1x6x32xf32, #tpu.memory_space<vmem>>, %arg20: memref<16x32xf32, #tpu.memory_space<vmem>>, %arg21: memref<8x8x8xf32, #tpu.memory_space<vmem>>, %arg22: memref<8x8x8xf32, #tpu.memory_space<vmem>>, %arg23: memref<16x32xf32, #tpu.memory_space<vmem>>) attributes {dimension_semantics = [#tpu.dimension_semantics<arbitrary>], iteration_bounds = array<i64: 2>, scalar_prefetch = 0 : i64, scratch_operands = 1 : i64, tpu.core_type = #tpu.core_type<tc>, window_params = [{pipeline_mode = #tpu.pipeline_mode<synchronous>, transform_indices = @transform_0, window_bounds = array<i64: 16, 32>}, {pipeline_mode = #tpu.pipeline_mode<synchronous>, transform_indices = @transform_1, window_bounds = array<i64: 16, 32>}, {pipeline_mode = #tpu.pipeline_mode<synchronous>, transform_indices = @transform_2, window_bounds = array<i64: 2, 8>}, {pipeline_mode = #tpu.pipeline_mode<synchronous>, transform_indices = @transform_3, window_bounds = array<i64: 2, 8>}, {transform_indices = @transform_4, window_bounds = array<i64: 1, 32, 96>}, {transform_indices = @transform_5, window_bounds = array<i64: 1, 1, 96>}, {transform_indices = @transform_6, window_bounds = array<i64: 1, 32, 32>}, {transform_indices = @transform_7, window_bounds = array<i64: 1, 1, 32>}, {transform_indices = @transform_8, window_bounds = array<i64: 1, 32, 32>}, {transform_indices = @transform_9, window_bounds = array<i64: 1, 1, 32>}, {transform_indices = @transform_10, window_bounds = array<i64: 1, 32, 64>}, {transform_indices = @transform_11, window_bounds = array<i64: 1, 1, 64>}, {transform_indices = @transform_12, window_bounds = array<i64: 1, 32, 32>}, {transform_indices = @transform_13, window_bounds = array<i64: 1, 1, 32>}, {transform_indices = @transform_14, window_bounds = array<i64: 1, 32, 64>}, {transform_indices = @transform_15, window_bounds = array<i64: 1, 1, 64>}, {transform_indices = @transform_16, window_bounds = array<i64: 1, 64, 32>}, {transform_indices = @transform_17, window_bounds = array<i64: 1, 1, 32>}, {transform_indices = @transform_18, window_bounds = array<i64: 1, 6, 32>}, {pipeline_mode = #tpu.pipeline_mode<synchronous>, transform_indices = @transform_19, window_bounds = array<i64: 16, 32>}, {transform_indices = @transform_20, window_bounds = array<i64: 8, 8, 8>}, {transform_indices = @transform_21, window_bounds = array<i64: 8, 8, 8>}]} {
    %c0_i32 = arith.constant 0 : i32
    %0 = arith.cmpi eq, %arg0, %c0_i32 : i32
    %1 = arith.extui %0 : i1 to i32
    %c0_i32_0 = arith.constant 0 : i32
    %2 = arith.cmpi ne, %1, %c0_i32_0 : i32
    scf.if %2 {
      %c0_100 = arith.constant 0 : index
      %c0_101 = arith.constant 0 : index
      %267 = vector.load %arg1[%c0_100, %c0_101] : memref<16x32xf32, #tpu.memory_space<vmem>>, vector<16x32xf32>
      %c0_102 = arith.constant 0 : index
      %c0_103 = arith.constant 0 : index
      %268 = vector.load %arg23[%c0_102, %c0_103] : memref<16x32xf32, #tpu.memory_space<vmem>>, vector<16x32xf32>
      tpu.vector_store %arg23[%c0_102, %c0_103], %267 {strides = array<i32>} : memref<16x32xf32, #tpu.memory_space<vmem>>, vector<16x32xf32>,
    } else {
    }
    %3 = tpu.iota {dimensions = array<i32: 0>} : vector<8x8xi32>
    %4 = tpu.iota {dimensions = array<i32: 1>} : vector<8x8xi32>
    %5 = arith.cmpi sgt, %4, %3 : vector<8x8xi32>
    %c0 = arith.constant 0 : index
    %c0_1 = arith.constant 0 : index
    %6 = vector.load %arg3[%c0, %c0_1] : memref<2x8xf32, #tpu.memory_space<vmem>>, vector<2x8xf32>
    %cst = arith.constant 5.000000e-01 : f32
    %7 = vector.broadcast %cst : f32 to vector<2x8xf32>
    %8 = arith.cmpf ogt, %6, %7 : vector<2x8xf32>
    %c0_2 = arith.constant 0 : index
    %c0_3 = arith.constant 0 : index
    %9 = vector.load %arg4[%c0_2, %c0_3] : memref<2x8xf32, #tpu.memory_space<vmem>>, vector<2x8xf32>
    %cst_4 = arith.constant 5.000000e-01 : f32
    %10 = vector.broadcast %cst_4 : f32 to vector<2x8xf32>
    %11 = arith.cmpf ogt, %9, %10 : vector<2x8xf32>
    %12 = vector.shape_cast %5 : vector<8x8xi1> to vector<1x8x8xi1>
    %13 = vector.shape_cast %8 : vector<2x8xi1> to vector<2x1x8xi1>
    %14 = vector.broadcast %12 : vector<1x8x8xi1> to vector<2x8x8xi1>
    %15 = vector.broadcast %13 : vector<2x1x8xi1> to vector<2x8x8xi1>
    %16 = arith.ori %14, %15 : vector<2x8x8xi1>
    %cst_5 = arith.constant -1.000000e+09 : f32
    %cst_6 = arith.constant 0.000000e+00 : f32
    %17 = vector.broadcast %cst_5 : f32 to vector<2x8x8xf32>
    %18 = vector.broadcast %cst_6 : f32 to vector<2x8x8xf32>
    %19 = arith.select %16, %17, %18 : vector<2x8x8xi1>, vector<2x8x8xf32>
    %20 = vector.shape_cast %11 : vector<2x8xi1> to vector<2x1x8xi1>
    %cst_7 = arith.constant -1.000000e+09 : f32
    %cst_8 = arith.constant 0.000000e+00 : f32
    %21 = vector.broadcast %cst_7 : f32 to vector<2x1x8xf32>
    %22 = vector.broadcast %cst_8 : f32 to vector<2x1x8xf32>
    %23 = arith.select %20, %21, %22 : vector<2x1x8xi1>, vector<2x1x8xf32>
    %c0_9 = arith.constant 0 : index
    %c0_10 = arith.constant 0 : index
    %c0_11 = arith.constant 0 : index
    %24 = vector.load %arg19[%c0_9, %c0_10, %c0_11] : memref<1x6x32xf32, #tpu.memory_space<vmem>>, vector<1x6x32xf32>
    %25 = vector.shape_cast %24 : vector<1x6x32xf32> to vector<6x32xf32>
    %26 = vector.extract_strided_slice %25 {offsets = [0, 0], sizes = [1, 32], strides = [1, 1]} : vector<6x32xf32> to vector<1x32xf32>
    %27 = vector.extract_strided_slice %25 {offsets = [1, 0], sizes = [1, 32], strides = [1, 1]} : vector<6x32xf32> to vector<1x32xf32>
    %28 = vector.extract_strided_slice %25 {offsets = [2, 0], sizes = [1, 32], strides = [1, 1]} : vector<6x32xf32> to vector<1x32xf32>
    %29 = vector.extract_strided_slice %25 {offsets = [3, 0], sizes = [1, 32], strides = [1, 1]} : vector<6x32xf32> to vector<1x32xf32>
    %30 = vector.extract_strided_slice %25 {offsets = [4, 0], sizes = [1, 32], strides = [1, 1]} : vector<6x32xf32> to vector<1x32xf32>
    %31 = vector.extract_strided_slice %25 {offsets = [5, 0], sizes = [1, 32], strides = [1, 1]} : vector<6x32xf32> to vector<1x32xf32>
    %c0_12 = arith.constant 0 : index
    %c0_13 = arith.constant 0 : index
    %32 = vector.load %arg23[%c0_12, %c0_13] : memref<16x32xf32, #tpu.memory_space<vmem>>, vector<16x32xf32>
    %33 = arith.truncf %32 : vector<16x32xf32> to vector<16x32xbf16>
    %c0_14 = arith.constant 0 : index
    %c0_15 = arith.constant 0 : index
    %c0_16 = arith.constant 0 : index
    %34 = vector.load %arg5[%c0_14, %c0_15, %c0_16] : memref<1x32x96xbf16, #tpu.memory_space<vmem>>, vector<1x32x96xbf16>
    %35 = vector.shape_cast %34 : vector<1x32x96xbf16> to vector<32x96xbf16>
    %cst_17 = arith.constant dense<0.000000e+00> : vector<16x96xf32>
    %36 = tpu.matmul %33, %35, %cst_17 {dimension_numbers = #tpu.dot_dimension_numbers<[1], [0], [0], [1], [0, 0, 1, 1], [], []>} : vector<16x32xbf16>, vector<32x96xbf16>, vector<16x96xf32> -> vector<16x96xf32>
    %c0_18 = arith.constant 0 : index
    %c0_19 = arith.constant 0 : index
    %c0_20 = arith.constant 0 : index
    %37 = vector.load %arg6[%c0_18, %c0_19, %c0_20] : memref<1x1x96xf32, #tpu.memory_space<vmem>>, vector<1x1x96xf32>
    %38 = vector.shape_cast %37 : vector<1x1x96xf32> to vector<1x96xf32>
    %39 = vector.broadcast %38 : vector<1x96xf32> to vector<16x96xf32>
    %40 = arith.addf %36, %39 : vector<16x96xf32>
    %41 = vector.extract_strided_slice %40 {offsets = [0, 0], sizes = [16, 32], strides = [1, 1]} : vector<16x96xf32> to vector<16x32xf32>
    %42 = vector.shape_cast %41 : vector<16x32xf32> to vector<2x8x32xf32>
    %43 = vector.extract_strided_slice %40 {offsets = [0, 32], sizes = [16, 32], strides = [1, 1]} : vector<16x96xf32> to vector<16x32xf32>
    %44 = vector.shape_cast %43 : vector<16x32xf32> to vector<2x8x32xf32>
    %45 = vector.extract_strided_slice %40 {offsets = [0, 64], sizes = [16, 32], strides = [1, 1]} : vector<16x96xf32> to vector<16x32xf32>
    %46 = vector.shape_cast %45 : vector<16x32xf32> to vector<2x8x32xf32>
    %47 = vector.extract_strided_slice %42 {offsets = [0, 0, 0], sizes = [2, 8, 8], strides = [1, 1, 1]} : vector<2x8x32xf32> to vector<2x8x8xf32>
    %48 = vector.extract_strided_slice %42 {offsets = [0, 0, 8], sizes = [2, 8, 8], strides = [1, 1, 1]} : vector<2x8x32xf32> to vector<2x8x8xf32>
    %49 = vector.extract_strided_slice %42 {offsets = [0, 0, 16], sizes = [2, 8, 8], strides = [1, 1, 1]} : vector<2x8x32xf32> to vector<2x8x8xf32>
    %50 = vector.extract_strided_slice %42 {offsets = [0, 0, 24], sizes = [2, 8, 8], strides = [1, 1, 1]} : vector<2x8x32xf32> to vector<2x8x8xf32>
    %51 = tpu.concatenate %47, %48, %49, %50 in 0 : vector<2x8x8xf32>, vector<2x8x8xf32>, vector<2x8x8xf32>, vector<2x8x8xf32> -> vector<8x8x8xf32>
    %52 = arith.truncf %51 : vector<8x8x8xf32> to vector<8x8x8xbf16>
    %53 = vector.extract_strided_slice %44 {offsets = [0, 0, 0], sizes = [2, 8, 8], strides = [1, 1, 1]} : vector<2x8x32xf32> to vector<2x8x8xf32>
    %54 = vector.extract_strided_slice %44 {offsets = [0, 0, 8], sizes = [2, 8, 8], strides = [1, 1, 1]} : vector<2x8x32xf32> to vector<2x8x8xf32>
    %55 = vector.extract_strided_slice %44 {offsets = [0, 0, 16], sizes = [2, 8, 8], strides = [1, 1, 1]} : vector<2x8x32xf32> to vector<2x8x8xf32>
    %56 = vector.extract_strided_slice %44 {offsets = [0, 0, 24], sizes = [2, 8, 8], strides = [1, 1, 1]} : vector<2x8x32xf32> to vector<2x8x8xf32>
    %57 = tpu.concatenate %53, %54, %55, %56 in 0 : vector<2x8x8xf32>, vector<2x8x8xf32>, vector<2x8x8xf32>, vector<2x8x8xf32> -> vector<8x8x8xf32>
    %58 = arith.truncf %57 : vector<8x8x8xf32> to vector<8x8x8xbf16>
    %59 = vector.extract_strided_slice %46 {offsets = [0, 0, 0], sizes = [2, 8, 8], strides = [1, 1, 1]} : vector<2x8x32xf32> to vector<2x8x8xf32>
    %60 = vector.extract_strided_slice %46 {offsets = [0, 0, 8], sizes = [2, 8, 8], strides = [1, 1, 1]} : vector<2x8x32xf32> to vector<2x8x8xf32>
    %61 = vector.extract_strided_slice %46 {offsets = [0, 0, 16], sizes = [2, 8, 8], strides = [1, 1, 1]} : vector<2x8x32xf32> to vector<2x8x8xf32>
    %62 = vector.extract_strided_slice %46 {offsets = [0, 0, 24], sizes = [2, 8, 8], strides = [1, 1, 1]} : vector<2x8x32xf32> to vector<2x8x8xf32>
    %63 = tpu.concatenate %59, %60, %61, %62 in 0 : vector<2x8x8xf32>, vector<2x8x8xf32>, vector<2x8x8xf32>, vector<2x8x8xf32> -> vector<8x8x8xf32>
    %64 = arith.truncf %63 : vector<8x8x8xf32> to vector<8x8x8xbf16>
    "tpu.trace_start"() <{level = 10 : i32, message = "bqd,bkd->bqk"}> : () -> ()
    %cst_21 = arith.constant dense<0.000000e+00> : vector<8x8x8xf32>
    %65 = tpu.matmul %52, %58, %cst_21 {dimension_numbers = #tpu.dot_dimension_numbers<[2], [2], [1], [1], [0, 0, 0, 1, 1, 1], [0], [0]>} : vector<8x8x8xbf16>, vector<8x8x8xbf16>, vector<8x8x8xf32> -> vector<8x8x8xf32>
    "tpu.trace_stop"() : () -> ()
    %66 = vector.shape_cast %65 : vector<8x8x8xf32> to vector<4x2x8x8xf32>
    %cst_22 = arith.constant 0.353553385 : f32
    %67 = vector.broadcast %cst_22 : f32 to vector<4x2x8x8xf32>
    %68 = arith.mulf %66, %67 : vector<4x2x8x8xf32>
    %69 = vector.shape_cast %19 : vector<2x8x8xf32> to vector<1x2x8x8xf32>
    %70 = vector.broadcast %69 : vector<1x2x8x8xf32> to vector<4x2x8x8xf32>
    %71 = arith.addf %68, %70 : vector<4x2x8x8xf32>
    %cst_23 = arith.constant dense<0xFF800000> : vector<4x2x8xf32>
    %72 = vector.multi_reduction <maximumf>, %71, %cst_23 [3] : vector<4x2x8x8xf32> to vector<4x2x8xf32>
    %73 = vector.shape_cast %72 : vector<4x2x8xf32> to vector<4x2x8x1xf32>
    %74 = vector.broadcast %73 : vector<4x2x8x1xf32> to vector<4x2x8x8xf32>
    %75 = arith.subf %71, %74 : vector<4x2x8x8xf32>
    %76 = math.exp %75 : vector<4x2x8x8xf32>
    %cst_24 = arith.constant dense<0.000000e+00> : vector<4x2x8xf32>
    %77 = vector.multi_reduction <add>, %76, %cst_24 [3] : vector<4x2x8x8xf32> to vector<4x2x8xf32>
    %78 = vector.shape_cast %77 : vector<4x2x8xf32> to vector<4x2x8x1xf32>
    %79 = vector.broadcast %78 : vector<4x2x8x1xf32> to vector<4x2x8x8xf32>
    %80 = arith.divf %76, %79 : vector<4x2x8x8xf32>
    %81 = vector.shape_cast %80 : vector<4x2x8x8xf32> to vector<8x8x8xf32>
    %c0_25 = arith.constant 0 : index
    %c0_26 = arith.constant 0 : index
    %c0_27 = arith.constant 0 : index
    %82 = vector.load %arg21[%c0_25, %c0_26, %c0_27] : memref<8x8x8xf32, #tpu.memory_space<vmem>>, vector<8x8x8xf32>
    tpu.vector_store %arg21[%c0_25, %c0_26, %c0_27], %81 {strides = array<i32>} : memref<8x8x8xf32, #tpu.memory_space<vmem>>, vector<8x8x8xf32>,
    %83 = arith.truncf %81 : vector<8x8x8xf32> to vector<8x8x8xbf16>
    "tpu.trace_start"() <{level = 10 : i32, message = "bqk,bkd->bqd"}> : () -> ()
    %cst_28 = arith.constant dense<0.000000e+00> : vector<8x8x8xf32>
    %84 = tpu.matmul %83, %64, %cst_28 {dimension_numbers = #tpu.dot_dimension_numbers<[2], [1], [1], [2], [0, 0, 0, 1, 1, 2], [0], [0]>} : vector<8x8x8xbf16>, vector<8x8x8xbf16>, vector<8x8x8xf32> -> vector<8x8x8xf32>
    "tpu.trace_stop"() : () -> ()
    %85 = vector.shape_cast %84 : vector<8x8x8xf32> to vector<4x2x8x8xf32>
    %86 = vector.extract_strided_slice %85 {offsets = [0, 0, 0, 0], sizes = [1, 2, 8, 8], strides = [1, 1, 1, 1]} : vector<4x2x8x8xf32> to vector<1x2x8x8xf32>
    %87 = vector.shape_cast %86 : vector<1x2x8x8xf32> to vector<2x8x8xf32>
    %88 = vector.extract_strided_slice %85 {offsets = [1, 0, 0, 0], sizes = [1, 2, 8, 8], strides = [1, 1, 1, 1]} : vector<4x2x8x8xf32> to vector<1x2x8x8xf32>
    %89 = vector.shape_cast %88 : vector<1x2x8x8xf32> to vector<2x8x8xf32>
    %90 = vector.extract_strided_slice %85 {offsets = [2, 0, 0, 0], sizes = [1, 2, 8, 8], strides = [1, 1, 1, 1]} : vector<4x2x8x8xf32> to vector<1x2x8x8xf32>
    %91 = vector.shape_cast %90 : vector<1x2x8x8xf32> to vector<2x8x8xf32>
    %92 = vector.extract_strided_slice %85 {offsets = [3, 0, 0, 0], sizes = [1, 2, 8, 8], strides = [1, 1, 1, 1]} : vector<4x2x8x8xf32> to vector<1x2x8x8xf32>
    %93 = vector.shape_cast %92 : vector<1x2x8x8xf32> to vector<2x8x8xf32>
    %94 = tpu.concatenate %87, %89, %91, %93 in 2 : vector<2x8x8xf32>, vector<2x8x8xf32>, vector<2x8x8xf32>, vector<2x8x8xf32> -> vector<2x8x32xf32>
    %95 = vector.shape_cast %94 : vector<2x8x32xf32> to vector<16x32xf32>
    %96 = arith.truncf %95 : vector<16x32xf32> to vector<16x32xbf16>
    %c0_29 = arith.constant 0 : index
    %c0_30 = arith.constant 0 : index
    %c0_31 = arith.constant 0 : index
    %97 = vector.load %arg7[%c0_29, %c0_30, %c0_31] : memref<1x32x32xbf16, #tpu.memory_space<vmem>>, vector<1x32x32xbf16>
    %98 = vector.shape_cast %97 : vector<1x32x32xbf16> to vector<32x32xbf16>
    %cst_32 = arith.constant dense<0.000000e+00> : vector<16x32xf32>
    %99 = tpu.matmul %96, %98, %cst_32 {dimension_numbers = #tpu.dot_dimension_numbers<[1], [0], [0], [1], [0, 0, 1, 1], [], []>} : vector<16x32xbf16>, vector<32x32xbf16>, vector<16x32xf32> -> vector<16x32xf32>
    %c0_33 = arith.constant 0 : index
    %c0_34 = arith.constant 0 : index
    %c0_35 = arith.constant 0 : index
    %100 = vector.load %arg8[%c0_33, %c0_34, %c0_35] : memref<1x1x32xf32, #tpu.memory_space<vmem>>, vector<1x1x32xf32>
    %101 = vector.shape_cast %100 : vector<1x1x32xf32> to vector<1x32xf32>
    %102 = vector.broadcast %101 : vector<1x32xf32> to vector<16x32xf32>
    %103 = arith.addf %99, %102 : vector<16x32xf32>
    %104 = arith.addf %103, %32 : vector<16x32xf32>
    %cst_36 = arith.constant dense<0.000000e+00> : vector<16xf32>
    %105 = vector.multi_reduction <add>, %104, %cst_36 [1] : vector<16x32xf32> to vector<16xf32>
    %106 = vector.shape_cast %105 : vector<16xf32> to vector<16x1xf32>
    %cst_37 = arith.constant 3.200000e+01 : f32
    %107 = vector.broadcast %cst_37 : f32 to vector<16x1xf32>
    %108 = arith.divf %106, %107 : vector<16x1xf32>
    %109 = vector.broadcast %108 : vector<16x1xf32> to vector<16x32xf32>
    %110 = arith.subf %104, %109 : vector<16x32xf32>
    %111 = arith.mulf %110, %110 : vector<16x32xf32>
    %cst_38 = arith.constant dense<0.000000e+00> : vector<16xf32>
    %112 = vector.multi_reduction <add>, %111, %cst_38 [1] : vector<16x32xf32> to vector<16xf32>
    %113 = vector.shape_cast %112 : vector<16xf32> to vector<16x1xf32>
    %cst_39 = arith.constant 3.200000e+01 : f32
    %114 = vector.broadcast %cst_39 : f32 to vector<16x1xf32>
    %115 = arith.divf %113, %114 : vector<16x1xf32>
    %cst_40 = arith.constant 9.99999974E-6 : f32
    %116 = vector.broadcast %cst_40 : f32 to vector<16x1xf32>
    %117 = arith.addf %115, %116 : vector<16x1xf32>
    %118 = math.rsqrt %117 : vector<16x1xf32>
    %119 = vector.broadcast %118 : vector<16x1xf32> to vector<16x32xf32>
    %120 = arith.mulf %110, %119 : vector<16x32xf32>
    %121 = vector.broadcast %26 : vector<1x32xf32> to vector<16x32xf32>
    %122 = arith.mulf %120, %121 : vector<16x32xf32>
    %123 = vector.broadcast %27 : vector<1x32xf32> to vector<16x32xf32>
    %124 = arith.addf %122, %123 : vector<16x32xf32>
    %125 = arith.truncf %124 : vector<16x32xf32> to vector<16x32xbf16>
    %c0_41 = arith.constant 0 : index
    %c0_42 = arith.constant 0 : index
    %c0_43 = arith.constant 0 : index
    %126 = vector.load %arg9[%c0_41, %c0_42, %c0_43] : memref<1x32x32xbf16, #tpu.memory_space<vmem>>, vector<1x32x32xbf16>
    %127 = vector.shape_cast %126 : vector<1x32x32xbf16> to vector<32x32xbf16>
    %cst_44 = arith.constant dense<0.000000e+00> : vector<16x32xf32>
    %128 = tpu.matmul %125, %127, %cst_44 {dimension_numbers = #tpu.dot_dimension_numbers<[1], [0], [0], [1], [0, 0, 1, 1], [], []>} : vector<16x32xbf16>, vector<32x32xbf16>, vector<16x32xf32> -> vector<16x32xf32>
    %c0_45 = arith.constant 0 : index
    %c0_46 = arith.constant 0 : index
    %c0_47 = arith.constant 0 : index
    %129 = vector.load %arg10[%c0_45, %c0_46, %c0_47] : memref<1x1x32xf32, #tpu.memory_space<vmem>>, vector<1x1x32xf32>
    %130 = vector.shape_cast %129 : vector<1x1x32xf32> to vector<1x32xf32>
    %131 = vector.broadcast %130 : vector<1x32xf32> to vector<16x32xf32>
    %132 = arith.addf %128, %131 : vector<16x32xf32>
    %c0_48 = arith.constant 0 : index
    %c0_49 = arith.constant 0 : index
    %133 = vector.load %arg2[%c0_48, %c0_49] : memref<16x32xbf16, #tpu.memory_space<vmem>>, vector<16x32xbf16>
    %c0_50 = arith.constant 0 : index
    %c0_51 = arith.constant 0 : index
    %c0_52 = arith.constant 0 : index
    %134 = vector.load %arg11[%c0_50, %c0_51, %c0_52] : memref<1x32x64xbf16, #tpu.memory_space<vmem>>, vector<1x32x64xbf16>
    %135 = vector.shape_cast %134 : vector<1x32x64xbf16> to vector<32x64xbf16>
    %cst_53 = arith.constant dense<0.000000e+00> : vector<16x64xf32>
    %136 = tpu.matmul %133, %135, %cst_53 {dimension_numbers = #tpu.dot_dimension_numbers<[1], [0], [0], [1], [0, 0, 1, 1], [], []>} : vector<16x32xbf16>, vector<32x64xbf16>, vector<16x64xf32> -> vector<16x64xf32>
    %c0_54 = arith.constant 0 : index
    %c0_55 = arith.constant 0 : index
    %c0_56 = arith.constant 0 : index
    %137 = vector.load %arg12[%c0_54, %c0_55, %c0_56] : memref<1x1x64xf32, #tpu.memory_space<vmem>>, vector<1x1x64xf32>
    %138 = vector.shape_cast %137 : vector<1x1x64xf32> to vector<1x64xf32>
    %139 = vector.broadcast %138 : vector<1x64xf32> to vector<16x64xf32>
    %140 = arith.addf %136, %139 : vector<16x64xf32>
    %141 = vector.shape_cast %132 : vector<16x32xf32> to vector<2x8x32xf32>
    %142 = vector.extract_strided_slice %140 {offsets = [0, 0], sizes = [16, 32], strides = [1, 1]} : vector<16x64xf32> to vector<16x32xf32>
    %143 = vector.shape_cast %142 : vector<16x32xf32> to vector<2x8x32xf32>
    %144 = vector.extract_strided_slice %140 {offsets = [0, 32], sizes = [16, 32], strides = [1, 1]} : vector<16x64xf32> to vector<16x32xf32>
    %145 = vector.shape_cast %144 : vector<16x32xf32> to vector<2x8x32xf32>
    %146 = vector.extract_strided_slice %141 {offsets = [0, 0, 0], sizes = [2, 8, 8], strides = [1, 1, 1]} : vector<2x8x32xf32> to vector<2x8x8xf32>
    %147 = vector.extract_strided_slice %141 {offsets = [0, 0, 8], sizes = [2, 8, 8], strides = [1, 1, 1]} : vector<2x8x32xf32> to vector<2x8x8xf32>
    %148 = vector.extract_strided_slice %141 {offsets = [0, 0, 16], sizes = [2, 8, 8], strides = [1, 1, 1]} : vector<2x8x32xf32> to vector<2x8x8xf32>
    %149 = vector.extract_strided_slice %141 {offsets = [0, 0, 24], sizes = [2, 8, 8], strides = [1, 1, 1]} : vector<2x8x32xf32> to vector<2x8x8xf32>
    %150 = tpu.concatenate %146, %147, %148, %149 in 0 : vector<2x8x8xf32>, vector<2x8x8xf32>, vector<2x8x8xf32>, vector<2x8x8xf32> -> vector<8x8x8xf32>
    %151 = arith.truncf %150 : vector<8x8x8xf32> to vector<8x8x8xbf16>
    %152 = vector.extract_strided_slice %143 {offsets = [0, 0, 0], sizes = [2, 8, 8], strides = [1, 1, 1]} : vector<2x8x32xf32> to vector<2x8x8xf32>
    %153 = vector.extract_strided_slice %143 {offsets = [0, 0, 8], sizes = [2, 8, 8], strides = [1, 1, 1]} : vector<2x8x32xf32> to vector<2x8x8xf32>
    %154 = vector.extract_strided_slice %143 {offsets = [0, 0, 16], sizes = [2, 8, 8], strides = [1, 1, 1]} : vector<2x8x32xf32> to vector<2x8x8xf32>
    %155 = vector.extract_strided_slice %143 {offsets = [0, 0, 24], sizes = [2, 8, 8], strides = [1, 1, 1]} : vector<2x8x32xf32> to vector<2x8x8xf32>
    %156 = tpu.concatenate %152, %153, %154, %155 in 0 : vector<2x8x8xf32>, vector<2x8x8xf32>, vector<2x8x8xf32>, vector<2x8x8xf32> -> vector<8x8x8xf32>
    %157 = arith.truncf %156 : vector<8x8x8xf32> to vector<8x8x8xbf16>
    %158 = vector.extract_strided_slice %145 {offsets = [0, 0, 0], sizes = [2, 8, 8], strides = [1, 1, 1]} : vector<2x8x32xf32> to vector<2x8x8xf32>
    %159 = vector.extract_strided_slice %145 {offsets = [0, 0, 8], sizes = [2, 8, 8], strides = [1, 1, 1]} : vector<2x8x32xf32> to vector<2x8x8xf32>
    %160 = vector.extract_strided_slice %145 {offsets = [0, 0, 16], sizes = [2, 8, 8], strides = [1, 1, 1]} : vector<2x8x32xf32> to vector<2x8x8xf32>
    %161 = vector.extract_strided_slice %145 {offsets = [0, 0, 24], sizes = [2, 8, 8], strides = [1, 1, 1]} : vector<2x8x32xf32> to vector<2x8x8xf32>
    %162 = tpu.concatenate %158, %159, %160, %161 in 0 : vector<2x8x8xf32>, vector<2x8x8xf32>, vector<2x8x8xf32>, vector<2x8x8xf32> -> vector<8x8x8xf32>
    %163 = arith.truncf %162 : vector<8x8x8xf32> to vector<8x8x8xbf16>
    "tpu.trace_start"() <{level = 10 : i32, message = "bqd,bkd->bqk"}> : () -> ()
    %cst_57 = arith.constant dense<0.000000e+00> : vector<8x8x8xf32>
    %164 = tpu.matmul %151, %157, %cst_57 {dimension_numbers = #tpu.dot_dimension_numbers<[2], [2], [1], [1], [0, 0, 0, 1, 1, 1], [0], [0]>} : vector<8x8x8xbf16>, vector<8x8x8xbf16>, vector<8x8x8xf32> -> vector<8x8x8xf32>
    "tpu.trace_stop"() : () -> ()
    %165 = vector.shape_cast %164 : vector<8x8x8xf32> to vector<4x2x8x8xf32>
    %cst_58 = arith.constant 0.353553385 : f32
    %166 = vector.broadcast %cst_58 : f32 to vector<4x2x8x8xf32>
    %167 = arith.mulf %165, %166 : vector<4x2x8x8xf32>
    %168 = vector.shape_cast %23 : vector<2x1x8xf32> to vector<1x2x1x8xf32>
    %169 = vector.broadcast %168 : vector<1x2x1x8xf32> to vector<4x2x8x8xf32>
    %170 = arith.addf %167, %169 : vector<4x2x8x8xf32>
    %cst_59 = arith.constant dense<0xFF800000> : vector<4x2x8xf32>
    %171 = vector.multi_reduction <maximumf>, %170, %cst_59 [3] : vector<4x2x8x8xf32> to vector<4x2x8xf32>
    %172 = vector.shape_cast %171 : vector<4x2x8xf32> to vector<4x2x8x1xf32>
    %173 = vector.broadcast %172 : vector<4x2x8x1xf32> to vector<4x2x8x8xf32>
    %174 = arith.subf %170, %173 : vector<4x2x8x8xf32>
    %175 = math.exp %174 : vector<4x2x8x8xf32>
    %cst_60 = arith.constant dense<0.000000e+00> : vector<4x2x8xf32>
    %176 = vector.multi_reduction <add>, %175, %cst_60 [3] : vector<4x2x8x8xf32> to vector<4x2x8xf32>
    %177 = vector.shape_cast %176 : vector<4x2x8xf32> to vector<4x2x8x1xf32>
    %178 = vector.broadcast %177 : vector<4x2x8x1xf32> to vector<4x2x8x8xf32>
    %179 = arith.divf %175, %178 : vector<4x2x8x8xf32>
    %180 = vector.shape_cast %179 : vector<4x2x8x8xf32> to vector<8x8x8xf32>
    %c0_61 = arith.constant 0 : index
    %c0_62 = arith.constant 0 : index
    %c0_63 = arith.constant 0 : index
    %181 = vector.load %arg22[%c0_61, %c0_62, %c0_63] : memref<8x8x8xf32, #tpu.memory_space<vmem>>, vector<8x8x8xf32>
    tpu.vector_store %arg22[%c0_61, %c0_62, %c0_63], %180 {strides = array<i32>} : memref<8x8x8xf32, #tpu.memory_space<vmem>>, vector<8x8x8xf32>,
    %182 = arith.truncf %180 : vector<8x8x8xf32> to vector<8x8x8xbf16>
    "tpu.trace_start"() <{level = 10 : i32, message = "bqk,bkd->bqd"}> : () -> ()
    %cst_64 = arith.constant dense<0.000000e+00> : vector<8x8x8xf32>
    %183 = tpu.matmul %182, %163, %cst_64 {dimension_numbers = #tpu.dot_dimension_numbers<[2], [1], [1], [2], [0, 0, 0, 1, 1, 2], [0], [0]>} : vector<8x8x8xbf16>, vector<8x8x8xbf16>, vector<8x8x8xf32> -> vector<8x8x8xf32>
    "tpu.trace_stop"() : () -> ()
    %184 = vector.shape_cast %183 : vector<8x8x8xf32> to vector<4x2x8x8xf32>
    %185 = vector.extract_strided_slice %184 {offsets = [0, 0, 0, 0], sizes = [1, 2, 8, 8], strides = [1, 1, 1, 1]} : vector<4x2x8x8xf32> to vector<1x2x8x8xf32>
    %186 = vector.shape_cast %185 : vector<1x2x8x8xf32> to vector<2x8x8xf32>
    %187 = vector.extract_strided_slice %184 {offsets = [1, 0, 0, 0], sizes = [1, 2, 8, 8], strides = [1, 1, 1, 1]} : vector<4x2x8x8xf32> to vector<1x2x8x8xf32>
    %188 = vector.shape_cast %187 : vector<1x2x8x8xf32> to vector<2x8x8xf32>
    %189 = vector.extract_strided_slice %184 {offsets = [2, 0, 0, 0], sizes = [1, 2, 8, 8], strides = [1, 1, 1, 1]} : vector<4x2x8x8xf32> to vector<1x2x8x8xf32>
    %190 = vector.shape_cast %189 : vector<1x2x8x8xf32> to vector<2x8x8xf32>
    %191 = vector.extract_strided_slice %184 {offsets = [3, 0, 0, 0], sizes = [1, 2, 8, 8], strides = [1, 1, 1, 1]} : vector<4x2x8x8xf32> to vector<1x2x8x8xf32>
    %192 = vector.shape_cast %191 : vector<1x2x8x8xf32> to vector<2x8x8xf32>
    %193 = tpu.concatenate %186, %188, %190, %192 in 2 : vector<2x8x8xf32>, vector<2x8x8xf32>, vector<2x8x8xf32>, vector<2x8x8xf32> -> vector<2x8x32xf32>
    %194 = vector.shape_cast %193 : vector<2x8x32xf32> to vector<16x32xf32>
    %195 = arith.truncf %194 : vector<16x32xf32> to vector<16x32xbf16>
    %c0_65 = arith.constant 0 : index
    %c0_66 = arith.constant 0 : index
    %c0_67 = arith.constant 0 : index
    %196 = vector.load %arg13[%c0_65, %c0_66, %c0_67] : memref<1x32x32xbf16, #tpu.memory_space<vmem>>, vector<1x32x32xbf16>
    %197 = vector.shape_cast %196 : vector<1x32x32xbf16> to vector<32x32xbf16>
    %cst_68 = arith.constant dense<0.000000e+00> : vector<16x32xf32>
    %198 = tpu.matmul %195, %197, %cst_68 {dimension_numbers = #tpu.dot_dimension_numbers<[1], [0], [0], [1], [0, 0, 1, 1], [], []>} : vector<16x32xbf16>, vector<32x32xbf16>, vector<16x32xf32> -> vector<16x32xf32>
    %c0_69 = arith.constant 0 : index
    %c0_70 = arith.constant 0 : index
    %c0_71 = arith.constant 0 : index
    %199 = vector.load %arg14[%c0_69, %c0_70, %c0_71] : memref<1x1x32xf32, #tpu.memory_space<vmem>>, vector<1x1x32xf32>
    %200 = vector.shape_cast %199 : vector<1x1x32xf32> to vector<1x32xf32>
    %201 = vector.broadcast %200 : vector<1x32xf32> to vector<16x32xf32>
    %202 = arith.addf %198, %201 : vector<16x32xf32>
    %203 = arith.addf %202, %124 : vector<16x32xf32>
    %cst_72 = arith.constant dense<0.000000e+00> : vector<16xf32>
    %204 = vector.multi_reduction <add>, %203, %cst_72 [1] : vector<16x32xf32> to vector<16xf32>
    %205 = vector.shape_cast %204 : vector<16xf32> to vector<16x1xf32>
    %cst_73 = arith.constant 3.200000e+01 : f32
    %206 = vector.broadcast %cst_73 : f32 to vector<16x1xf32>
    %207 = arith.divf %205, %206 : vector<16x1xf32>
    %208 = vector.broadcast %207 : vector<16x1xf32> to vector<16x32xf32>
    %209 = arith.subf %203, %208 : vector<16x32xf32>
    %210 = arith.mulf %209, %209 : vector<16x32xf32>
    %cst_74 = arith.constant dense<0.000000e+00> : vector<16xf32>
    %211 = vector.multi_reduction <add>, %210, %cst_74 [1] : vector<16x32xf32> to vector<16xf32>
    %212 = vector.shape_cast %211 : vector<16xf32> to vector<16x1xf32>
    %cst_75 = arith.constant 3.200000e+01 : f32
    %213 = vector.broadcast %cst_75 : f32 to vector<16x1xf32>
    %214 = arith.divf %212, %213 : vector<16x1xf32>
    %cst_76 = arith.constant 9.99999974E-6 : f32
    %215 = vector.broadcast %cst_76 : f32 to vector<16x1xf32>
    %216 = arith.addf %214, %215 : vector<16x1xf32>
    %217 = math.rsqrt %216 : vector<16x1xf32>
    %218 = vector.broadcast %217 : vector<16x1xf32> to vector<16x32xf32>
    %219 = arith.mulf %209, %218 : vector<16x32xf32>
    %220 = vector.broadcast %28 : vector<1x32xf32> to vector<16x32xf32>
    %221 = arith.mulf %219, %220 : vector<16x32xf32>
    %222 = vector.broadcast %29 : vector<1x32xf32> to vector<16x32xf32>
    %223 = arith.addf %221, %222 : vector<16x32xf32>
    %224 = arith.truncf %223 : vector<16x32xf32> to vector<16x32xbf16>
    %c0_77 = arith.constant 0 : index
    %c0_78 = arith.constant 0 : index
    %c0_79 = arith.constant 0 : index
    %225 = vector.load %arg15[%c0_77, %c0_78, %c0_79] : memref<1x32x64xbf16, #tpu.memory_space<vmem>>, vector<1x32x64xbf16>
    %226 = vector.shape_cast %225 : vector<1x32x64xbf16> to vector<32x64xbf16>
    %cst_80 = arith.constant dense<0.000000e+00> : vector<16x64xf32>
    %227 = tpu.matmul %224, %226, %cst_80 {dimension_numbers = #tpu.dot_dimension_numbers<[1], [0], [0], [1], [0, 0, 1, 1], [], []>} : vector<16x32xbf16>, vector<32x64xbf16>, vector<16x64xf32> -> vector<16x64xf32>
    %c0_81 = arith.constant 0 : index
    %c0_82 = arith.constant 0 : index
    %c0_83 = arith.constant 0 : index
    %228 = vector.load %arg16[%c0_81, %c0_82, %c0_83] : memref<1x1x64xf32, #tpu.memory_space<vmem>>, vector<1x1x64xf32>
    %229 = vector.shape_cast %228 : vector<1x1x64xf32> to vector<1x64xf32>
    %230 = vector.broadcast %229 : vector<1x64xf32> to vector<16x64xf32>
    %231 = arith.addf %227, %230 : vector<16x64xf32>
    %cst_84 = arith.constant 0.000000e+00 : f32
    %232 = vector.broadcast %cst_84 : f32 to vector<16x64xf32>
    %233 = arith.maximumf %231, %232 : vector<16x64xf32>
    %234 = arith.truncf %233 : vector<16x64xf32> to vector<16x64xbf16>
    %c0_85 = arith.constant 0 : index
    %c0_86 = arith.constant 0 : index
    %c0_87 = arith.constant 0 : index
    %235 = vector.load %arg17[%c0_85, %c0_86, %c0_87] : memref<1x64x32xbf16, #tpu.memory_space<vmem>>, vector<1x64x32xbf16>
    %236 = vector.shape_cast %235 : vector<1x64x32xbf16> to vector<64x32xbf16>
    %cst_88 = arith.constant dense<0.000000e+00> : vector<16x32xf32>
    %237 = tpu.matmul %234, %236, %cst_88 {dimension_numbers = #tpu.dot_dimension_numbers<[1], [0], [0], [1], [0, 0, 1, 1], [], []>} : vector<16x64xbf16>, vector<64x32xbf16>, vector<16x32xf32> -> vector<16x32xf32>
    %c0_89 = arith.constant 0 : index
    %c0_90 = arith.constant 0 : index
    %c0_91 = arith.constant 0 : index
    %238 = vector.load %arg18[%c0_89, %c0_90, %c0_91] : memref<1x1x32xf32, #tpu.memory_space<vmem>>, vector<1x1x32xf32>
    %239 = vector.shape_cast %238 : vector<1x1x32xf32> to vector<1x32xf32>
    %240 = vector.broadcast %239 : vector<1x32xf32> to vector<16x32xf32>
    %241 = arith.addf %237, %240 : vector<16x32xf32>
    %242 = arith.addf %241, %223 : vector<16x32xf32>
    %cst_92 = arith.constant dense<0.000000e+00> : vector<16xf32>
    %243 = vector.multi_reduction <add>, %242, %cst_92 [1] : vector<16x32xf32> to vector<16xf32>
    %244 = vector.shape_cast %243 : vector<16xf32> to vector<16x1xf32>
    %cst_93 = arith.constant 3.200000e+01 : f32
    %245 = vector.broadcast %cst_93 : f32 to vector<16x1xf32>
    %246 = arith.divf %244, %245 : vector<16x1xf32>
    %247 = vector.broadcast %246 : vector<16x1xf32> to vector<16x32xf32>
    %248 = arith.subf %242, %247 : vector<16x32xf32>
    %249 = arith.mulf %248, %248 : vector<16x32xf32>
    %cst_94 = arith.constant dense<0.000000e+00> : vector<16xf32>
    %250 = vector.multi_reduction <add>, %249, %cst_94 [1] : vector<16x32xf32> to vector<16xf32>
    %251 = vector.shape_cast %250 : vector<16xf32> to vector<16x1xf32>
    %cst_95 = arith.constant 3.200000e+01 : f32
    %252 = vector.broadcast %cst_95 : f32 to vector<16x1xf32>
    %253 = arith.divf %251, %252 : vector<16x1xf32>
    %cst_96 = arith.constant 9.99999974E-6 : f32
    %254 = vector.broadcast %cst_96 : f32 to vector<16x1xf32>
    %255 = arith.addf %253, %254 : vector<16x1xf32>
    %256 = math.rsqrt %255 : vector<16x1xf32>
    %257 = vector.broadcast %256 : vector<16x1xf32> to vector<16x32xf32>
    %258 = arith.mulf %248, %257 : vector<16x32xf32>
    %259 = vector.broadcast %30 : vector<1x32xf32> to vector<16x32xf32>
    %260 = arith.mulf %258, %259 : vector<16x32xf32>
    %261 = vector.broadcast %31 : vector<1x32xf32> to vector<16x32xf32>
    %262 = arith.addf %260, %261 : vector<16x32xf32>
    %c0_97 = arith.constant 0 : index
    %c0_98 = arith.constant 0 : index
    %263 = vector.load %arg23[%c0_97, %c0_98] : memref<16x32xf32, #tpu.memory_space<vmem>>, vector<16x32xf32>
    tpu.vector_store %arg23[%c0_97, %c0_98], %262 {strides = array<i32>} : memref<16x32xf32, #tpu.memory_space<vmem>>, vector<16x32xf32>,
    %c1_i32 = arith.constant 1 : i32
    %264 = arith.cmpi eq, %arg0, %c1_i32 : i32
    %265 = arith.extui %264 : i1 to i32
    %c0_i32_99 = arith.constant 0 : i32
    %266 = arith.cmpi ne, %265, %c0_i32_99 : i32
    scf.if %266 {
      %c0_100 = arith.constant 0 : index
      %c0_101 = arith.constant 0 : index
      %267 = vector.load %arg20[%c0_100, %c0_101] : memref<16x32xf32, #tpu.memory_space<vmem>>, vector<16x32xf32>
      tpu.vector_store %arg20[%c0_100, %c0_101], %262 {strides = array<i32>} : memref<16x32xf32, #tpu.memory_space<vmem>>, vector<16x32xf32>,
    } else {
    }
    return
  }
  func.func @transform_0(%arg0: i32) -> (i32, i32) {
    %c0_i32 = arith.constant 0 : i32
    %c0_i32_0 = arith.constant 0 : i32
    %c0_i32_1 = arith.constant 0 : i32
    return %c0_i32, %c0_i32_0 : i32, i32
  }
  func.func @transform_1(%arg0: i32) -> (i32, i32) {
    %c0_i32 = arith.constant 0 : i32
    %c0_i32_0 = arith.constant 0 : i32
    %c0_i32_1 = arith.constant 0 : i32
    return %c0_i32, %c0_i32_0 : i32, i32
  }
  func.func @transform_2(%arg0: i32) -> (i32, i32) {
    %c0_i32 = arith.constant 0 : i32
    %c0_i32_0 = arith.constant 0 : i32
    %c0_i32_1 = arith.constant 0 : i32
    return %c0_i32, %c0_i32_0 : i32, i32
  }
  func.func @transform_3(%arg0: i32) -> (i32, i32) {
    %c0_i32 = arith.constant 0 : i32
    %c0_i32_0 = arith.constant 0 : i32
    %c0_i32_1 = arith.constant 0 : i32
    return %c0_i32, %c0_i32_0 : i32, i32
  }
  func.func @transform_4(%arg0: i32) -> (i32, i32, i32) {
    %c0_i32 = arith.constant 0 : i32
    %c0_i32_0 = arith.constant 0 : i32
    %c0_i32_1 = arith.constant 0 : i32
    return %arg0, %c0_i32, %c0_i32_0 : i32, i32, i32
  }
  func.func @transform_5(%arg0: i32) -> (i32, i32, i32) {
    %c0_i32 = arith.constant 0 : i32
    %c0_i32_0 = arith.constant 0 : i32
    %c0_i32_1 = arith.constant 0 : i32
    return %arg0, %c0_i32, %c0_i32_0 : i32, i32, i32
  }
  func.func @transform_6(%arg0: i32) -> (i32, i32, i32) {
    %c0_i32 = arith.constant 0 : i32
    %c0_i32_0 = arith.constant 0 : i32
    %c0_i32_1 = arith.constant 0 : i32
    return %arg0, %c0_i32, %c0_i32_0 : i32, i32, i32
  }
  func.func @transform_7(%arg0: i32) -> (i32, i32, i32) {
    %c0_i32 = arith.constant 0 : i32
    %c0_i32_0 = arith.constant 0 : i32
    %c0_i32_1 = arith.constant 0 : i32
    return %arg0, %c0_i32, %c0_i32_0 : i32, i32, i32
  }
  func.func @transform_8(%arg0: i32) -> (i32, i32, i32) {
    %c0_i32 = arith.constant 0 : i32
    %c0_i32_0 = arith.constant 0 : i32
    %c0_i32_1 = arith.constant 0 : i32
    return %arg0, %c0_i32, %c0_i32_0 : i32, i32, i32
  }
  func.func @transform_9(%arg0: i32) -> (i32, i32, i32) {
    %c0_i32 = arith.constant 0 : i32
    %c0_i32_0 = arith.constant 0 : i32
    %c0_i32_1 = arith.constant 0 : i32
    return %arg0, %c0_i32, %c0_i32_0 : i32, i32, i32
  }
  func.func @transform_10(%arg0: i32) -> (i32, i32, i32) {
    %c0_i32 = arith.constant 0 : i32
    %c0_i32_0 = arith.constant 0 : i32
    %c0_i32_1 = arith.constant 0 : i32
    return %arg0, %c0_i32, %c0_i32_0 : i32, i32, i32
  }
  func.func @transform_11(%arg0: i32) -> (i32, i32, i32) {
    %c0_i32 = arith.constant 0 : i32
    %c0_i32_0 = arith.constant 0 : i32
    %c0_i32_1 = arith.constant 0 : i32
    return %arg0, %c0_i32, %c0_i32_0 : i32, i32, i32
  }
  func.func @transform_12(%arg0: i32) -> (i32, i32, i32) {
    %c0_i32 = arith.constant 0 : i32
    %c0_i32_0 = arith.constant 0 : i32
    %c0_i32_1 = arith.constant 0 : i32
    return %arg0, %c0_i32, %c0_i32_0 : i32, i32, i32
  }
  func.func @transform_13(%arg0: i32) -> (i32, i32, i32) {
    %c0_i32 = arith.constant 0 : i32
    %c0_i32_0 = arith.constant 0 : i32
    %c0_i32_1 = arith.constant 0 : i32
    return %arg0, %c0_i32, %c0_i32_0 : i32, i32, i32
  }
  func.func @transform_14(%arg0: i32) -> (i32, i32, i32) {
    %c0_i32 = arith.constant 0 : i32
    %c0_i32_0 = arith.constant 0 : i32
    %c0_i32_1 = arith.constant 0 : i32
    return %arg0, %c0_i32, %c0_i32_0 : i32, i32, i32
  }
  func.func @transform_15(%arg0: i32) -> (i32, i32, i32) {
    %c0_i32 = arith.constant 0 : i32
    %c0_i32_0 = arith.constant 0 : i32
    %c0_i32_1 = arith.constant 0 : i32
    return %arg0, %c0_i32, %c0_i32_0 : i32, i32, i32
  }
  func.func @transform_16(%arg0: i32) -> (i32, i32, i32) {
    %c0_i32 = arith.constant 0 : i32
    %c0_i32_0 = arith.constant 0 : i32
    %c0_i32_1 = arith.constant 0 : i32
    return %arg0, %c0_i32, %c0_i32_0 : i32, i32, i32
  }
  func.func @transform_17(%arg0: i32) -> (i32, i32, i32) {
    %c0_i32 = arith.constant 0 : i32
    %c0_i32_0 = arith.constant 0 : i32
    %c0_i32_1 = arith.constant 0 : i32
    return %arg0, %c0_i32, %c0_i32_0 : i32, i32, i32
  }
  func.func @transform_18(%arg0: i32) -> (i32, i32, i32) {
    %c0_i32 = arith.constant 0 : i32
    %c0_i32_0 = arith.constant 0 : i32
    %c0_i32_1 = arith.constant 0 : i32
    return %arg0, %c0_i32, %c0_i32_0 : i32, i32, i32
  }
  func.func @transform_19(%arg0: i32) -> (i32, i32) {
    %c0_i32 = arith.constant 0 : i32
    %c0_i32_0 = arith.constant 0 : i32
    %c0_i32_1 = arith.constant 0 : i32
    return %c0_i32, %c0_i32_0 : i32, i32
  }
  func.func @transform_20(%arg0: i32) -> (i32, i32, i32) {
    %c0_i32 = arith.constant 0 : i32
    %c0_i32_0 = arith.constant 0 : i32
    %c0_i32_1 = arith.constant 0 : i32
    return %arg0, %c0_i32, %c0_i32_0 : i32, i32, i32
  }
  func.func @transform_21(%arg0: i32) -> (i32, i32, i32) {
    %c0_i32 = arith.constant 0 : i32
    %c0_i32_0 = arith.constant 0 : i32
    %c0_i32_1 = arith.constant 0 : i32
    return %arg0, %c0_i32, %c0_i32_0 : i32, i32, i32
  }
}

</mosaic_0001>

<llo_original>
// kernel: tpu_custom_call.1
$region0: #{tpu_custom_call.1}
  #allocation0 [shape = 'u32[]', space=smem, size = 0x4, offset = 0x4, fixed_abs, tag = 'smem constant byte address 0x4 - core index']
  #allocation1 [shape = 'u32[72,128]{1,0:T(1,128)}', space=vmem, size = 0x9000, scoped, tag = 'internal scratch']
  #allocation2 [shape = 'f32[16,32]{1,0:T(8,128)}', space=vmem, size = 0x2000, scoped, tag = 'scratch operand']
  %s0 = inlined_call_operand.hbm [shape: f32[16,32], index: 0, kind: input, shape index: {}]
  %s1 = inlined_call_operand.hbm [shape: bf16[16,32], index: 1, kind: input, shape index: {}]
  %s2 = inlined_call_operand.hbm [shape: f32[2,8], index: 2, kind: input, shape index: {}]
  %s3 = inlined_call_operand.hbm [shape: f32[2,8], index: 3, kind: input, shape index: {}]
  %s4 = inlined_call_operand.vmem [shape: bf16[2,32,96], index: 4, kind: input, shape index: {}]
  %s5 = inlined_call_operand.hbm [shape: f32[2,1,96], index: 5, kind: input, shape index: {}]
  %s6 = inlined_call_operand.vmem [shape: bf16[2,32,32], index: 6, kind: input, shape index: {}]
  %s7 = inlined_call_operand.hbm [shape: f32[2,1,32], index: 7, kind: input, shape index: {}]
  %s8 = inlined_call_operand.vmem [shape: bf16[2,32,32], index: 8, kind: input, shape index: {}]
  %s9 = inlined_call_operand.hbm [shape: f32[2,1,32], index: 9, kind: input, shape index: {}]
  %s10 = inlined_call_operand.hbm [shape: bf16[2,32,64], index: 10, kind: input, shape index: {}]
  %s11 = inlined_call_operand.hbm [shape: f32[2,1,64], index: 11, kind: input, shape index: {}]
  %s12 = inlined_call_operand.hbm [shape: bf16[2,32,32], index: 12, kind: input, shape index: {}]
  %s13 = inlined_call_operand.hbm [shape: f32[2,1,32], index: 13, kind: input, shape index: {}]
  %s14 = inlined_call_operand.hbm [shape: bf16[2,32,64], index: 14, kind: input, shape index: {}]
  %s15 = inlined_call_operand.hbm [shape: f32[2,1,64], index: 15, kind: input, shape index: {}]
  %s16 = inlined_call_operand.vmem [shape: bf16[2,64,32], index: 16, kind: input, shape index: {}]
  %s17 = inlined_call_operand.hbm [shape: f32[2,1,32], index: 17, kind: input, shape index: {}]
  %s18 = inlined_call_operand.vmem [shape: f32[2,6,32], index: 18, kind: input, shape index: {}]
  %s19 = inlined_call_operand.hbm [shape: f32[16,32], index: 19, kind: output, shape index: {0}]
  %s20 = inlined_call_operand.vmem [shape: f32[16,8,8], index: 20, kind: output, shape index: {1}]
  %s21 = inlined_call_operand.vmem [shape: f32[16,8,8], index: 21, kind: output, shape index: {2}]
  %22 = xla_tuple %s19, %s20, %s21
  %s23 = sld [smem:[#allocation0]]
  $region189: #{tpu_custom_call.1} parent=0
    _
  %s25 = ssub.s32 1, %s23
  %s26 = scalar_select 0, %s25, %s23
  $region1: #{tpu_custom_call.1} parent=0
    #allocation3 [shape = 'u8[8192]{0}', space=vmem, size = 0x2000, scoped, tag = 'input window, operand 0, single buffered']
    #allocation4 [shape = 's32[2]{0}', space=sflag, size = 0x8, scoped, tag = 'scoped memory for tpu_custom_call.1']
    #allocation5 [shape = 's32[2]{0}', space=sflag, size = 0x8, scoped, tag = 'scoped memory for tpu_custom_call.1']
    #allocation6 [shape = 'u8[4096]{0}', space=vmem, size = 0x1000, scoped, tag = 'input window, operand 1, single buffered']
    #allocation7 [shape = 's32[1]{0}', space=sflag, size = 0x4, scoped, tag = 'scoped memory for tpu_custom_call.1']
    #allocation8 [shape = 'u8[1024]{0}', space=vmem, size = 0x400, scoped, tag = 'input window, operand 2, single buffered']
    #allocation9 [shape = 'u8[1024]{0}', space=vmem, size = 0x400, scoped, tag = 'input window, operand 3, single buffered']
    #allocation10 [shape = 's32[1]{0}', space=sflag, size = 0x4, scoped, tag = 'scoped memory for tpu_custom_call.1']
    #allocation11 [shape = 'u8[1024]{0}', space=vmem, size = 0x400, scoped, tag = 'input window, operand 5']
    #allocation12 [shape = 'u8[1024]{0}', space=vmem, size = 0x400, scoped, tag = 'input window, operand 7']
    #allocation13 [shape = 'u8[1024]{0}', space=vmem, size = 0x400, scoped, tag = 'input window, operand 9']
    #allocation14 [shape = 'u8[16384]{0}', space=vmem, size = 0x4000, scoped, tag = 'input window, operand 10']
    #allocation15 [shape = 'u8[1024]{0}', space=vmem, size = 0x400, scoped, tag = 'input window, operand 11']
    #allocation16 [shape = 'u8[16384]{0}', space=vmem, size = 0x4000, scoped, tag = 'input window, operand 12']
    #allocation17 [shape = 'u8[1024]{0}', space=vmem, size = 0x400, scoped, tag = 'input window, operand 13']
    #allocation18 [shape = 'u8[16384]{0}', space=vmem, size = 0x4000, scoped, tag = 'input window, operand 14']
    #allocation19 [shape = 'u8[1024]{0}', space=vmem, size = 0x400, scoped, tag = 'input window, operand 15']
    #allocation20 [shape = 'u8[1024]{0}', space=vmem, size = 0x400, scoped, tag = 'input window, operand 17']
    #allocation21 [shape = 'u8[8192]{0}', space=vmem, size = 0x2000, scoped, tag = 'output window, operand 0, single buffered']
    %27 = vsyncpa [#allocation4], 0
    %28 = vsyncpa [#allocation7], 0
    %29 = vsyncpa [#allocation10], 0
    %30 = vsyncpa [#allocation5], 0
    loop: start=0, step=1, limit=4
    $region2: #{tpu_custom_call.1} parent=1 // loop_pre_header
      _
    $region3: #{tpu_custom_call.1} parent=1 // loop_header
      %s32 = sphi 0, %s36
      %p33 = scmp.ge.s32.totalorder %s32, 4
      %s40 = sphi 0, %s40
      %s42 = sphi 0, %s40
      %s43 = sphi 0, %s42
      %s57 = sphi 0, %s43
      %s61 = sphi 0, %s61
      %s63 = sphi 0, %s61
      %s64 = sphi 0, %s63
      %s78 = sphi 0, %s64
      %s82 = sphi 0, %s82
      %s84 = sphi 0, %s82
      %s85 = sphi 0, %s84
      %s99 = sphi 0, %s85
      %s103 = sphi 0, %s103
      %s105 = sphi 0, %s103
      %s106 = sphi 0, %s105
      %s120 = sphi 0, %s106
      %s126 = sphi 0, %s128
      %s129 = sphi 0, %s126
      %s130 = sphi 0, %s129
      %s146 = sphi 0, %s130
      %s152 = sphi 0, %s154
      %s155 = sphi 0, %s152
      %s156 = sphi 0, %s155
      %s172 = sphi 0, %s156
      %s178 = sphi 0, %s180
      %s181 = sphi 0, %s178
      %s182 = sphi 0, %s181
      %s198 = sphi 0, %s182
      %s204 = sphi 0, %s206
      %s207 = sphi 0, %s204
      %s208 = sphi 0, %s207
      %s224 = sphi 0, %s208
      %s230 = sphi 0, %s232
      %s233 = sphi 0, %s230
      %s234 = sphi 0, %s233
      %s250 = sphi 0, %s234
      %s256 = sphi 0, %s258
      %s259 = sphi 0, %s256
      %s260 = sphi 0, %s259
      %s276 = sphi 0, %s260
      %s282 = sphi 0, %s284
      %s285 = sphi 0, %s282
      %s286 = sphi 0, %s285
      %s302 = sphi 0, %s286
      %s308 = sphi 0, %s310
      %s311 = sphi 0, %s308
      %s312 = sphi 0, %s311
      %s328 = sphi 0, %s312
      %s334 = sphi 0, %s336
      %s337 = sphi 0, %s334
      %s338 = sphi 0, %s337
      %s354 = sphi 0, %s338
      %s360 = sphi 0, %s362
      %s363 = sphi 0, %s360
      %s364 = sphi 0, %s363
      %s380 = sphi 0, %s364
      %s386 = sphi 0, %s388
      %s389 = sphi 0, %s386
      %s390 = sphi 0, %s389
      %s406 = sphi 0, %s390
      %s412 = sphi 0, %s414
      %s415 = sphi 0, %s412
      %s416 = sphi 0, %s415
      %s432 = sphi 0, %s416
      %s438 = sphi 0, %s440
      %s441 = sphi 0, %s438
      %s442 = sphi 0, %s441
      %s458 = sphi 0, %s442
      %s464 = sphi 0, %s466
      %s467 = sphi 0, %s464
      %s468 = sphi 0, %s467
      %s484 = sphi 0, %s468
      %s490 = sphi 0, %s492
      %s493 = sphi 0, %s490
      %s494 = sphi 0, %s493
      %s510 = sphi 0, %s494
      %s514 = sphi 0, %s514
      %s516 = sphi 0, %s514
      %s517 = sphi 0, %s516
      %s531 = sphi 0, %s517
      %s537 = sphi 0, %s539
      %s540 = sphi 0, %s537
      %s541 = sphi 0, %s540
      %s557 = sphi 0, %s541
      %s563 = sphi 0, %s565
      %s566 = sphi 0, %s563
      %s567 = sphi 0, %s566
      %s583 = sphi 0, %s567
    $region4: #{tpu_custom_call.1} parent=1 // loop_header_branch
      %35 = sbr.rel (%p33) target = $region8
    $region5: #{tpu_custom_call.1} parent=1 // loop_body
      %s37 = ssub.s32 %s32, 1
      %s38 = ssub.s32 %s32, 2
      %s39 = sadd.s32 %s32, 1
      %s41 = sadd.s32 %s40, 1
      %p44 = scmp.eq.s32.totalorder %s32, 1
      %p45 = scmp.ne.s32.totalorder %s40, %s42
      %p46 = scmp.eq.s32.totalorder %s32, 0
      %p47 = por %p45, %p46
      %p48 = scmp.ne.s32.totalorder %s40, %s42
      %p49 = scmp.eq.s32.totalorder %s37, 1
      %p50 = por %p48, %p49
      %p51 = scmp.ne.s32.totalorder %s42, %s43
      %p52 = scmp.eq.s32.totalorder %s37, 0
      %p53 = por %p51, %p52
      %p54 = scmp.ne.s32.totalorder %s42, %s43
      %p55 = scmp.eq.s32.totalorder %s38, 1
      %p56 = por %p54, %p55
      %p58 = scmp.ne.s32.totalorder %s43, %s57
      %p59 = scmp.eq.s32.totalorder %s38, 0
      %p60 = por %p58, %p59
      %s62 = sadd.s32 %s61, 1
      %p65 = scmp.eq.s32.totalorder %s32, 1
      %p66 = scmp.ne.s32.totalorder %s61, %s63
      %p67 = scmp.eq.s32.totalorder %s32, 0
      %p68 = por %p66, %p67
      %p69 = scmp.ne.s32.totalorder %s61, %s63
      %p70 = scmp.eq.s32.totalorder %s37, 1
      %p71 = por %p69, %p70
      %p72 = scmp.ne.s32.totalorder %s63, %s64
      %p73 = scmp.eq.s32.totalorder %s37, 0
      %p74 = por %p72, %p73
      %p75 = scmp.ne.s32.totalorder %s63, %s64
      %p76 = scmp.eq.s32.totalorder %s38, 1
      %p77 = por %p75, %p76
      %p79 = scmp.ne.s32.totalorder %s64, %s78
      %p80 = scmp.eq.s32.totalorder %s38, 0
      %p81 = por %p79, %p80
      %s83 = sadd.s32 %s82, 1
      %p86 = scmp.eq.s32.totalorder %s32, 1
      %p87 = scmp.ne.s32.totalorder %s82, %s84
      %p88 = scmp.eq.s32.totalorder %s32, 0
      %p89 = por %p87, %p88
      %p90 = scmp.ne.s32.totalorder %s82, %s84
      %p91 = scmp.eq.s32.totalorder %s37, 1
      %p92 = por %p90, %p91
      %p93 = scmp.ne.s32.totalorder %s84, %s85
      %p94 = scmp.eq.s32.totalorder %s37, 0
      %p95 = por %p93, %p94
      %p96 = scmp.ne.s32.totalorder %s84, %s85
      %p97 = scmp.eq.s32.totalorder %s38, 1
      %p98 = por %p96, %p97
      %p100 = scmp.ne.s32.totalorder %s85, %s99
      %p101 = scmp.eq.s32.totalorder %s38, 0
      %p102 = por %p100, %p101
      %s104 = sadd.s32 %s103, 1
      %p107 = scmp.eq.s32.totalorder %s32, 1
      %p108 = scmp.ne.s32.totalorder %s103, %s105
      %p109 = scmp.eq.s32.totalorder %s32, 0
      %p110 = por %p108, %p109
      %p111 = scmp.ne.s32.totalorder %s103, %s105
      %p112 = scmp.eq.s32.totalorder %s37, 1
      %p113 = por %p111, %p112
      %p114 = scmp.ne.s32.totalorder %s105, %s106
      %p115 = scmp.eq.s32.totalorder %s37, 0
      %p116 = por %p114, %p115
      %p117 = scmp.ne.s32.totalorder %s105, %s106
      %p118 = scmp.eq.s32.totalorder %s38, 1
      %p119 = por %p117, %p118
      %p121 = scmp.ne.s32.totalorder %s106, %s120
      %p122 = scmp.eq.s32.totalorder %s38, 0
      %p123 = por %p121, %p122
      %s124 = ssub.s32 %s32, %s39
      %p125 = scmp.eq.s32.totalorder %s124, 0
      %s127 = sadd.s32 %s126, 1
      %s128 = scalar_select %p125, %s126, %s127
      %p131 = pneg %p125
      %p132 = scmp.eq.s32.totalorder %s32, 1
      %p133 = por %p131, %p132
      %p134 = scmp.ne.s32.totalorder %s126, %s129
      %p135 = scmp.eq.s32.totalorder %s32, 0
      %p136 = por %p134, %p135
      %p137 = scmp.ne.s32.totalorder %s126, %s129
      %p138 = scmp.eq.s32.totalorder %s37, 1
      %p139 = por %p137, %p138
      %p140 = scmp.ne.s32.totalorder %s129, %s130
      %p141 = scmp.eq.s32.totalorder %s37, 0
      %p142 = por %p140, %p141
      %p143 = scmp.ne.s32.totalorder %s129, %s130
      %p144 = scmp.eq.s32.totalorder %s38, 1
      %p145 = por %p143, %p144
      %p147 = scmp.ne.s32.totalorder %s130, %s146
      %p148 = scmp.eq.s32.totalorder %s38, 0
      %p149 = por %p147, %p148
      %s150 = ssub.s32 %s32, %s39
      %p151 = scmp.eq.s32.totalorder %s150, 0
      %s153 = sadd.s32 %s152, 1
      %s154 = scalar_select %p151, %s152, %s153
      %p157 = pneg %p151
      %p158 = scmp.eq.s32.totalorder %s32, 1
      %p159 = por %p157, %p158
      %p160 = scmp.ne.s32.totalorder %s152, %s155
      %p161 = scmp.eq.s32.totalorder %s32, 0
      %p162 = por %p160, %p161
      %p163 = scmp.ne.s32.totalorder %s152, %s155
      %p164 = scmp.eq.s32.totalorder %s37, 1
      %p165 = por %p163, %p164
      %p166 = scmp.ne.s32.totalorder %s155, %s156
      %p167 = scmp.eq.s32.totalorder %s37, 0
      %p168 = por %p166, %p167
      %p169 = scmp.ne.s32.totalorder %s155, %s156
      %p170 = scmp.eq.s32.totalorder %s38, 1
      %p171 = por %p169, %p170
      %p173 = scmp.ne.s32.totalorder %s156, %s172
      %p174 = scmp.eq.s32.totalorder %s38, 0
      %p175 = por %p173, %p174
      %s176 = ssub.s32 %s32, %s39
      %p177 = scmp.eq.s32.totalorder %s176, 0
      %s179 = sadd.s32 %s178, 1
      %s180 = scalar_select %p177, %s178, %s179
      %p183 = pneg %p177
      %p184 = scmp.eq.s32.totalorder %s32, 1
      %p185 = por %p183, %p184
      %p186 = scmp.ne.s32.totalorder %s178, %s181
      %p187 = scmp.eq.s32.totalorder %s32, 0
      %p188 = por %p186, %p187
      %p189 = scmp.ne.s32.totalorder %s178, %s181
      %p190 = scmp.eq.s32.totalorder %s37, 1
      %p191 = por %p189, %p190
      %p192 = scmp.ne.s32.totalorder %s181, %s182
      %p193 = scmp.eq.s32.totalorder %s37, 0
      %p194 = por %p192, %p193
      %p195 = scmp.ne.s32.totalorder %s181, %s182
      %p196 = scmp.eq.s32.totalorder %s38, 1
      %p197 = por %p195, %p196
      %p199 = scmp.ne.s32.totalorder %s182, %s198
      %p200 = scmp.eq.s32.totalorder %s38, 0
      %p201 = por %p199, %p200
      %s202 = ssub.s32 %s32, %s39
      %p203 = scmp.eq.s32.totalorder %s202, 0
      %s205 = sadd.s32 %s204, 1
      %s206 = scalar_select %p203, %s204, %s205
      %p209 = pneg %p203
      %p210 = scmp.eq.s32.totalorder %s32, 1
      %p211 = por %p209, %p210
      %p212 = scmp.ne.s32.totalorder %s204, %s207
      %p213 = scmp.eq.s32.totalorder %s32, 0
      %p214 = por %p212, %p213
      %p215 = scmp.ne.s32.totalorder %s204, %s207
      %p216 = scmp.eq.s32.totalorder %s37, 1
      %p217 = por %p215, %p216
      %p218 = scmp.ne.s32.totalorder %s207, %s208
      %p219 = scmp.eq.s32.totalorder %s37, 0
      %p220 = por %p218, %p219
      %p221 = scmp.ne.s32.totalorder %s207, %s208
      %p222 = scmp.eq.s32.totalorder %s38, 1
      %p223 = por %p221, %p222
      %p225 = scmp.ne.s32.totalorder %s208, %s224
      %p226 = scmp.eq.s32.totalorder %s38, 0
      %p227 = por %p225, %p226
      %s228 = ssub.s32 %s32, %s39
      %p229 = scmp.eq.s32.totalorder %s228, 0
      %s231 = sadd.s32 %s230, 1
      %s232 = scalar_select %p229, %s230, %s231
      %p235 = pneg %p229
      %p236 = scmp.eq.s32.totalorder %s32, 1
      %p237 = por %p235, %p236
      %p238 = scmp.ne.s32.totalorder %s230, %s233
      %p239 = scmp.eq.s32.totalorder %s32, 0
      %p240 = por %p238, %p239
      %p241 = scmp.ne.s32.totalorder %s230, %s233
      %p242 = scmp.eq.s32.totalorder %s37, 1
      %p243 = por %p241, %p242
      %p244 = scmp.ne.s32.totalorder %s233, %s234
      %p245 = scmp.eq.s32.totalorder %s37, 0
      %p246 = por %p244, %p245
      %p247 = scmp.ne.s32.totalorder %s233, %s234
      %p248 = scmp.eq.s32.totalorder %s38, 1
      %p249 = por %p247, %p248
      %p251 = scmp.ne.s32.totalorder %s234, %s250
      %p252 = scmp.eq.s32.totalorder %s38, 0
      %p253 = por %p251, %p252
      %s254 = ssub.s32 %s32, %s39
      %p255 = scmp.eq.s32.totalorder %s254, 0
      %s257 = sadd.s32 %s256, 1
      %s258 = scalar_select %p255, %s256, %s257
      %p261 = pneg %p255
      %p262 = scmp.eq.s32.totalorder %s32, 1
      %p263 = por %p261, %p262
      %p264 = scmp.ne.s32.totalorder %s256, %s259
      %p265 = scmp.eq.s32.totalorder %s32, 0
      %p266 = por %p264, %p265
      %p267 = scmp.ne.s32.totalorder %s256, %s259
      %p268 = scmp.eq.s32.totalorder %s37, 1
      %p269 = por %p267, %p268
      %p270 = scmp.ne.s32.totalorder %s259, %s260
      %p271 = scmp.eq.s32.totalorder %s37, 0
      %p272 = por %p270, %p271
      %p273 = scmp.ne.s32.totalorder %s259, %s260
      %p274 = scmp.eq.s32.totalorder %s38, 1
      %p275 = por %p273, %p274
      %p277 = scmp.ne.s32.totalorder %s260, %s276
      %p278 = scmp.eq.s32.totalorder %s38, 0
      %p279 = por %p277, %p278
      %s280 = ssub.s32 %s32, %s39
      %p281 = scmp.eq.s32.totalorder %s280, 0
      %s283 = sadd.s32 %s282, 1
      %s284 = scalar_select %p281, %s282, %s283
      %p287 = pneg %p281
      %p288 = scmp.eq.s32.totalorder %s32, 1
      %p289 = por %p287, %p288
      %p290 = scmp.ne.s32.totalorder %s282, %s285
      %p291 = scmp.eq.s32.totalorder %s32, 0
      %p292 = por %p290, %p291
      %p293 = scmp.ne.s32.totalorder %s282, %s285
      %p294 = scmp.eq.s32.totalorder %s37, 1
      %p295 = por %p293, %p294
      %p296 = scmp.ne.s32.totalorder %s285, %s286
      %p297 = scmp.eq.s32.totalorder %s37, 0
      %p298 = por %p296, %p297
      %p299 = scmp.ne.s32.totalorder %s285, %s286
      %p300 = scmp.eq.s32.totalorder %s38, 1
      %p301 = por %p299, %p300
      %p303 = scmp.ne.s32.totalorder %s286, %s302
      %p304 = scmp.eq.s32.totalorder %s38, 0
      %p305 = por %p303, %p304
      %s306 = ssub.s32 %s32, %s39
      %p307 = scmp.eq.s32.totalorder %s306, 0
      %s309 = sadd.s32 %s308, 1
      %s310 = scalar_select %p307, %s308, %s309
      %p313 = pneg %p307
      %p314 = scmp.eq.s32.totalorder %s32, 1
      %p315 = por %p313, %p314
      %p316 = scmp.ne.s32.totalorder %s308, %s311
      %p317 = scmp.eq.s32.totalorder %s32, 0
      %p318 = por %p316, %p317
      %p319 = scmp.ne.s32.totalorder %s308, %s311
      %p320 = scmp.eq.s32.totalorder %s37, 1
      %p321 = por %p319, %p320
      %p322 = scmp.ne.s32.totalorder %s311, %s312
      %p323 = scmp.eq.s32.totalorder %s37, 0
      %p324 = por %p322, %p323
      %p325 = scmp.ne.s32.totalorder %s311, %s312
      %p326 = scmp.eq.s32.totalorder %s38, 1
      %p327 = por %p325, %p326
      %p329 = scmp.ne.s32.totalorder %s312, %s328
      %p330 = scmp.eq.s32.totalorder %s38, 0
      %p331 = por %p329, %p330
      %s332 = ssub.s32 %s32, %s39
      %p333 = scmp.eq.s32.totalorder %s332, 0
      %s335 = sadd.s32 %s334, 1
      %s336 = scalar_select %p333, %s334, %s335
      %p339 = pneg %p333
      %p340 = scmp.eq.s32.totalorder %s32, 1
      %p341 = por %p339, %p340
      %p342 = scmp.ne.s32.totalorder %s334, %s337
      %p343 = scmp.eq.s32.totalorder %s32, 0
      %p344 = por %p342, %p343
      %p345 = scmp.ne.s32.totalorder %s334, %s337
      %p346 = scmp.eq.s32.totalorder %s37, 1
      %p347 = por %p345, %p346
      %p348 = scmp.ne.s32.totalorder %s337, %s338
      %p349 = scmp.eq.s32.totalorder %s37, 0
      %p350 = por %p348, %p349
      %p351 = scmp.ne.s32.totalorder %s337, %s338
      %p352 = scmp.eq.s32.totalorder %s38, 1
      %p353 = por %p351, %p352
      %p355 = scmp.ne.s32.totalorder %s338, %s354
      %p356 = scmp.eq.s32.totalorder %s38, 0
      %p357 = por %p355, %p356
      %s358 = ssub.s32 %s32, %s39
      %p359 = scmp.eq.s32.totalorder %s358, 0
      %s361 = sadd.s32 %s360, 1
      %s362 = scalar_select %p359, %s360, %s361
      %p365 = pneg %p359
      %p366 = scmp.eq.s32.totalorder %s32, 1
      %p367 = por %p365, %p366
      %p368 = scmp.ne.s32.totalorder %s360, %s363
      %p369 = scmp.eq.s32.totalorder %s32, 0
      %p370 = por %p368, %p369
      %p371 = scmp.ne.s32.totalorder %s360, %s363
      %p372 = scmp.eq.s32.totalorder %s37, 1
      %p373 = por %p371, %p372
      %p374 = scmp.ne.s32.totalorder %s363, %s364
      %p375 = scmp.eq.s32.totalorder %s37, 0
      %p376 = por %p374, %p375
      %p377 = scmp.ne.s32.totalorder %s363, %s364
      %p378 = scmp.eq.s32.totalorder %s38, 1
      %p379 = por %p377, %p378
      %p381 = scmp.ne.s32.totalorder %s364, %s380
      %p382 = scmp.eq.s32.totalorder %s38, 0
      %p383 = por %p381, %p382
      %s384 = ssub.s32 %s32, %s39
      %p385 = scmp.eq.s32.totalorder %s384, 0
      %s387 = sadd.s32 %s386, 1
      %s388 = scalar_select %p385, %s386, %s387
      %p391 = pneg %p385
      %p392 = scmp.eq.s32.totalorder %s32, 1
      %p393 = por %p391, %p392
      %p394 = scmp.ne.s32.totalorder %s386, %s389
      %p395 = scmp.eq.s32.totalorder %s32, 0
      %p396 = por %p394, %p395
      %p397 = scmp.ne.s32.totalorder %s386, %s389
      %p398 = scmp.eq.s32.totalorder %s37, 1
      %p399 = por %p397, %p398
      %p400 = scmp.ne.s32.totalorder %s389, %s390
      %p401 = scmp.eq.s32.totalorder %s37, 0
      %p402 = por %p400, %p401
      %p403 = scmp.ne.s32.totalorder %s389, %s390
      %p404 = scmp.eq.s32.totalorder %s38, 1
      %p405 = por %p403, %p404
      %p407 = scmp.ne.s32.totalorder %s390, %s406
      %p408 = scmp.eq.s32.totalorder %s38, 0
      %p409 = por %p407, %p408
      %s410 = ssub.s32 %s32, %s39
      %p411 = scmp.eq.s32.totalorder %s410, 0
      %s413 = sadd.s32 %s412, 1
      %s414 = scalar_select %p411, %s412, %s413
      %p417 = pneg %p411
      %p418 = scmp.eq.s32.totalorder %s32, 1
      %p419 = por %p417, %p418
      %p420 = scmp.ne.s32.totalorder %s412, %s415
      %p421 = scmp.eq.s32.totalorder %s32, 0
      %p422 = por %p420, %p421
      %p423 = scmp.ne.s32.totalorder %s412, %s415
      %p424 = scmp.eq.s32.totalorder %s37, 1
      %p425 = por %p423, %p424
      %p426 = scmp.ne.s32.totalorder %s415, %s416
      %p427 = scmp.eq.s32.totalorder %s37, 0
      %p428 = por %p426, %p427
      %p429 = scmp.ne.s32.totalorder %s415, %s416
      %p430 = scmp.eq.s32.totalorder %s38, 1
      %p431 = por %p429, %p430
      %p433 = scmp.ne.s32.totalorder %s416, %s432
      %p434 = scmp.eq.s32.totalorder %s38, 0
      %p435 = por %p433, %p434
      %s436 = ssub.s32 %s32, %s39
      %p437 = scmp.eq.s32.totalorder %s436, 0
      %s439 = sadd.s32 %s438, 1
      %s440 = scalar_select %p437, %s438, %s439
      %p443 = pneg %p437
      %p444 = scmp.eq.s32.totalorder %s32, 1
      %p445 = por %p443, %p444
      %p446 = scmp.ne.s32.totalorder %s438, %s441
      %p447 = scmp.eq.s32.totalorder %s32, 0
      %p448 = por %p446, %p447
      %p449 = scmp.ne.s32.totalorder %s438, %s441
      %p450 = scmp.eq.s32.totalorder %s37, 1
      %p451 = por %p449, %p450
      %p452 = scmp.ne.s32.totalorder %s441, %s442
      %p453 = scmp.eq.s32.totalorder %s37, 0
      %p454 = por %p452, %p453
      %p455 = scmp.ne.s32.totalorder %s441, %s442
      %p456 = scmp.eq.s32.totalorder %s38, 1
      %p457 = por %p455, %p456
      %p459 = scmp.ne.s32.totalorder %s442, %s458
      %p460 = scmp.eq.s32.totalorder %s38, 0
      %p461 = por %p459, %p460
      %s462 = ssub.s32 %s32, %s39
      %p463 = scmp.eq.s32.totalorder %s462, 0
      %s465 = sadd.s32 %s464, 1
      %s466 = scalar_select %p463, %s464, %s465
      %p469 = pneg %p463
      %p470 = scmp.eq.s32.totalorder %s32, 1
      %p471 = por %p469, %p470
      %p472 = scmp.ne.s32.totalorder %s464, %s467
      %p473 = scmp.eq.s32.totalorder %s32, 0
      %p474 = por %p472, %p473
      %p475 = scmp.ne.s32.totalorder %s464, %s467
      %p476 = scmp.eq.s32.totalorder %s37, 1
      %p477 = por %p475, %p476
      %p478 = scmp.ne.s32.totalorder %s467, %s468
      %p479 = scmp.eq.s32.totalorder %s37, 0
      %p480 = por %p478, %p479
      %p481 = scmp.ne.s32.totalorder %s467, %s468
      %p482 = scmp.eq.s32.totalorder %s38, 1
      %p483 = por %p481, %p482
      %p485 = scmp.ne.s32.totalorder %s468, %s484
      %p486 = scmp.eq.s32.totalorder %s38, 0
      %p487 = por %p485, %p486
      %s488 = ssub.s32 %s32, %s39
      %p489 = scmp.eq.s32.totalorder %s488, 0
      %s491 = sadd.s32 %s490, 1
      %s492 = scalar_select %p489, %s490, %s491
      %p495 = pneg %p489
      %p496 = scmp.eq.s32.totalorder %s32, 1
      %p497 = por %p495, %p496
      %p498 = scmp.ne.s32.totalorder %s490, %s493
      %p499 = scmp.eq.s32.totalorder %s32, 0
      %p500 = por %p498, %p499
      %p501 = scmp.ne.s32.totalorder %s490, %s493
      %p502 = scmp.eq.s32.totalorder %s37, 1
      %p503 = por %p501, %p502
      %p504 = scmp.ne.s32.totalorder %s493, %s494
      %p505 = scmp.eq.s32.totalorder %s37, 0
      %p506 = por %p504, %p505
      %p507 = scmp.ne.s32.totalorder %s493, %s494
      %p508 = scmp.eq.s32.totalorder %s38, 1
      %p509 = por %p507, %p508
      %p511 = scmp.ne.s32.totalorder %s494, %s510
      %p512 = scmp.eq.s32.totalorder %s38, 0
      %p513 = por %p511, %p512
      %s515 = sadd.s32 %s514, 1
      %p518 = scmp.eq.s32.totalorder %s32, 1
      %p519 = scmp.ne.s32.totalorder %s514, %s516
      %p520 = scmp.eq.s32.totalorder %s32, 0
      %p521 = por %p519, %p520
      %p522 = scmp.ne.s32.totalorder %s514, %s516
      %p523 = scmp.eq.s32.totalorder %s37, 1
      %p524 = por %p522, %p523
      %p525 = scmp.ne.s32.totalorder %s516, %s517
      %p526 = scmp.eq.s32.totalorder %s37, 0
      %p527 = por %p525, %p526
      %p528 = scmp.ne.s32.totalorder %s516, %s517
      %p529 = scmp.eq.s32.totalorder %s38, 1
      %p530 = por %p528, %p529
      %p532 = scmp.ne.s32.totalorder %s517, %s531
      %p533 = scmp.eq.s32.totalorder %s38, 0
      %p534 = por %p532, %p533
      %s535 = ssub.s32 %s32, %s39
      %p536 = scmp.eq.s32.totalorder %s535, 0
      %s538 = sadd.s32 %s537, 1
      %s539 = scalar_select %p536, %s537, %s538
      %p542 = pneg %p536
      %p543 = scmp.eq.s32.totalorder %s32, 1
      %p544 = por %p542, %p543
      %p545 = scmp.ne.s32.totalorder %s537, %s540
      %p546 = scmp.eq.s32.totalorder %s32, 0
      %p547 = por %p545, %p546
      %p548 = scmp.ne.s32.totalorder %s537, %s540
      %p549 = scmp.eq.s32.totalorder %s37, 1
      %p550 = por %p548, %p549
      %p551 = scmp.ne.s32.totalorder %s540, %s541
      %p552 = scmp.eq.s32.totalorder %s37, 0
      %p553 = por %p551, %p552
      %p554 = scmp.ne.s32.totalorder %s540, %s541
      %p555 = scmp.eq.s32.totalorder %s38, 1
      %p556 = por %p554, %p555
      %p558 = scmp.ne.s32.totalorder %s541, %s557
      %p559 = scmp.eq.s32.totalorder %s38, 0
      %p560 = por %p558, %p559
      %s561 = ssub.s32 %s32, %s39
      %p562 = scmp.eq.s32.totalorder %s561, 0
      %s564 = sadd.s32 %s563, 1
      %s565 = scalar_select %p562, %s563, %s564
      %p568 = pneg %p562
      %p569 = scmp.eq.s32.totalorder %s32, 1
      %p570 = por %p568, %p569
      %p571 = scmp.ne.s32.totalorder %s563, %s566
      %p572 = scmp.eq.s32.totalorder %s32, 0
      %p573 = por %p571, %p572
      %p574 = scmp.ne.s32.totalorder %s563, %s566
      %p575 = scmp.eq.s32.totalorder %s37, 1
      %p576 = por %p574, %p575
      %p577 = scmp.ne.s32.totalorder %s566, %s567
      %p578 = scmp.eq.s32.totalorder %s37, 0
      %p579 = por %p577, %p578
      %p580 = scmp.ne.s32.totalorder %s566, %s567
      %p581 = scmp.eq.s32.totalorder %s38, 1
      %p582 = por %p580, %p581
      %p584 = scmp.ne.s32.totalorder %s567, %s583
      %p585 = scmp.eq.s32.totalorder %s38, 0
      %p586 = por %p584, %p585
      %p587 = scmp.le.s32.totalorder 1, %s32
      %p588 = scmp.lt.s32.totalorder %s32, 3
      %p589 = pnand %p587, %p588
      %p590 = pneg %p589
      // Predicated region
      $region9: #{tpu_custom_call.1} parent=5 // pred_check
        _
      $region10: #{tpu_custom_call.1} parent=5 // pred_check_branch
        %592 = sbr.rel (%p589) target = $region12
      $region11: #{tpu_custom_call.1} parent=5 // pred_region
        %s593 = ssub.s32 %s32, 1
        // Predicated region
        $region13: #{tpu_custom_call.1} parent=11 // pred_check
          %p594 = pneg %p53
        $region14: #{tpu_custom_call.1} parent=11 // pred_check_branch
          %596 = sbr.rel (%p594) target = $region16
        $region15: #{tpu_custom_call.1} parent=11 // pred_region
          %598 = vsyncadd [#allocation4], 0
          %s599 = sshll.u32 %s0, 4
          %s600 = int_to_ptr.hbm [resolvable:$true] %s599
          %s601 = sshll.u32 [#allocation3], 4
          %s602 = int_to_ptr.vmem [resolvable:$true] %s601
          %607 = dma.hbm_to_vmem [thread:$0]  %s600, 256, %s602, [#allocation4], 128, 128, 8
        $region16: #{tpu_custom_call.1} parent=11 // pred_fallthru
          _
        // Predicated region
        $region17: #{tpu_custom_call.1} parent=11 // pred_check
          %p608 = pneg %p74
        $region18: #{tpu_custom_call.1} parent=11 // pred_check_branch
          %610 = sbr.rel (%p608) target = $region20
        $region19: #{tpu_custom_call.1} parent=11 // pred_region
          %612 = vsyncadd [#allocation7], 0
          %s613 = sshll.u32 %s1, 4
          %s614 = int_to_ptr.hbm [resolvable:$true] %s613
          %s615 = sshll.u32 [#allocation6], 4
          %s616 = int_to_ptr.vmem [resolvable:$true] %s615
          %621 = dma.hbm_to_vmem [thread:$0]  %s614, 128, %s616, [#allocation7], 64, 64, 4
        $region20: #{tpu_custom_call.1} parent=11 // pred_fallthru
          _
        // Predicated region
        $region21: #{tpu_custom_call.1} parent=11 // pred_check
          %p622 = pneg %p95
        $region22: #{tpu_custom_call.1} parent=11 // pred_check_branch
          %624 = sbr.rel (%p622) target = $region24
        $region23: #{tpu_custom_call.1} parent=11 // pred_region
          %626 = vsyncadd [#allocation7], 0
          %s628 = sshll.u32 %s2, 4
          %s629 = int_to_ptr.hbm [resolvable:$true] %s628
          %s630 = sshll.u32 [#allocation8], 4
          %s631 = int_to_ptr.vmem [resolvable:$true] %s630
          %633 = dma.hbm_to_vmem [thread:$0]  %s629, 32, %s631, [#allocation7]
        $region24: #{tpu_custom_call.1} parent=11 // pred_fallthru
          _
        // Predicated region
        $region25: #{tpu_custom_call.1} parent=11 // pred_check
          %p634 = pneg %p116
        $region26: #{tpu_custom_call.1} parent=11 // pred_check_branch
          %636 = sbr.rel (%p634) target = $region28
        $region27: #{tpu_custom_call.1} parent=11 // pred_region
          %638 = vsyncadd [#allocation10], 0
          %s640 = sshll.u32 %s3, 4
          %s641 = int_to_ptr.hbm [resolvable:$true] %s640
          %s642 = sshll.u32 [#allocation9], 4
          %s643 = int_to_ptr.vmem [resolvable:$true] %s642
          %645 = dma.hbm_to_vmem [thread:$0]  %s641, 32, %s643, [#allocation10]
        $region28: #{tpu_custom_call.1} parent=11 // pred_fallthru
          _
      $region12: #{tpu_custom_call.1} parent=5 // pred_fallthru
        _
      %p646 = scmp.lt.s32.totalorder %s32, 2
      // Predicated region
      $region29: #{tpu_custom_call.1} parent=5 // pred_check
        %p647 = pneg %p646
      $region30: #{tpu_custom_call.1} parent=5 // pred_check_branch
        %649 = sbr.rel (%p647) target = $region32
      $region31: #{tpu_custom_call.1} parent=5 // pred_region
        // Predicated region
        $region33: #{tpu_custom_call.1} parent=31 // pred_check
          %p650 = pneg %p136
        $region34: #{tpu_custom_call.1} parent=31 // pred_check_branch
          %652 = sbr.rel (%p650) target = $region36
        $region35: #{tpu_custom_call.1} parent=31 // pred_region
          %p653 = scmp.lt.s32.totalorder %s32, 1
          %s654 = scalar_select %p653, %s32, 1
          %s655 = smul.addr %s654, 4
          %s656 = smul.addr %s655, 4
          %s657 = scalar_lea.vmem %s4, %s656
        $region36: #{tpu_custom_call.1} parent=31 // pred_fallthru
          _
        // Predicated region
        $region37: #{tpu_custom_call.1} parent=31 // pred_check
          %p658 = pneg %p162
        $region38: #{tpu_custom_call.1} parent=31 // pred_check_branch
          %660 = sbr.rel (%p658) target = $region40
        $region39: #{tpu_custom_call.1} parent=31 // pred_region
          %s661 = sand.u32 %s32, 1
          %s662 = scalar_lea.sflag [#allocation4], %s661
          %s663 = sand.u32 %s152, 1
          %s664 = scalar_lea.vmem [#allocation11], %s663
          %666 = vsyncadd %s662, 0
          %s667 = scalar_lea.hbm %s5, %s32
          %s669 = sshll.u32 %s667, 4
          %s670 = int_to_ptr.hbm [resolvable:$true] %s669
          %s671 = sshll.u32 %s664, 4
          %s672 = int_to_ptr.vmem [resolvable:$true] %s671
          %674 = dma.hbm_to_vmem [thread:$0]  %s670, 16, %s672, %s662
        $region40: #{tpu_custom_call.1} parent=31 // pred_fallthru
          _
        // Predicated region
        $region41: #{tpu_custom_call.1} parent=31 // pred_check
          %p675 = pneg %p188
        $region42: #{tpu_custom_call.1} parent=31 // pred_check_branch
          %677 = sbr.rel (%p675) target = $region44
        $region43: #{tpu_custom_call.1} parent=31 // pred_region
          %p678 = scmp.lt.s32.totalorder %s32, 1
          %s679 = scalar_select %p678, %s32, 1
          %s680 = smul.addr %s679, 4
          %s681 = smul.addr %s680, 4
          %s682 = scalar_lea.vmem %s6, %s681
        $region44: #{tpu_custom_call.1} parent=31 // pred_fallthru
          _
        // Predicated region
        $region45: #{tpu_custom_call.1} parent=31 // pred_check
          %p683 = pneg %p214
        $region46: #{tpu_custom_call.1} parent=31 // pred_check_branch
          %685 = sbr.rel (%p683) target = $region48
        $region47: #{tpu_custom_call.1} parent=31 // pred_region
          %s686 = sand.u32 %s32, 1
          %s687 = scalar_lea.sflag [#allocation4], %s686
          %s688 = sand.u32 %s204, 1
          %s689 = scalar_lea.vmem [#allocation12], %s688
          %691 = vsyncadd %s687, 0
          %s692 = scalar_lea.hbm %s7, %s32
          %s694 = sshll.u32 %s692, 4
          %s695 = int_to_ptr.hbm [resolvable:$true] %s694
          %s696 = sshll.u32 %s689, 4
          %s697 = int_to_ptr.vmem [resolvable:$true] %s696
          %699 = dma.hbm_to_vmem [thread:$0]  %s695, 16, %s697, %s687
        $region48: #{tpu_custom_call.1} parent=31 // pred_fallthru
          _
        // Predicated region
        $region49: #{tpu_custom_call.1} parent=31 // pred_check
          %p700 = pneg %p240
        $region50: #{tpu_custom_call.1} parent=31 // pred_check_branch
          %702 = sbr.rel (%p700) target = $region52
        $region51: #{tpu_custom_call.1} parent=31 // pred_region
          %p703 = scmp.lt.s32.totalorder %s32, 1
          %s704 = scalar_select %p703, %s32, 1
          %s705 = smul.addr %s704, 4
          %s706 = smul.addr %s705, 4
          %s707 = scalar_lea.vmem %s8, %s706
        $region52: #{tpu_custom_call.1} parent=31 // pred_fallthru
          _
        // Predicated region
        $region53: #{tpu_custom_call.1} parent=31 // pred_check
          %p708 = pneg %p266
        $region54: #{tpu_custom_call.1} parent=31 // pred_check_branch
          %710 = sbr.rel (%p708) target = $region56
        $region55: #{tpu_custom_call.1} parent=31 // pred_region
          %s711 = sand.u32 %s32, 1
          %s712 = scalar_lea.sflag [#allocation4], %s711
          %s713 = sand.u32 %s256, 1
          %s714 = scalar_lea.vmem [#allocation13], %s713
          %716 = vsyncadd %s712, 0
          %s717 = scalar_lea.hbm %s9, %s32
          %s719 = sshll.u32 %s717, 4
          %s720 = int_to_ptr.hbm [resolvable:$true] %s719
          %s721 = sshll.u32 %s714, 4
          %s722 = int_to_ptr.vmem [resolvable:$true] %s721
          %724 = dma.hbm_to_vmem [thread:$0]  %s720, 16, %s722, %s712
        $region56: #{tpu_custom_call.1} parent=31 // pred_fallthru
          _
        // Predicated region
        $region57: #{tpu_custom_call.1} parent=31 // pred_check
          %p725 = pneg %p292
        $region58: #{tpu_custom_call.1} parent=31 // pred_check_branch
          %727 = sbr.rel (%p725) target = $region60
        $region59: #{tpu_custom_call.1} parent=31 // pred_region
          %s728 = sand.u32 %s32, 1
          %s729 = scalar_lea.sflag [#allocation4], %s728
          %s730 = sand.u32 %s282, 1
          %s731 = smul.addr %s730, 16
          %s732 = scalar_lea.vmem [#allocation14], %s731
          %734 = vsyncadd %s729, 0
          %s735 = smul.addr %s32, 4
          %s736 = smul.addr %s735, 4
          %s737 = scalar_lea.hbm %s10, %s736
          %s738 = sshll.u32 %s737, 4
          %s739 = int_to_ptr.hbm [resolvable:$true] %s738
          %s740 = sshll.u32 %s732, 4
          %s741 = int_to_ptr.vmem [resolvable:$true] %s740
          %746 = dma.hbm_to_vmem [thread:$0]  %s739, 256, %s741, %s729, 64, 64, 4
        $region60: #{tpu_custom_call.1} parent=31 // pred_fallthru
          _
        // Predicated region
        $region61: #{tpu_custom_call.1} parent=31 // pred_check
          %p747 = pneg %p318
        $region62: #{tpu_custom_call.1} parent=31 // pred_check_branch
          %749 = sbr.rel (%p747) target = $region64
        $region63: #{tpu_custom_call.1} parent=31 // pred_region
          %s750 = sand.u32 %s32, 1
          %s751 = scalar_lea.sflag [#allocation4], %s750
          %s752 = sand.u32 %s308, 1
          %s753 = scalar_lea.vmem [#allocation15], %s752
          %755 = vsyncadd %s751, 0
          %s756 = scalar_lea.hbm %s11, %s32
          %s758 = sshll.u32 %s756, 4
          %s759 = int_to_ptr.hbm [resolvable:$true] %s758
          %s760 = sshll.u32 %s753, 4
          %s761 = int_to_ptr.vmem [resolvable:$true] %s760
          %763 = dma.hbm_to_vmem [thread:$0]  %s759, 16, %s761, %s751
        $region64: #{tpu_custom_call.1} parent=31 // pred_fallthru
          _
        // Predicated region
        $region65: #{tpu_custom_call.1} parent=31 // pred_check
          %p764 = pneg %p344
        $region66: #{tpu_custom_call.1} parent=31 // pred_check_branch
          %766 = sbr.rel (%p764) target = $region68
        $region67: #{tpu_custom_call.1} parent=31 // pred_region
          %s767 = sand.u32 %s32, 1
          %s768 = scalar_lea.sflag [#allocation4], %s767
          %s769 = sand.u32 %s334, 1
          %s770 = smul.addr %s769, 16
          %s771 = scalar_lea.vmem [#allocation16], %s770
          %773 = vsyncadd %s768, 0
          %s774 = smul.addr %s32, 4
          %s775 = smul.addr %s774, 4
          %s776 = scalar_lea.hbm %s12, %s775
          %s777 = sshll.u32 %s776, 4
          %s778 = int_to_ptr.hbm [resolvable:$true] %s777
          %s779 = sshll.u32 %s771, 4
          %s780 = int_to_ptr.vmem [resolvable:$true] %s779
          %785 = dma.hbm_to_vmem [thread:$0]  %s778, 256, %s780, %s768, 64, 64, 4
        $region68: #{tpu_custom_call.1} parent=31 // pred_fallthru
          _
        // Predicated region
        $region69: #{tpu_custom_call.1} parent=31 // pred_check
          %p786 = pneg %p370
        $region70: #{tpu_custom_call.1} parent=31 // pred_check_branch
          %788 = sbr.rel (%p786) target = $region72
        $region71: #{tpu_custom_call.1} parent=31 // pred_region
          %s789 = sand.u32 %s32, 1
          %s790 = scalar_lea.sflag [#allocation4], %s789
          %s791 = sand.u32 %s360, 1
          %s792 = scalar_lea.vmem [#allocation17], %s791
          %794 = vsyncadd %s790, 0
          %s795 = scalar_lea.hbm %s13, %s32
          %s797 = sshll.u32 %s795, 4
          %s798 = int_to_ptr.hbm [resolvable:$true] %s797
          %s799 = sshll.u32 %s792, 4
          %s800 = int_to_ptr.vmem [resolvable:$true] %s799
          %802 = dma.hbm_to_vmem [thread:$0]  %s798, 16, %s800, %s790
        $region72: #{tpu_custom_call.1} parent=31 // pred_fallthru
          _
        // Predicated region
        $region73: #{tpu_custom_call.1} parent=31 // pred_check
          %p803 = pneg %p396
        $region74: #{tpu_custom_call.1} parent=31 // pred_check_branch
          %805 = sbr.rel (%p803) target = $region76
        $region75: #{tpu_custom_call.1} parent=31 // pred_region
          %s806 = sand.u32 %s32, 1
          %s807 = scalar_lea.sflag [#allocation4], %s806
          %s808 = sand.u32 %s386, 1
          %s809 = smul.addr %s808, 16
          %s810 = scalar_lea.vmem [#allocation18], %s809
          %812 = vsyncadd %s807, 0
          %s813 = smul.addr %s32, 4
          %s814 = smul.addr %s813, 4
          %s815 = scalar_lea.hbm %s14, %s814
          %s816 = sshll.u32 %s815, 4
          %s817 = int_to_ptr.hbm [resolvable:$true] %s816
          %s818 = sshll.u32 %s810, 4
          %s819 = int_to_ptr.vmem [resolvable:$true] %s818
          %824 = dma.hbm_to_vmem [thread:$0]  %s817, 256, %s819, %s807, 64, 64, 4
        $region76: #{tpu_custom_call.1} parent=31 // pred_fallthru
          _
        // Predicated region
        $region77: #{tpu_custom_call.1} parent=31 // pred_check
          %p825 = pneg %p422
        $region78: #{tpu_custom_call.1} parent=31 // pred_check_branch
          %827 = sbr.rel (%p825) target = $region80
        $region79: #{tpu_custom_call.1} parent=31 // pred_region
          %s828 = sand.u32 %s32, 1
          %s829 = scalar_lea.sflag [#allocation4], %s828
          %s830 = sand.u32 %s412, 1
          %s831 = scalar_lea.vmem [#allocation19], %s830
          %833 = vsyncadd %s829, 0
          %s834 = scalar_lea.hbm %s15, %s32
          %s836 = sshll.u32 %s834, 4
          %s837 = int_to_ptr.hbm [resolvable:$true] %s836
          %s838 = sshll.u32 %s831, 4
          %s839 = int_to_ptr.vmem [resolvable:$true] %s838
          %841 = dma.hbm_to_vmem [thread:$0]  %s837, 16, %s839, %s829
        $region80: #{tpu_custom_call.1} parent=31 // pred_fallthru
          _
        // Predicated region
        $region81: #{tpu_custom_call.1} parent=31 // pred_check
          %p842 = pneg %p448
        $region82: #{tpu_custom_call.1} parent=31 // pred_check_branch
          %844 = sbr.rel (%p842) target = $region84
        $region83: #{tpu_custom_call.1} parent=31 // pred_region
          %p845 = scmp.lt.s32.totalorder %s32, 1
          %s846 = scalar_select %p845, %s32, 1
          %s847 = smul.addr %s846, 8
          %s848 = smul.addr %s847, 4
          %s849 = scalar_lea.vmem %s16, %s848
        $region84: #{tpu_custom_call.1} parent=31 // pred_fallthru
          _
        // Predicated region
        $region85: #{tpu_custom_call.1} parent=31 // pred_check
          %p850 = pneg %p474
        $region86: #{tpu_custom_call.1} parent=31 // pred_check_branch
          %852 = sbr.rel (%p850) target = $region88
        $region87: #{tpu_custom_call.1} parent=31 // pred_region
          %s853 = sand.u32 %s32, 1
          %s854 = scalar_lea.sflag [#allocation4], %s853
          %s855 = sand.u32 %s464, 1
          %s856 = scalar_lea.vmem [#allocation20], %s855
          %858 = vsyncadd %s854, 0
          %s859 = scalar_lea.hbm %s17, %s32
          %s861 = sshll.u32 %s859, 4
          %s862 = int_to_ptr.hbm [resolvable:$true] %s861
          %s863 = sshll.u32 %s856, 4
          %s864 = int_to_ptr.vmem [resolvable:$true] %s863
          %866 = dma.hbm_to_vmem [thread:$0]  %s862, 16, %s864, %s854
        $region88: #{tpu_custom_call.1} parent=31 // pred_fallthru
          _
        // Predicated region
        $region89: #{tpu_custom_call.1} parent=31 // pred_check
          %p867 = pneg %p500
        $region90: #{tpu_custom_call.1} parent=31 // pred_check_branch
          %869 = sbr.rel (%p867) target = $region92
        $region91: #{tpu_custom_call.1} parent=31 // pred_region
          %p870 = scmp.lt.s32.totalorder %s32, 1
          %s871 = scalar_select %p870, %s32, 1
          %s872 = smul.addr %s871, 8
          %s873 = scalar_lea.vmem %s18, %s872
        $region92: #{tpu_custom_call.1} parent=31 // pred_fallthru
          _
      $region32: #{tpu_custom_call.1} parent=5 // pred_fallthru
        _
      %p874 = scmp.le.s32.totalorder 1, %s32
      %p875 = scmp.lt.s32.totalorder %s32, 3
      %p876 = pnand %p874, %p875
      %p877 = pneg %p876
      // Predicated region
      $region93: #{tpu_custom_call.1} parent=5 // pred_check
        _
      $region94: #{tpu_custom_call.1} parent=5 // pred_check_branch
        %879 = sbr.rel (%p876) target = $region96
      $region95: #{tpu_custom_call.1} parent=5 // pred_region
        %s880 = ssub.s32 %s32, 1
        // Predicated region
        $region97: #{tpu_custom_call.1} parent=95 // pred_check
          %p881 = pneg %p53
        $region98: #{tpu_custom_call.1} parent=95 // pred_check_branch
          %883 = sbr.rel (%p881) target = $region100
        $region99: #{tpu_custom_call.1} parent=95 // pred_region
          %885 = dma.done [#allocation4], 256
        $region100: #{tpu_custom_call.1} parent=95 // pred_fallthru
          _
        // Predicated region
        $region101: #{tpu_custom_call.1} parent=95 // pred_check
          %p886 = pneg %p74
        $region102: #{tpu_custom_call.1} parent=95 // pred_check_branch
          %888 = sbr.rel (%p886) target = $region104
        $region103: #{tpu_custom_call.1} parent=95 // pred_region
          %890 = dma.done [#allocation7], 128
        $region104: #{tpu_custom_call.1} parent=95 // pred_fallthru
          _
        // Predicated region
        $region105: #{tpu_custom_call.1} parent=95 // pred_check
          %p891 = pneg %p95
        $region106: #{tpu_custom_call.1} parent=95 // pred_check_branch
          %893 = sbr.rel (%p891) target = $region108
        $region107: #{tpu_custom_call.1} parent=95 // pred_region
          %895 = dma.done [#allocation7], 32
        $region108: #{tpu_custom_call.1} parent=95 // pred_fallthru
          _
        // Predicated region
        $region109: #{tpu_custom_call.1} parent=95 // pred_check
          %p896 = pneg %p116
        $region110: #{tpu_custom_call.1} parent=95 // pred_check_branch
          %898 = sbr.rel (%p896) target = $region112
        $region111: #{tpu_custom_call.1} parent=95 // pred_region
          %900 = dma.done [#allocation10], 32
        $region112: #{tpu_custom_call.1} parent=95 // pred_fallthru
          _
        %s901 = sand.u32 %s37, 1
        %s902 = scalar_lea.sflag [#allocation4], %s901
        %s903 = sand.u32 %s155, 1
        %s904 = scalar_lea.vmem [#allocation11], %s903
        // Predicated region
        $region113: #{tpu_custom_call.1} parent=95 // pred_check
          %p905 = pneg %p168
        $region114: #{tpu_custom_call.1} parent=95 // pred_check_branch
          %907 = sbr.rel (%p905) target = $region116
        $region115: #{tpu_custom_call.1} parent=95 // pred_region
          %909 = dma.done %s902, 16
        $region116: #{tpu_custom_call.1} parent=95 // pred_fallthru
          _
        %s910 = sand.u32 %s37, 1
        %s911 = scalar_lea.sflag [#allocation4], %s910
        %s912 = sand.u32 %s207, 1
        %s913 = scalar_lea.vmem [#allocation12], %s912
        // Predicated region
        $region117: #{tpu_custom_call.1} parent=95 // pred_check
          %p914 = pneg %p220
        $region118: #{tpu_custom_call.1} parent=95 // pred_check_branch
          %916 = sbr.rel (%p914) target = $region120
        $region119: #{tpu_custom_call.1} parent=95 // pred_region
          %918 = dma.done %s911, 16
        $region120: #{tpu_custom_call.1} parent=95 // pred_fallthru
          _
        %s919 = sand.u32 %s37, 1
        %s920 = scalar_lea.sflag [#allocation4], %s919
        %s921 = sand.u32 %s259, 1
        %s922 = scalar_lea.vmem [#allocation13], %s921
        // Predicated region
        $region121: #{tpu_custom_call.1} parent=95 // pred_check
          %p923 = pneg %p272
        $region122: #{tpu_custom_call.1} parent=95 // pred_check_branch
          %925 = sbr.rel (%p923) target = $region124
        $region123: #{tpu_custom_call.1} parent=95 // pred_region
          %927 = dma.done %s920, 16
        $region124: #{tpu_custom_call.1} parent=95 // pred_fallthru
          _
        %s928 = sand.u32 %s37, 1
        %s929 = scalar_lea.sflag [#allocation4], %s928
        %s930 = sand.u32 %s285, 1
        %s931 = smul.addr %s930, 16
        %s932 = scalar_lea.vmem [#allocation14], %s931
        // Predicated region
        $region125: #{tpu_custom_call.1} parent=95 // pred_check
          %p933 = pneg %p298
        $region126: #{tpu_custom_call.1} parent=95 // pred_check_branch
          %935 = sbr.rel (%p933) target = $region128
        $region127: #{tpu_custom_call.1} parent=95 // pred_region
          %937 = dma.done %s929, 256
        $region128: #{tpu_custom_call.1} parent=95 // pred_fallthru
          _
        %s938 = sand.u32 %s37, 1
        %s939 = scalar_lea.sflag [#allocation4], %s938
        %s940 = sand.u32 %s311, 1
        %s941 = scalar_lea.vmem [#allocation15], %s940
        // Predicated region
        $region129: #{tpu_custom_call.1} parent=95 // pred_check
          %p942 = pneg %p324
        $region130: #{tpu_custom_call.1} parent=95 // pred_check_branch
          %944 = sbr.rel (%p942) target = $region132
        $region131: #{tpu_custom_call.1} parent=95 // pred_region
          %946 = dma.done %s939, 16
        $region132: #{tpu_custom_call.1} parent=95 // pred_fallthru
          _
        %s947 = sand.u32 %s37, 1
        %s948 = scalar_lea.sflag [#allocation4], %s947
        %s949 = sand.u32 %s337, 1
        %s950 = smul.addr %s949, 16
        %s951 = scalar_lea.vmem [#allocation16], %s950
        // Predicated region
        $region133: #{tpu_custom_call.1} parent=95 // pred_check
          %p952 = pneg %p350
        $region134: #{tpu_custom_call.1} parent=95 // pred_check_branch
          %954 = sbr.rel (%p952) target = $region136
        $region135: #{tpu_custom_call.1} parent=95 // pred_region
          %956 = dma.done %s948, 256
        $region136: #{tpu_custom_call.1} parent=95 // pred_fallthru
          _
        %s957 = sand.u32 %s37, 1
        %s958 = scalar_lea.sflag [#allocation4], %s957
        %s959 = sand.u32 %s363, 1
        %s960 = scalar_lea.vmem [#allocation17], %s959
        // Predicated region
        $region137: #{tpu_custom_call.1} parent=95 // pred_check
          %p961 = pneg %p376
        $region138: #{tpu_custom_call.1} parent=95 // pred_check_branch
          %963 = sbr.rel (%p961) target = $region140
        $region139: #{tpu_custom_call.1} parent=95 // pred_region
          %965 = dma.done %s958, 16
        $region140: #{tpu_custom_call.1} parent=95 // pred_fallthru
          _
        %s966 = sand.u32 %s37, 1
        %s967 = scalar_lea.sflag [#allocation4], %s966
        %s968 = sand.u32 %s389, 1
        %s969 = smul.addr %s968, 16
        %s970 = scalar_lea.vmem [#allocation18], %s969
        // Predicated region
        $region141: #{tpu_custom_call.1} parent=95 // pred_check
          %p971 = pneg %p402
        $region142: #{tpu_custom_call.1} parent=95 // pred_check_branch
          %973 = sbr.rel (%p971) target = $region144
        $region143: #{tpu_custom_call.1} parent=95 // pred_region
          %975 = dma.done %s967, 256
        $region144: #{tpu_custom_call.1} parent=95 // pred_fallthru
          _
        %s976 = sand.u32 %s37, 1
        %s977 = scalar_lea.sflag [#allocation4], %s976
        %s978 = sand.u32 %s415, 1
        %s979 = scalar_lea.vmem [#allocation19], %s978
        // Predicated region
        $region145: #{tpu_custom_call.1} parent=95 // pred_check
          %p980 = pneg %p428
        $region146: #{tpu_custom_call.1} parent=95 // pred_check_branch
          %982 = sbr.rel (%p980) target = $region148
        $region147: #{tpu_custom_call.1} parent=95 // pred_region
          %984 = dma.done %s977, 16
        $region148: #{tpu_custom_call.1} parent=95 // pred_fallthru
          _
        %s985 = sand.u32 %s37, 1
        %s986 = scalar_lea.sflag [#allocation4], %s985
        %s987 = sand.u32 %s467, 1
        %s988 = scalar_lea.vmem [#allocation20], %s987
        // Predicated region
        $region149: #{tpu_custom_call.1} parent=95 // pred_check
          %p989 = pneg %p480
        $region150: #{tpu_custom_call.1} parent=95 // pred_check_branch
          %991 = sbr.rel (%p989) target = $region152
        $region151: #{tpu_custom_call.1} parent=95 // pred_region
          %993 = dma.done %s986, 16
        $region152: #{tpu_custom_call.1} parent=95 // pred_fallthru
          _
        %p994 = pneg %p53
        %p995 = pneg %p50
        %p996 = pneg %p74
        %p997 = pneg %p71
        %p998 = pneg %p95
        %p999 = pneg %p92
        %p1000 = pneg %p116
        %p1001 = pneg %p113
        %p1002 = scmp.lt.s32.totalorder %s37, 1
        %s1003 = scalar_select %p1002, %s37, 1
        %s1004 = smul.addr %s1003, 4
        %s1005 = smul.addr %s1004, 4
        %s1006 = scalar_lea.vmem %s4, %s1005
        %p1007 = pneg %p142
        %p1008 = pneg %p139
        %s1009 = sand.u32 %s37, 1
        %s1010 = scalar_lea.sflag [#allocation4], %s1009
        %s1011 = sand.u32 %s155, 1
        %s1012 = scalar_lea.vmem [#allocation11], %s1011
        %p1013 = pneg %p168
        %p1014 = pneg %p165
        %p1015 = scmp.lt.s32.totalorder %s37, 1
        %s1016 = scalar_select %p1015, %s37, 1
        %s1017 = smul.addr %s1016, 4
        %s1018 = smul.addr %s1017, 4
        %s1019 = scalar_lea.vmem %s6, %s1018
        %p1020 = pneg %p194
        %p1021 = pneg %p191
        %s1022 = sand.u32 %s37, 1
        %s1023 = scalar_lea.sflag [#allocation4], %s1022
        %s1024 = sand.u32 %s207, 1
        %s1025 = scalar_lea.vmem [#allocation12], %s1024
        %p1026 = pneg %p220
        %p1027 = pneg %p217
        %p1028 = scmp.lt.s32.totalorder %s37, 1
        %s1029 = scalar_select %p1028, %s37, 1
        %s1030 = smul.addr %s1029, 4
        %s1031 = smul.addr %s1030, 4
        %s1032 = scalar_lea.vmem %s8, %s1031
        %p1033 = pneg %p246
        %p1034 = pneg %p243
        %s1035 = sand.u32 %s37, 1
        %s1036 = scalar_lea.sflag [#allocation4], %s1035
        %s1037 = sand.u32 %s259, 1
        %s1038 = scalar_lea.vmem [#allocation13], %s1037
        %p1039 = pneg %p272
        %p1040 = pneg %p269
        %s1041 = sand.u32 %s37, 1
        %s1042 = scalar_lea.sflag [#allocation4], %s1041
        %s1043 = sand.u32 %s285, 1
        %s1044 = smul.addr %s1043, 16
        %s1045 = scalar_lea.vmem [#allocation14], %s1044
        %p1046 = pneg %p298
        %p1047 = pneg %p295
        %s1048 = sand.u32 %s37, 1
        %s1049 = scalar_lea.sflag [#allocation4], %s1048
        %s1050 = sand.u32 %s311, 1
        %s1051 = scalar_lea.vmem [#allocation15], %s1050
        %p1052 = pneg %p324
        %p1053 = pneg %p321
        %s1054 = sand.u32 %s37, 1
        %s1055 = scalar_lea.sflag [#allocation4], %s1054
        %s1056 = sand.u32 %s337, 1
        %s1057 = smul.addr %s1056, 16
        %s1058 = scalar_lea.vmem [#allocation16], %s1057
        %p1059 = pneg %p350
        %p1060 = pneg %p347
        %s1061 = sand.u32 %s37, 1
        %s1062 = scalar_lea.sflag [#allocation4], %s1061
        %s1063 = sand.u32 %s363, 1
        %s1064 = scalar_lea.vmem [#allocation17], %s1063
        %p1065 = pneg %p376
        %p1066 = pneg %p373
        %s1067 = sand.u32 %s37, 1
        %s1068 = scalar_lea.sflag [#allocation4], %s1067
        %s1069 = sand.u32 %s389, 1
        %s1070 = smul.addr %s1069, 16
        %s1071 = scalar_lea.vmem [#allocation18], %s1070
        %p1072 = pneg %p402
        %p1073 = pneg %p399
        %s1074 = sand.u32 %s37, 1
        %s1075 = scalar_lea.sflag [#allocation4], %s1074
        %s1076 = sand.u32 %s415, 1
        %s1077 = scalar_lea.vmem [#allocation19], %s1076
        %p1078 = pneg %p428
        %p1079 = pneg %p425
        %p1080 = scmp.lt.s32.totalorder %s37, 1
        %s1081 = scalar_select %p1080, %s37, 1
        %s1082 = smul.addr %s1081, 8
        %s1083 = smul.addr %s1082, 4
        %s1084 = scalar_lea.vmem %s16, %s1083
        %p1085 = pneg %p454
        %p1086 = pneg %p451
        %s1087 = sand.u32 %s37, 1
        %s1088 = scalar_lea.sflag [#allocation4], %s1087
        %s1089 = sand.u32 %s467, 1
        %s1090 = scalar_lea.vmem [#allocation20], %s1089
        %p1091 = pneg %p480
        %p1092 = pneg %p477
        %p1093 = scmp.lt.s32.totalorder %s37, 1
        %s1094 = scalar_select %p1093, %s37, 1
        %s1095 = smul.addr %s1094, 8
        %s1096 = scalar_lea.vmem %s18, %s1095
        %p1097 = pneg %p506
        %p1098 = pneg %p503
        %p1099 = pneg %p527
        %p1100 = pneg %p524
        %p1101 = pneg %p553
        %p1102 = pneg %p550
        %s1103 = smul.u32 8, %s37
        %p1104 = scmp.lt.s32.totalorder %s1103, 15
        %s1105 = scalar_select %p1104, %s1103, 15
        %s1106 = smul.addr %s1105, 8
        %s1107 = scalar_lea.vmem %s20, %s1106
        %p1108 = pneg %p579
        %p1109 = pneg %p576
        %s1110 = smul.u32 8, %s37
        %p1111 = scmp.lt.s32.totalorder %s1110, 15
        %s1112 = scalar_select %p1111, %s1110, 15
        %s1113 = smul.addr %s1112, 8
        %s1114 = scalar_lea.vmem %s21, %s1113
        %p1115 = scmp.lt.s32.totalorder %s37, 1
        %s1116 = scalar_select %p1115, %s37, 1
        %s1117 = smul.addr %s1116, 4
        %s1118 = smul.addr %s1117, 4
        %s1119 = scalar_lea.vmem %s4, %s1118
        %p1120 = scmp.lt.s32.totalorder %s37, 1
        %s1121 = scalar_select %p1120, %s37, 1
        %s1122 = smul.addr %s1121, 4
        %s1123 = smul.addr %s1122, 4
        %s1124 = scalar_lea.vmem %s6, %s1123
        %p1125 = scmp.lt.s32.totalorder %s37, 1
        %s1126 = scalar_select %p1125, %s37, 1
        %s1127 = smul.addr %s1126, 4
        %s1128 = smul.addr %s1127, 4
        %s1129 = scalar_lea.vmem %s8, %s1128
        %p1130 = scmp.lt.s32.totalorder %s37, 1
        %s1131 = scalar_select %p1130, %s37, 1
        %s1132 = smul.addr %s1131, 8
        %s1133 = smul.addr %s1132, 4
        %s1134 = scalar_lea.vmem %s16, %s1133
        %p1135 = scmp.lt.s32.totalorder %s37, 1
        %s1136 = scalar_select %p1135, %s37, 1
        %s1137 = smul.addr %s1136, 8
        %s1138 = scalar_lea.vmem %s18, %s1137
        %s1139 = smul.u32 8, %s37
        %p1140 = scmp.lt.s32.totalorder %s1139, 15
        %s1141 = scalar_select %p1140, %s1139, 15
        %s1142 = smul.addr %s1141, 8
        %s1143 = scalar_lea.vmem %s20, %s1142
        %s1144 = smul.u32 8, %s37
        %s1145 = smul.u32 8, %s37
        %p1146 = scmp.lt.s32.totalorder %s1145, 15
        %s1147 = scalar_select %p1146, %s1145, 15
        %s1148 = smul.addr %s1147, 8
        %s1149 = scalar_lea.vmem %s21, %s1148
        %s1150 = smul.u32 8, %s37
        %p1152 = scmp.eq.s32.totalorder %s37, 0
        // Predicated region
        $region153: #{tpu_custom_call.1} parent=95 // pred_check
          %p1153 = pneg %p1152
        $region154: #{tpu_custom_call.1} parent=95 // pred_check_branch
          %1155 = sbr.rel (%p1153) target = $region156
        $region155: #{tpu_custom_call.1} parent=95 // pred_region
          %v1156 = vld [vmem:[#allocation3] sm:$0xff]
          %v1157 = vld [vmem:[#allocation3 + $0x8] sm:$0xff]
          %vm1158 = vcmask 261120
          %1159 = vst.msk [vmem:[#allocation2] sm:$0xff] %vm1158, %v1156
          %1160 = vst.msk [vmem:[#allocation2 + $0x8] sm:$0xff] %vm1158, %v1157
        $region156: #{tpu_custom_call.1} parent=95 // pred_fallthru
          _
        %v1161 = vlaneseq
        %v1162 = vshrl.u32 %v1161, 7
        %v1163 = vlaneseq
        %v1164 = vand.u32 %v1163, 127
        %vm1165 = vcmp.gt.s32.totalorder %v1164, %v1162
        %v1166 = vld [vmem:[#allocation8] sm:$0x3]
        %vm1167 = vcmp.gt.f32.partialorder %v1166, 0.5
        %v1168 = vld [vmem:[#allocation9] sm:$0x3]
        %vm1169 = vcmp.gt.f32.partialorder %v1168, 0.5
        %v1170 = vsel %vm1167, 1, 0
        %v1171 = vrot.slane %v1170, 1
        %vm1172 = vcmp.ne.s32.totalorder %v1171, 0
        %v1173 = vsel %vm1165, 1, 0
        %vm1174 = vcmp.eq.s32.totalorder %v1173, 1
        %v1175 = vsel %vm1172, 1, 0
        %v1176 = vperm.slane %v1170, 0
        %v1177 = vperm.slane %v1175, 0
        %vm1178 = vcmp.eq.s32.totalorder %v1176, 1
        %vm1179 = vcmp.eq.s32.totalorder %v1177, 1
        %vm1180 = vmor %vm1174, %vm1178
        %vm1181 = vmor %vm1174, %vm1179
        %v1182 = vsel %vm1180, -1e+09, 0.0
        %v1183 = vsel %vm1181, -1e+09, 0.0
        %v1184 = vsel %vm1169, 1, 0
        %v1185 = vrot.slane %v1184, 1
        %vm1186 = vcmp.ne.s32.totalorder %v1185, 0
        %v1187 = vsel %vm1169, -1e+09, 0.0
        %v1188 = vsel %vm1186, -1e+09, 0.0
        %v1189 = vld [vmem:[%s1138] sm:$0x3f]
        %v1190 = vld [vmem:[#allocation2] sm:$0xff]
        %v1191 = vld [vmem:[#allocation2 + $0x8] sm:$0xff]
        %v1192 = vpack.c.bf16 %v1191, %v1190
        %v1193 = vld [vmem:[%s1119] sm:$0xf]
        %v1194 = vld [vmem:[%s1119 + $0x4] sm:$0xf]
        %v1195 = vld [vmem:[%s1119 + $0x8] sm:$0xf]
        %v1196 = vld [vmem:[%s1119 + $0xc] sm:$0xf]
        %v1197 = vld [vmem:[%s904] sm:$0x1]
        %v1199 = vperm.slane %v1197, 0
        %v1205 = vunpack.c.l.b16 %v1193
        %v1206 = vunpack.c.l.b16 %v1194
        %v1207 = vunpack.c.l.b16 %v1195
        %v1208 = vunpack.c.l.b16 %v1196
        %v1209 = vpack.c.b16 %v1206, %v1205
        %v1210 = vpack.c.b16 %v1208, %v1207
        %vm1213 = vcmask 261120
        %v1215 = vsel %vm1213, %v1192, 0
        %1217 = vmatpush.bf16.msra.mxu0 0
        %1218 = vmatpush.bf16.msra.mxu0 0
        %1219 = vmatpush.bf16.msra.mxu0 0
        %1220 = vmatpush.bf16.msra.mxu0 0
        %1221 = vmatpush.bf16.msra.mxu0 0
        %1222 = vmatpush.bf16.msra.mxu0 0
        %1223 = vmatpush.bf16.msra.mxu0 %v1210
        %1224 = vmatpush.bf16.msra.mxu0 %v1209
        %1225 = vmatmul.bf16.gmra.mxu0 %v1215
        %v1226 = vpop.f32.mrf.mxu0
        %v1227 = vadd.f32 %v1199, %v1226
        %v1228 = vpop.f32.mrf.mxu0
        %v1229 = vadd.f32 %v1199, %v1228
        %1230 = vdwg.mxu0
        %1233 = vrot.lane.b32.xlu0 %v1227, 120
        %v1234 = vpop.permute.xlu0 %1233
        %1235 = vrot.lane.b32.xlu0 %v1229, 120
        %v1236 = vpop.permute.xlu0 %1235
        %1239 = vrot.lane.b32.xlu0 %v1227, 112
        %v1240 = vpop.permute.xlu0 %1239
        %1241 = vrot.lane.b32.xlu0 %v1229, 112
        %v1242 = vpop.permute.xlu0 %1241
        %1245 = vrot.lane.b32.xlu0 %v1227, 104
        %v1246 = vpop.permute.xlu0 %1245
        %1247 = vrot.lane.b32.xlu0 %v1229, 104
        %v1248 = vpop.permute.xlu0 %1247
        %v1251 = vpack.c.bf16 %v1227, %v1227
        %v1252 = vpack.c.bf16 %v1229, %v1229
        %v1253 = vpack.c.bf16 %v1234, %v1234
        %v1254 = vpack.c.bf16 %v1236, %v1236
        %v1255 = vpack.c.bf16 %v1240, %v1240
        %v1256 = vpack.c.bf16 %v1242, %v1242
        %v1257 = vpack.c.bf16 %v1246, %v1246
        %v1258 = vpack.c.bf16 %v1248, %v1248
        %v1260 = vunpack.c.l.b16 %v1251
        %v1261 = vpack.c.b16 %v1260, %v1260
        %1262 = vrot.lane.b32.xlu0 %v1261, 96
        %v1263 = vpop.permute.xlu0 %1262
        %vm1264 = vcmask 64512
        %v1266 = vsel %vm1264, %v1251, 0
        %v1269 = vsel %vm1264, %v1263, 0
        %1271 = vmatpush.bf16.xpose.msra.mxu0 0
        %1272 = vmatpush.bf16.xpose.msra.mxu0 0
        %1273 = vmatpush.bf16.xpose.msra.mxu0 0
        %1274 = vmatpush.bf16.xpose.msra.mxu0 0
        %1275 = vmatpush.bf16.xpose.msra.mxu0 0
        %1276 = vmatpush.bf16.xpose.msra.mxu0 0
        %1277 = vmatpush.bf16.xpose.msra.mxu0 0
        %1278 = vmatpush.bf16.xpose.msra.mxu0 %v1269
        %1279 = vmatmul.bf16.gmra.mxu0 %v1266
        %v1280 = vpop.f32.mrf.mxu0
        %v1281 = vadd.f32 0.0, %v1280
        %v1282 = vpop.f32.mrf.mxu0
        %1283 = vdwg.mxu0
        %v1285 = vunpack.c.l.b16 %v1252
        %v1286 = vpack.c.b16 %v1285, %v1285
        %1287 = vrot.lane.b32.xlu0 %v1286, 96
        %v1288 = vpop.permute.xlu0 %1287
        %v1290 = vsel %vm1264, %v1252, 0
        %v1293 = vsel %vm1264, %v1288, 0
        %1295 = vmatpush.bf16.xpose.msra.mxu0 0
        %1296 = vmatpush.bf16.xpose.msra.mxu0 0
        %1297 = vmatpush.bf16.xpose.msra.mxu0 0
        %1298 = vmatpush.bf16.xpose.msra.mxu0 0
        %1299 = vmatpush.bf16.xpose.msra.mxu0 0
        %1300 = vmatpush.bf16.xpose.msra.mxu0 0
        %1301 = vmatpush.bf16.xpose.msra.mxu0 0
        %1302 = vmatpush.bf16.xpose.msra.mxu0 %v1293
        %1303 = vmatmul.bf16.gmra.mxu0 %v1290
        %v1304 = vpop.f32.mrf.mxu0
        %v1305 = vadd.f32 0.0, %v1304
        %v1306 = vpop.f32.mrf.mxu0
        %1307 = vdwg.mxu0
        %v1309 = vunpack.c.l.b16 %v1253
        %v1310 = vpack.c.b16 %v1309, %v1309
        %1311 = vrot.lane.b32.xlu0 %v1310, 96
        %v1312 = vpop.permute.xlu0 %1311
        %v1314 = vsel %vm1264, %v1253, 0
        %v1317 = vsel %vm1264, %v1312, 0
        %1319 = vmatpush.bf16.xpose.msra.mxu0 0
        %1320 = vmatpush.bf16.xpose.msra.mxu0 0
        %1321 = vmatpush.bf16.xpose.msra.mxu0 0
        %1322 = vmatpush.bf16.xpose.msra.mxu0 0
        %1323 = vmatpush.bf16.xpose.msra.mxu0 0
        %1324 = vmatpush.bf16.xpose.msra.mxu0 0
        %1325 = vmatpush.bf16.xpose.msra.mxu0 0
        %1326 = vmatpush.bf16.xpose.msra.mxu0 %v1317
        %1327 = vmatmul.bf16.gmra.mxu0 %v1314
        %v1328 = vpop.f32.mrf.mxu0
        %v1329 = vadd.f32 0.0, %v1328
        %v1330 = vpop.f32.mrf.mxu0
        %1331 = vdwg.mxu0
        %v1333 = vunpack.c.l.b16 %v1254
        %v1334 = vpack.c.b16 %v1333, %v1333
        %1335 = vrot.lane.b32.xlu0 %v1334, 96
        %v1336 = vpop.permute.xlu0 %1335
        %v1338 = vsel %vm1264, %v1254, 0
        %v1341 = vsel %vm1264, %v1336, 0
        %1343 = vmatpush.bf16.xpose.msra.mxu0 0
        %1344 = vmatpush.bf16.xpose.msra.mxu0 0
        %1345 = vmatpush.bf16.xpose.msra.mxu0 0
        %1346 = vmatpush.bf16.xpose.msra.mxu0 0
        %1347 = vmatpush.bf16.xpose.msra.mxu0 0
        %1348 = vmatpush.bf16.xpose.msra.mxu0 0
        %1349 = vmatpush.bf16.xpose.msra.mxu0 0
        %1350 = vmatpush.bf16.xpose.msra.mxu0 %v1341
        %1351 = vmatmul.bf16.gmra.mxu0 %v1338
        %v1352 = vpop.f32.mrf.mxu0
        %v1353 = vadd.f32 0.0, %v1352
        %v1354 = vpop.f32.mrf.mxu0
        %1355 = vdwg.mxu0
        %v1357 = vunpack.c.l.b16 %v1255
        %v1358 = vpack.c.b16 %v1357, %v1357
        %1359 = vrot.lane.b32.xlu0 %v1358, 96
        %v1360 = vpop.permute.xlu0 %1359
        %v1362 = vsel %vm1264, %v1255, 0
        %v1365 = vsel %vm1264, %v1360, 0
        %1367 = vmatpush.bf16.xpose.msra.mxu0 0
        %1368 = vmatpush.bf16.xpose.msra.mxu0 0
        %1369 = vmatpush.bf16.xpose.msra.mxu0 0
        %1370 = vmatpush.bf16.xpose.msra.mxu0 0
        %1371 = vmatpush.bf16.xpose.msra.mxu0 0
        %1372 = vmatpush.bf16.xpose.msra.mxu0 0
        %1373 = vmatpush.bf16.xpose.msra.mxu0 0
        %1374 = vmatpush.bf16.xpose.msra.mxu0 %v1365
        %1375 = vmatmul.bf16.gmra.mxu0 %v1362
        %v1376 = vpop.f32.mrf.mxu0
        %v1377 = vadd.f32 0.0, %v1376
        %v1378 = vpop.f32.mrf.mxu0
        %1379 = vdwg.mxu0
        %v1381 = vunpack.c.l.b16 %v1256
        %v1382 = vpack.c.b16 %v1381, %v1381
        %1383 = vrot.lane.b32.xlu0 %v1382, 96
        %v1384 = vpop.permute.xlu0 %1383
        %v1386 = vsel %vm1264, %v1256, 0
        %v1389 = vsel %vm1264, %v1384, 0
        %1391 = vmatpush.bf16.xpose.msra.mxu0 0
        %1392 = vmatpush.bf16.xpose.msra.mxu0 0
        %1393 = vmatpush.bf16.xpose.msra.mxu0 0
        %1394 = vmatpush.bf16.xpose.msra.mxu0 0
        %1395 = vmatpush.bf16.xpose.msra.mxu0 0
        %1396 = vmatpush.bf16.xpose.msra.mxu0 0
        %1397 = vmatpush.bf16.xpose.msra.mxu0 0
        %1398 = vmatpush.bf16.xpose.msra.mxu0 %v1389
        %1399 = vmatmul.bf16.gmra.mxu0 %v1386
        %v1400 = vpop.f32.mrf.mxu0
        %v1401 = vadd.f32 0.0, %v1400
        %v1402 = vpop.f32.mrf.mxu0
        %1403 = vdwg.mxu0
        %v1405 = vunpack.c.l.b16 %v1257
        %v1406 = vpack.c.b16 %v1405, %v1405
        %1407 = vrot.lane.b32.xlu0 %v1406, 96
        %v1408 = vpop.permute.xlu0 %1407
        %v1410 = vsel %vm1264, %v1257, 0
        %v1413 = vsel %vm1264, %v1408, 0
        %1415 = vmatpush.bf16.xpose.msra.mxu0 0
        %1416 = vmatpush.bf16.xpose.msra.mxu0 0
        %1417 = vmatpush.bf16.xpose.msra.mxu0 0
        %1418 = vmatpush.bf16.xpose.msra.mxu0 0
        %1419 = vmatpush.bf16.xpose.msra.mxu0 0
        %1420 = vmatpush.bf16.xpose.msra.mxu0 0
        %1421 = vmatpush.bf16.xpose.msra.mxu0 0
        %1422 = vmatpush.bf16.xpose.msra.mxu0 %v1413
        %1423 = vmatmul.bf16.gmra.mxu0 %v1410
        %v1424 = vpop.f32.mrf.mxu0
        %v1425 = vadd.f32 0.0, %v1424
        %v1426 = vpop.f32.mrf.mxu0
        %1427 = vdwg.mxu0
        %v1429 = vunpack.c.l.b16 %v1258
        %v1430 = vpack.c.b16 %v1429, %v1429
        %1431 = vrot.lane.b32.xlu0 %v1430, 96
        %v1432 = vpop.permute.xlu0 %1431
        %v1434 = vsel %vm1264, %v1258, 0
        %v1437 = vsel %vm1264, %v1432, 0
        %1439 = vmatpush.bf16.xpose.msra.mxu0 0
        %1440 = vmatpush.bf16.xpose.msra.mxu0 0
        %1441 = vmatpush.bf16.xpose.msra.mxu0 0
        %1442 = vmatpush.bf16.xpose.msra.mxu0 0
        %1443 = vmatpush.bf16.xpose.msra.mxu0 0
        %1444 = vmatpush.bf16.xpose.msra.mxu0 0
        %1445 = vmatpush.bf16.xpose.msra.mxu0 0
        %1446 = vmatpush.bf16.xpose.msra.mxu0 %v1437
        %1447 = vmatmul.bf16.gmra.mxu0 %v1434
        %v1448 = vpop.f32.mrf.mxu0
        %v1449 = vadd.f32 0.0, %v1448
        %v1450 = vpop.f32.mrf.mxu0
        %1451 = vdwg.mxu0
        %v1452 = vmul.f32 %v1281, 0.35355338
        %v1453 = vmul.f32 %v1305, 0.35355338
        %v1454 = vmul.f32 %v1329, 0.35355338
        %v1455 = vmul.f32 %v1353, 0.35355338
        %v1456 = vmul.f32 %v1377, 0.35355338
        %v1457 = vmul.f32 %v1401, 0.35355338
        %v1458 = vmul.f32 %v1425, 0.35355338
        %v1459 = vmul.f32 %v1449, 0.35355338
        %v1460 = vadd.f32 %v1452, %v1182
        %v1461 = vadd.f32 %v1453, %v1183
        %v1462 = vadd.f32 %v1454, %v1182
        %v1463 = vadd.f32 %v1455, %v1183
        %v1464 = vadd.f32 %v1456, %v1182
        %v1465 = vadd.f32 %v1457, %v1183
        %v1466 = vadd.f32 %v1458, %v1182
        %v1467 = vadd.f32 %v1459, %v1183
        %v1468 = vsel %vm1264, %v1460, -inf
        %1469 = vmax.xlane.f32.xlu0 %v1468
        %v1470 = vpop.xlane.xlu0 %1469
        %v1471 = vsel %vm1264, %v1461, -inf
        %1472 = vmax.xlane.f32.xlu0 %v1471
        %v1473 = vpop.xlane.xlu0 %1472
        %v1474 = vsel %vm1264, %v1462, -inf
        %1475 = vmax.xlane.f32.xlu0 %v1474
        %v1476 = vpop.xlane.xlu0 %1475
        %v1477 = vsel %vm1264, %v1463, -inf
        %1478 = vmax.xlane.f32.xlu0 %v1477
        %v1479 = vpop.xlane.xlu0 %1478
        %v1480 = vsel %vm1264, %v1464, -inf
        %1481 = vmax.xlane.f32.xlu0 %v1480
        %v1482 = vpop.xlane.xlu0 %1481
        %v1483 = vsel %vm1264, %v1465, -inf
        %1484 = vmax.xlane.f32.xlu0 %v1483
        %v1485 = vpop.xlane.xlu0 %1484
        %v1486 = vsel %vm1264, %v1466, -inf
        %1487 = vmax.xlane.f32.xlu0 %v1486
        %v1488 = vpop.xlane.xlu0 %1487
        %v1489 = vsel %vm1264, %v1467, -inf
        %1490 = vmax.xlane.f32.xlu0 %v1489
        %v1491 = vpop.xlane.xlu0 %1490
        %v1492 = vsub.f32 %v1460, %v1470
        %v1493 = vsub.f32 %v1461, %v1473
        %v1494 = vsub.f32 %v1462, %v1476
        %v1495 = vsub.f32 %v1463, %v1479
        %v1496 = vsub.f32 %v1464, %v1482
        %v1497 = vsub.f32 %v1465, %v1485
        %v1498 = vsub.f32 %v1466, %v1488
        %v1499 = vsub.f32 %v1467, %v1491
        %v1500 = vmul.f32 %v1492, 1.442695
        %v1501 = vpow.pop %v1500
        %v1502 = vmul.f32 %v1493, 1.442695
        %v1503 = vpow.pop %v1502
        %v1504 = vmul.f32 %v1494, 1.442695
        %v1505 = vpow.pop %v1504
        %v1506 = vmul.f32 %v1495, 1.442695
        %v1507 = vpow.pop %v1506
        %v1508 = vmul.f32 %v1496, 1.442695
        %v1509 = vpow.pop %v1508
        %v1510 = vmul.f32 %v1497, 1.442695
        %v1511 = vpow.pop %v1510
        %v1512 = vmul.f32 %v1498, 1.442695
        %v1513 = vpow.pop %v1512
        %v1514 = vmul.f32 %v1499, 1.442695
        %v1515 = vpow.pop %v1514
        %v1516 = vsel %vm1264, %v1501, 0.0
        %1517 = vadd.xlane.f32.xlu0 %v1516
        %v1518 = vpop.xlane.xlu0 %1517
        %v1519 = vsel %vm1264, %v1503, 0.0
        %1520 = vadd.xlane.f32.xlu0 %v1519
        %v1521 = vpop.xlane.xlu0 %1520
        %v1522 = vsel %vm1264, %v1505, 0.0
        %1523 = vadd.xlane.f32.xlu0 %v1522
        %v1524 = vpop.xlane.xlu0 %1523
        %v1525 = vsel %vm1264, %v1507, 0.0
        %1526 = vadd.xlane.f32.xlu0 %v1525
        %v1527 = vpop.xlane.xlu0 %1526
        %v1528 = vsel %vm1264, %v1509, 0.0
        %1529 = vadd.xlane.f32.xlu0 %v1528
        %v1530 = vpop.xlane.xlu0 %1529
        %v1531 = vsel %vm1264, %v1511, 0.0
        %1532 = vadd.xlane.f32.xlu0 %v1531
        %v1533 = vpop.xlane.xlu0 %1532
        %v1534 = vsel %vm1264, %v1513, 0.0
        %1535 = vadd.xlane.f32.xlu0 %v1534
        %v1536 = vpop.xlane.xlu0 %1535
        %v1537 = vsel %vm1264, %v1515, 0.0
        %1538 = vadd.xlane.f32.xlu0 %v1537
        %v1539 = vpop.xlane.xlu0 %1538
        %v1540 = vrcp.pop %v1518
        %v1541 = vmul.f32 %v1518, %v1540
        %v1542 = vsub.f32 1.0, %v1541
        %v1543 = vmul.f32 %v1540, %v1542
        %v1544 = vadd.f32 %v1540, %v1543
        %vm1545 = vweird.f32 %v1518
        %vm1546 = vweird.f32 %v1540
        %vm1547 = vmor %vm1545, %vm1546
        %v1548 = vsel %vm1547, %v1540, %v1544
        %v1549 = vand.u32 2147483647, %v1518
        %vm1550 = vcmp.eq.f32.partialorder %v1549, 8.507059e+37
        %v1551 = vand.u32 %v1518, 2147483648
        %v1552 = vor.u32 1.1754944e-38, %v1551
        %v1553 = vsel %vm1550, %v1552, %v1548
        %v1554 = vmul.f32 %v1501, %v1553
        %v1555 = vrcp.pop %v1521
        %v1556 = vmul.f32 %v1521, %v1555
        %v1557 = vsub.f32 1.0, %v1556
        %v1558 = vmul.f32 %v1555, %v1557
        %v1559 = vadd.f32 %v1555, %v1558
        %vm1560 = vweird.f32 %v1521
        %vm1561 = vweird.f32 %v1555
        %vm1562 = vmor %vm1560, %vm1561
        %v1563 = vsel %vm1562, %v1555, %v1559
        %v1564 = vand.u32 2147483647, %v1521
        %vm1565 = vcmp.eq.f32.partialorder %v1564, 8.507059e+37
        %v1566 = vand.u32 %v1521, 2147483648
        %v1567 = vor.u32 1.1754944e-38, %v1566
        %v1568 = vsel %vm1565, %v1567, %v1563
        %v1569 = vmul.f32 %v1503, %v1568
        %v1570 = vrcp.pop %v1524
        %v1571 = vmul.f32 %v1524, %v1570
        %v1572 = vsub.f32 1.0, %v1571
        %v1573 = vmul.f32 %v1570, %v1572
        %v1574 = vadd.f32 %v1570, %v1573
        %vm1575 = vweird.f32 %v1524
        %vm1576 = vweird.f32 %v1570
        %vm1577 = vmor %vm1575, %vm1576
        %v1578 = vsel %vm1577, %v1570, %v1574
        %v1579 = vand.u32 2147483647, %v1524
        %vm1580 = vcmp.eq.f32.partialorder %v1579, 8.507059e+37
        %v1581 = vand.u32 %v1524, 2147483648
        %v1582 = vor.u32 1.1754944e-38, %v1581
        %v1583 = vsel %vm1580, %v1582, %v1578
        %v1584 = vmul.f32 %v1505, %v1583
        %v1585 = vrcp.pop %v1527
        %v1586 = vmul.f32 %v1527, %v1585
        %v1587 = vsub.f32 1.0, %v1586
        %v1588 = vmul.f32 %v1585, %v1587
        %v1589 = vadd.f32 %v1585, %v1588
        %vm1590 = vweird.f32 %v1527
        %vm1591 = vweird.f32 %v1585
        %vm1592 = vmor %vm1590, %vm1591
        %v1593 = vsel %vm1592, %v1585, %v1589
        %v1594 = vand.u32 2147483647, %v1527
        %vm1595 = vcmp.eq.f32.partialorder %v1594, 8.507059e+37
        %v1596 = vand.u32 %v1527, 2147483648
        %v1597 = vor.u32 1.1754944e-38, %v1596
        %v1598 = vsel %vm1595, %v1597, %v1593
        %v1599 = vmul.f32 %v1507, %v1598
        %v1600 = vrcp.pop %v1530
        %v1601 = vmul.f32 %v1530, %v1600
        %v1602 = vsub.f32 1.0, %v1601
        %v1603 = vmul.f32 %v1600, %v1602
        %v1604 = vadd.f32 %v1600, %v1603
        %vm1605 = vweird.f32 %v1530
        %vm1606 = vweird.f32 %v1600
        %vm1607 = vmor %vm1605, %vm1606
        %v1608 = vsel %vm1607, %v1600, %v1604
        %v1609 = vand.u32 2147483647, %v1530
        %vm1610 = vcmp.eq.f32.partialorder %v1609, 8.507059e+37
        %v1611 = vand.u32 %v1530, 2147483648
        %v1612 = vor.u32 1.1754944e-38, %v1611
        %v1613 = vsel %vm1610, %v1612, %v1608
        %v1614 = vmul.f32 %v1509, %v1613
        %v1615 = vrcp.pop %v1533
        %v1616 = vmul.f32 %v1533, %v1615
        %v1617 = vsub.f32 1.0, %v1616
        %v1618 = vmul.f32 %v1615, %v1617
        %v1619 = vadd.f32 %v1615, %v1618
        %vm1620 = vweird.f32 %v1533
        %vm1621 = vweird.f32 %v1615
        %vm1622 = vmor %vm1620, %vm1621
        %v1623 = vsel %vm1622, %v1615, %v1619
        %v1624 = vand.u32 2147483647, %v1533
        %vm1625 = vcmp.eq.f32.partialorder %v1624, 8.507059e+37
        %v1626 = vand.u32 %v1533, 2147483648
        %v1627 = vor.u32 1.1754944e-38, %v1626
        %v1628 = vsel %vm1625, %v1627, %v1623
        %v1629 = vmul.f32 %v1511, %v1628
        %v1630 = vrcp.pop %v1536
        %v1631 = vmul.f32 %v1536, %v1630
        %v1632 = vsub.f32 1.0, %v1631
        %v1633 = vmul.f32 %v1630, %v1632
        %v1634 = vadd.f32 %v1630, %v1633
        %vm1635 = vweird.f32 %v1536
        %vm1636 = vweird.f32 %v1630
        %vm1637 = vmor %vm1635, %vm1636
        %v1638 = vsel %vm1637, %v1630, %v1634
        %v1639 = vand.u32 2147483647, %v1536
        %vm1640 = vcmp.eq.f32.partialorder %v1639, 8.507059e+37
        %v1641 = vand.u32 %v1536, 2147483648
        %v1642 = vor.u32 1.1754944e-38, %v1641
        %v1643 = vsel %vm1640, %v1642, %v1638
        %v1644 = vmul.f32 %v1513, %v1643
        %v1645 = vrcp.pop %v1539
        %v1646 = vmul.f32 %v1539, %v1645
        %v1647 = vsub.f32 1.0, %v1646
        %v1648 = vmul.f32 %v1645, %v1647
        %v1649 = vadd.f32 %v1645, %v1648
        %vm1650 = vweird.f32 %v1539
        %vm1651 = vweird.f32 %v1645
        %vm1652 = vmor %vm1650, %vm1651
        %v1653 = vsel %vm1652, %v1645, %v1649
        %v1654 = vand.u32 2147483647, %v1539
        %vm1655 = vcmp.eq.f32.partialorder %v1654, 8.507059e+37
        %v1656 = vand.u32 %v1539, 2147483648
        %v1657 = vor.u32 1.1754944e-38, %v1656
        %v1658 = vsel %vm1655, %v1657, %v1653
        %v1659 = vmul.f32 %v1515, %v1658
        %1660 = vst.msk [vmem:[%s1143] sm:$0xff] %vm1264, %v1554
        %1661 = vst.msk [vmem:[%s1143 + $0x8] sm:$0xff] %vm1264, %v1569
        %1662 = vst.msk [vmem:[%s1143 + $0x10] sm:$0xff] %vm1264, %v1584
        %1663 = vst.msk [vmem:[%s1143 + $0x18] sm:$0xff] %vm1264, %v1599
        %1664 = vst.msk [vmem:[%s1143 + $0x20] sm:$0xff] %vm1264, %v1614
        %1665 = vst.msk [vmem:[%s1143 + $0x28] sm:$0xff] %vm1264, %v1629
        %1666 = vst.msk [vmem:[%s1143 + $0x30] sm:$0xff] %vm1264, %v1644
        %1667 = vst.msk [vmem:[%s1143 + $0x38] sm:$0xff] %vm1264, %v1659
        %v1668 = vpack.c.bf16 %v1554, %v1554
        %v1669 = vpack.c.bf16 %v1569, %v1569
        %v1670 = vpack.c.bf16 %v1584, %v1584
        %v1671 = vpack.c.bf16 %v1599, %v1599
        %v1672 = vpack.c.bf16 %v1614, %v1614
        %v1673 = vpack.c.bf16 %v1629, %v1629
        %v1674 = vpack.c.bf16 %v1644, %v1644
        %v1675 = vpack.c.bf16 %v1659, %v1659
        %1676 = vrot.lane.b32.xlu0 %v1261, 64
        %v1677 = vpop.permute.xlu0 %1676
        %v1679 = vsel %vm1264, %v1668, 0
        %vm1681 = vcmask 1043456
        %v1683 = vsel %vm1681, %v1677, 0
        %1685 = vmatpush.bf16.msra.mxu0 0
        %1686 = vmatpush.bf16.msra.mxu0 0
        %1687 = vmatpush.bf16.msra.mxu0 0
        %1688 = vmatpush.bf16.msra.mxu0 0
        %1689 = vmatpush.bf16.msra.mxu0 0
        %1690 = vmatpush.bf16.msra.mxu0 0
        %1691 = vmatpush.bf16.msra.mxu0 0
        %1692 = vmatpush.bf16.msra.mxu0 %v1683
        %1693 = vmatmul.bf16.gmra.mxu0 %v1679
        %v1694 = vpop.f32.mrf.mxu0
        %v1695 = vadd.f32 0.0, %v1694
        %v1696 = vpop.f32.mrf.mxu0
        %1697 = vdwg.mxu0
        %1698 = vrot.lane.b32.xlu0 %v1286, 64
        %v1699 = vpop.permute.xlu0 %1698
        %v1701 = vsel %vm1264, %v1669, 0
        %v1704 = vsel %vm1681, %v1699, 0
        %1706 = vmatpush.bf16.msra.mxu0 0
        %1707 = vmatpush.bf16.msra.mxu0 0
        %1708 = vmatpush.bf16.msra.mxu0 0
        %1709 = vmatpush.bf16.msra.mxu0 0
        %1710 = vmatpush.bf16.msra.mxu0 0
        %1711 = vmatpush.bf16.msra.mxu0 0
        %1712 = vmatpush.bf16.msra.mxu0 0
        %1713 = vmatpush.bf16.msra.mxu0 %v1704
        %1714 = vmatmul.bf16.gmra.mxu0 %v1701
        %v1715 = vpop.f32.mrf.mxu0
        %v1716 = vadd.f32 0.0, %v1715
        %v1717 = vpop.f32.mrf.mxu0
        %1718 = vdwg.mxu0
        %1719 = vrot.lane.b32.xlu0 %v1310, 64
        %v1720 = vpop.permute.xlu0 %1719
        %v1722 = vsel %vm1264, %v1670, 0
        %v1725 = vsel %vm1681, %v1720, 0
        %1727 = vmatpush.bf16.msra.mxu0 0
        %1728 = vmatpush.bf16.msra.mxu0 0
        %1729 = vmatpush.bf16.msra.mxu0 0
        %1730 = vmatpush.bf16.msra.mxu0 0
        %1731 = vmatpush.bf16.msra.mxu0 0
        %1732 = vmatpush.bf16.msra.mxu0 0
        %1733 = vmatpush.bf16.msra.mxu0 0
        %1734 = vmatpush.bf16.msra.mxu0 %v1725
        %1735 = vmatmul.bf16.gmra.mxu0 %v1722
        %v1736 = vpop.f32.mrf.mxu0
        %v1737 = vadd.f32 0.0, %v1736
        %v1738 = vpop.f32.mrf.mxu0
        %1739 = vdwg.mxu0
        %1740 = vrot.lane.b32.xlu0 %v1334, 64
        %v1741 = vpop.permute.xlu0 %1740
        %v1743 = vsel %vm1264, %v1671, 0
        %v1746 = vsel %vm1681, %v1741, 0
        %1748 = vmatpush.bf16.msra.mxu0 0
        %1749 = vmatpush.bf16.msra.mxu0 0
        %1750 = vmatpush.bf16.msra.mxu0 0
        %1751 = vmatpush.bf16.msra.mxu0 0
        %1752 = vmatpush.bf16.msra.mxu0 0
        %1753 = vmatpush.bf16.msra.mxu0 0
        %1754 = vmatpush.bf16.msra.mxu0 0
        %1755 = vmatpush.bf16.msra.mxu0 %v1746
        %1756 = vmatmul.bf16.gmra.mxu0 %v1743
        %v1757 = vpop.f32.mrf.mxu0
        %v1758 = vadd.f32 0.0, %v1757
        %v1759 = vpop.f32.mrf.mxu0
        %1760 = vdwg.mxu0
        %1761 = vrot.lane.b32.xlu0 %v1358, 64
        %v1762 = vpop.permute.xlu0 %1761
        %v1764 = vsel %vm1264, %v1672, 0
        %v1767 = vsel %vm1681, %v1762, 0
        %1769 = vmatpush.bf16.msra.mxu0 0
        %1770 = vmatpush.bf16.msra.mxu0 0
        %1771 = vmatpush.bf16.msra.mxu0 0
        %1772 = vmatpush.bf16.msra.mxu0 0
        %1773 = vmatpush.bf16.msra.mxu0 0
        %1774 = vmatpush.bf16.msra.mxu0 0
        %1775 = vmatpush.bf16.msra.mxu0 0
        %1776 = vmatpush.bf16.msra.mxu0 %v1767
        %1777 = vmatmul.bf16.gmra.mxu0 %v1764
        %v1778 = vpop.f32.mrf.mxu0
        %v1779 = vadd.f32 0.0, %v1778
        %v1780 = vpop.f32.mrf.mxu0
        %1781 = vdwg.mxu0
        %1782 = vrot.lane.b32.xlu0 %v1382, 64
        %v1783 = vpop.permute.xlu0 %1782
        %v1785 = vsel %vm1264, %v1673, 0
        %v1788 = vsel %vm1681, %v1783, 0
        %1790 = vmatpush.bf16.msra.mxu0 0
        %1791 = vmatpush.bf16.msra.mxu0 0
        %1792 = vmatpush.bf16.msra.mxu0 0
        %1793 = vmatpush.bf16.msra.mxu0 0
        %1794 = vmatpush.bf16.msra.mxu0 0
        %1795 = vmatpush.bf16.msra.mxu0 0
        %1796 = vmatpush.bf16.msra.mxu0 0
        %1797 = vmatpush.bf16.msra.mxu0 %v1788
        %1798 = vmatmul.bf16.gmra.mxu0 %v1785
        %v1799 = vpop.f32.mrf.mxu0
        %v1800 = vadd.f32 0.0, %v1799
        %v1801 = vpop.f32.mrf.mxu0
        %1802 = vdwg.mxu0
        %1803 = vrot.lane.b32.xlu0 %v1406, 64
        %v1804 = vpop.permute.xlu0 %1803
        %v1806 = vsel %vm1264, %v1674, 0
        %v1809 = vsel %vm1681, %v1804, 0
        %1811 = vmatpush.bf16.msra.mxu0 0
        %1812 = vmatpush.bf16.msra.mxu0 0
        %1813 = vmatpush.bf16.msra.mxu0 0
        %1814 = vmatpush.bf16.msra.mxu0 0
        %1815 = vmatpush.bf16.msra.mxu0 0
        %1816 = vmatpush.bf16.msra.mxu0 0
        %1817 = vmatpush.bf16.msra.mxu0 0
        %1818 = vmatpush.bf16.msra.mxu0 %v1809
        %1819 = vmatmul.bf16.gmra.mxu0 %v1806
        %v1820 = vpop.f32.mrf.mxu0
        %v1821 = vadd.f32 0.0, %v1820
        %v1822 = vpop.f32.mrf.mxu0
        %1823 = vdwg.mxu0
        %1824 = vrot.lane.b32.xlu0 %v1430, 64
        %v1825 = vpop.permute.xlu0 %1824
        %v1827 = vsel %vm1264, %v1675, 0
        %v1830 = vsel %vm1681, %v1825, 0
        %1832 = vmatpush.bf16.msra.mxu0 0
        %1833 = vmatpush.bf16.msra.mxu0 0
        %1834 = vmatpush.bf16.msra.mxu0 0
        %1835 = vmatpush.bf16.msra.mxu0 0
        %1836 = vmatpush.bf16.msra.mxu0 0
        %1837 = vmatpush.bf16.msra.mxu0 0
        %1838 = vmatpush.bf16.msra.mxu0 0
        %1839 = vmatpush.bf16.msra.mxu0 %v1830
        %1840 = vmatmul.bf16.gmra.mxu0 %v1827
        %v1841 = vpop.f32.mrf.mxu0
        %v1842 = vadd.f32 0.0, %v1841
        %v1843 = vpop.f32.mrf.mxu0
        %1844 = vdwg.mxu0
        %1847 = vrot.lane.b32.xlu0 %v1737, 8
        %v1848 = vpop.permute.xlu0 %1847
        %1849 = vrot.lane.b32.xlu0 %v1758, 8
        %v1850 = vpop.permute.xlu0 %1849
        %1855 = vrot.lane.b32.xlu0 %v1779, 16
        %v1856 = vpop.permute.xlu0 %1855
        %1857 = vrot.lane.b32.xlu0 %v1800, 16
        %v1858 = vpop.permute.xlu0 %1857
        %1863 = vrot.lane.b32.xlu0 %v1821, 24
        %v1864 = vpop.permute.xlu0 %1863
        %1865 = vrot.lane.b32.xlu0 %v1842, 24
        %v1866 = vpop.permute.xlu0 %1865
        %v1869 = vsel %vm1264, %v1695, %v1848
        %v1870 = vsel %vm1264, %v1716, %v1850
        %vm1871 = vcmask 130048
        %v1872 = vsel %vm1871, %v1869, %v1856
        %v1873 = vsel %vm1871, %v1870, %v1858
        %vm1874 = vcmask 195584
        %v1875 = vsel %vm1874, %v1872, %v1864
        %v1876 = vsel %vm1874, %v1873, %v1866
        %v1877 = vpack.c.bf16 %v1876, %v1875
        %v1878 = vld [vmem:[%s1124] sm:$0xf]
        %v1879 = vld [vmem:[%s1124 + $0x4] sm:$0xf]
        %v1880 = vld [vmem:[%s1124 + $0x8] sm:$0xf]
        %v1881 = vld [vmem:[%s1124 + $0xc] sm:$0xf]
        %v1882 = vld [vmem:[%s913] sm:$0x1]
        %v1884 = vperm.slane %v1882, 0
        %v1890 = vunpack.c.l.b16 %v1878
        %v1891 = vunpack.c.l.b16 %v1879
        %v1892 = vunpack.c.l.b16 %v1880
        %v1893 = vunpack.c.l.b16 %v1881
        %v1894 = vpack.c.b16 %v1891, %v1890
        %v1895 = vpack.c.b16 %v1893, %v1892
        %v1899 = vsel %vm1213, %v1877, 0
        %1901 = vmatpush.bf16.msra.mxu0 0
        %1902 = vmatpush.bf16.msra.mxu0 0
        %1903 = vmatpush.bf16.msra.mxu0 0
        %1904 = vmatpush.bf16.msra.mxu0 0
        %1905 = vmatpush.bf16.msra.mxu0 0
        %1906 = vmatpush.bf16.msra.mxu0 0
        %1907 = vmatpush.bf16.msra.mxu0 %v1895
        %1908 = vmatpush.bf16.msra.mxu0 %v1894
        %1909 = vmatmul.bf16.gmra.mxu0 %v1899
        %v1910 = vpop.f32.mrf.mxu0
        %v1911 = vadd.f32 %v1884, %v1910
        %v1912 = vpop.f32.mrf.mxu0
        %v1913 = vadd.f32 %v1884, %v1912
        %1914 = vdwg.mxu0
        %v1915 = vadd.f32 %v1911, %v1190
        %v1916 = vadd.f32 %v1913, %v1191
        %v1917 = vsel %vm1213, %v1915, 0.0
        %1918 = vadd.xlane.f32.xlu0 %v1917
        %v1919 = vpop.xlane.xlu0 %1918
        %v1920 = vsel %vm1213, %v1916, 0.0
        %1921 = vadd.xlane.f32.xlu0 %v1920
        %v1922 = vpop.xlane.xlu0 %1921
        %v1923 = vrcp.pop 32.0
        %v1924 = vmul.f32 32.0, %v1923
        %v1925 = vsub.f32 1.0, %v1924
        %v1926 = vmul.f32 %v1923, %v1925
        %v1927 = vadd.f32 %v1923, %v1926
        %vm1928 = vweird.f32 %v1923
        %v1929 = vsel %vm1928, %v1923, %v1927
        %v1930 = vmul.f32 %v1919, %v1929
        %v1931 = vmul.f32 %v1922, %v1929
        %v1932 = vsub.f32 %v1915, %v1930
        %v1933 = vsub.f32 %v1916, %v1931
        %v1934 = vmul.f32 %v1932, %v1932
        %v1935 = vmul.f32 %v1933, %v1933
        %v1936 = vsel %vm1213, %v1934, 0.0
        %1937 = vadd.xlane.f32.xlu0 %v1936
        %v1938 = vpop.xlane.xlu0 %1937
        %v1939 = vsel %vm1213, %v1935, 0.0
        %1940 = vadd.xlane.f32.xlu0 %v1939
        %v1941 = vpop.xlane.xlu0 %1940
        %v1942 = vmul.f32 %v1938, %v1929
        %v1943 = vmul.f32 %v1941, %v1929
        %v1944 = vadd.f32 %v1942, 1e-05
        %v1945 = vadd.f32 %v1943, 1e-05
        %v1946 = vrsqrt.pop %v1944
        %v1947 = vmul.f32 %v1946, %v1944
        %v1948 = vmul.f32 %v1947, %v1946
        %v1949 = vmul.f32 0.5, %v1948
        %v1950 = vsub.f32 1.5, %v1949
        %v1951 = vmul.f32 %v1946, %v1950
        %vm1952 = vweird.f32 %v1944
        %vm1953 = vweird.f32 %v1946
        %vm1954 = vmor %vm1952, %vm1953
        %v1955 = vsel %vm1954, %v1946, %v1951
        %v1956 = vrsqrt.pop %v1945
        %v1957 = vmul.f32 %v1956, %v1945
        %v1958 = vmul.f32 %v1957, %v1956
        %v1959 = vmul.f32 0.5, %v1958
        %v1960 = vsub.f32 1.5, %v1959
        %v1961 = vmul.f32 %v1956, %v1960
        %vm1962 = vweird.f32 %v1945
        %vm1963 = vweird.f32 %v1956
        %vm1964 = vmor %vm1962, %vm1963
        %v1965 = vsel %vm1964, %v1956, %v1961
        %v1966 = vmul.f32 %v1932, %v1955
        %v1967 = vmul.f32 %v1933, %v1965
        %v1968 = vperm.slane %v1189, 0
        %v1969 = vmul.f32 %v1966, %v1968
        %v1970 = vmul.f32 %v1967, %v1968
        %v1971 = vperm.slane %v1189, 1
        %v1972 = vadd.f32 %v1969, %v1971
        %v1973 = vadd.f32 %v1970, %v1971
        %v1974 = vpack.c.bf16 %v1973, %v1972
        %v1975 = vld [vmem:[%s1129] sm:$0xf]
        %v1976 = vld [vmem:[%s1129 + $0x4] sm:$0xf]
        %v1977 = vld [vmem:[%s1129 + $0x8] sm:$0xf]
        %v1978 = vld [vmem:[%s1129 + $0xc] sm:$0xf]
        %v1979 = vld [vmem:[%s922] sm:$0x1]
        %v1981 = vperm.slane %v1979, 0
        %v1987 = vunpack.c.l.b16 %v1975
        %v1988 = vunpack.c.l.b16 %v1976
        %v1989 = vunpack.c.l.b16 %v1977
        %v1990 = vunpack.c.l.b16 %v1978
        %v1991 = vpack.c.b16 %v1988, %v1987
        %v1992 = vpack.c.b16 %v1990, %v1989
        %v1996 = vsel %vm1213, %v1974, 0
        %1998 = vmatpush.bf16.msra.mxu0 0
        %1999 = vmatpush.bf16.msra.mxu0 0
        %2000 = vmatpush.bf16.msra.mxu0 0
        %2001 = vmatpush.bf16.msra.mxu0 0
        %2002 = vmatpush.bf16.msra.mxu0 0
        %2003 = vmatpush.bf16.msra.mxu0 0
        %2004 = vmatpush.bf16.msra.mxu0 %v1992
        %2005 = vmatpush.bf16.msra.mxu0 %v1991
        %2006 = vmatmul.bf16.gmra.mxu0 %v1996
        %v2007 = vpop.f32.mrf.mxu0
        %v2008 = vadd.f32 %v1981, %v2007
        %v2009 = vpop.f32.mrf.mxu0
        %v2010 = vadd.f32 %v1981, %v2009
        %2011 = vdwg.mxu0
        %v2012 = vld [vmem:[#allocation6] sm:$0xf]
        %v2013 = vld [vmem:[#allocation6 + $0x4] sm:$0xf]
        %v2014 = vld [vmem:[%s932] sm:$0xf]
        %v2015 = vld [vmem:[%s932 + $0x4] sm:$0xf]
        %v2016 = vld [vmem:[%s932 + $0x8] sm:$0xf]
        %v2017 = vld [vmem:[%s932 + $0xc] sm:$0xf]
        %v2018 = vld [vmem:[%s941] sm:$0x1]
        %v2020 = vperm.slane %v2018, 0
        %v2024 = vunpack.c.l.b16 %v2012
        %v2025 = vunpack.c.l.b16 %v2013
        %v2026 = vpack.c.b16 %v2025, %v2024
        %v2031 = vunpack.c.l.b16 %v2014
        %v2032 = vunpack.c.l.b16 %v2015
        %v2033 = vunpack.c.l.b16 %v2016
        %v2034 = vunpack.c.l.b16 %v2017
        %v2035 = vpack.c.b16 %v2032, %v2031
        %v2036 = vpack.c.b16 %v2034, %v2033
        %v2040 = vsel %vm1213, %v2026, 0
        %2042 = vmatpush.bf16.msra.mxu0 0
        %2043 = vmatpush.bf16.msra.mxu0 0
        %2044 = vmatpush.bf16.msra.mxu0 0
        %2045 = vmatpush.bf16.msra.mxu0 0
        %2046 = vmatpush.bf16.msra.mxu0 0
        %2047 = vmatpush.bf16.msra.mxu0 0
        %2048 = vmatpush.bf16.msra.mxu0 %v2036
        %2049 = vmatpush.bf16.msra.mxu0 %v2035
        %2050 = vmatmul.bf16.gmra.mxu0 %v2040
        %v2051 = vpop.f32.mrf.mxu0
        %v2052 = vadd.f32 %v2020, %v2051
        %v2053 = vpop.f32.mrf.mxu0
        %v2054 = vadd.f32 %v2020, %v2053
        %2055 = vdwg.mxu0
        %2058 = vrot.lane.b32.xlu0 %v2008, 120
        %v2059 = vpop.permute.xlu0 %2058
        %2060 = vrot.lane.b32.xlu0 %v2010, 120
        %v2061 = vpop.permute.xlu0 %2060
        %2064 = vrot.lane.b32.xlu0 %v2008, 112
        %v2065 = vpop.permute.xlu0 %2064
        %2066 = vrot.lane.b32.xlu0 %v2010, 112
        %v2067 = vpop.permute.xlu0 %2066
        %2070 = vrot.lane.b32.xlu0 %v2008, 104
        %v2071 = vpop.permute.xlu0 %2070
        %2072 = vrot.lane.b32.xlu0 %v2010, 104
        %v2073 = vpop.permute.xlu0 %2072
        %v2076 = vpack.c.bf16 %v2008, %v2008
        %v2077 = vpack.c.bf16 %v2010, %v2010
        %v2078 = vpack.c.bf16 %v2059, %v2059
        %v2079 = vpack.c.bf16 %v2061, %v2061
        %v2080 = vpack.c.bf16 %v2065, %v2065
        %v2081 = vpack.c.bf16 %v2067, %v2067
        %v2082 = vpack.c.bf16 %v2071, %v2071
        %v2083 = vpack.c.bf16 %v2073, %v2073
        %2086 = vrot.lane.b32.xlu0 %v2052, 120
        %v2087 = vpop.permute.xlu0 %2086
        %2088 = vrot.lane.b32.xlu0 %v2054, 120
        %v2089 = vpop.permute.xlu0 %2088
        %2092 = vrot.lane.b32.xlu0 %v2052, 112
        %v2093 = vpop.permute.xlu0 %2092
        %2094 = vrot.lane.b32.xlu0 %v2054, 112
        %v2095 = vpop.permute.xlu0 %2094
        %2098 = vrot.lane.b32.xlu0 %v2052, 104
        %v2099 = vpop.permute.xlu0 %2098
        %2100 = vrot.lane.b32.xlu0 %v2054, 104
        %v2101 = vpop.permute.xlu0 %2100
        %v2104 = vpack.c.bf16 %v2052, %v2052
        %v2105 = vpack.c.bf16 %v2054, %v2054
        %v2106 = vpack.c.bf16 %v2087, %v2087
        %v2107 = vpack.c.bf16 %v2089, %v2089
        %v2108 = vpack.c.bf16 %v2093, %v2093
        %v2109 = vpack.c.bf16 %v2095, %v2095
        %v2110 = vpack.c.bf16 %v2099, %v2099
        %v2111 = vpack.c.bf16 %v2101, %v2101
        %v2113 = vsel %vm1264, %v2076, 0
        %v2116 = vsel %vm1264, %v2104, 0
        %2118 = vmatpush.bf16.xpose.msra.mxu0 0
        %2119 = vmatpush.bf16.xpose.msra.mxu0 0
        %2120 = vmatpush.bf16.xpose.msra.mxu0 0
        %2121 = vmatpush.bf16.xpose.msra.mxu0 0
        %2122 = vmatpush.bf16.xpose.msra.mxu0 0
        %2123 = vmatpush.bf16.xpose.msra.mxu0 0
        %2124 = vmatpush.bf16.xpose.msra.mxu0 0
        %2125 = vmatpush.bf16.xpose.msra.mxu0 %v2116
        %2126 = vmatmul.bf16.gmra.mxu0 %v2113
        %v2127 = vpop.f32.mrf.mxu0
        %v2128 = vadd.f32 0.0, %v2127
        %v2129 = vpop.f32.mrf.mxu0
        %2130 = vdwg.mxu0
        %v2132 = vsel %vm1264, %v2077, 0
        %v2135 = vsel %vm1264, %v2105, 0
        %2137 = vmatpush.bf16.xpose.msra.mxu0 0
        %2138 = vmatpush.bf16.xpose.msra.mxu0 0
        %2139 = vmatpush.bf16.xpose.msra.mxu0 0
        %2140 = vmatpush.bf16.xpose.msra.mxu0 0
        %2141 = vmatpush.bf16.xpose.msra.mxu0 0
        %2142 = vmatpush.bf16.xpose.msra.mxu0 0
        %2143 = vmatpush.bf16.xpose.msra.mxu0 0
        %2144 = vmatpush.bf16.xpose.msra.mxu0 %v2135
        %2145 = vmatmul.bf16.gmra.mxu0 %v2132
        %v2146 = vpop.f32.mrf.mxu0
        %v2147 = vadd.f32 0.0, %v2146
        %v2148 = vpop.f32.mrf.mxu0
        %2149 = vdwg.mxu0
        %v2151 = vsel %vm1264, %v2078, 0
        %v2154 = vsel %vm1264, %v2106, 0
        %2156 = vmatpush.bf16.xpose.msra.mxu0 0
        %2157 = vmatpush.bf16.xpose.msra.mxu0 0
        %2158 = vmatpush.bf16.xpose.msra.mxu0 0
        %2159 = vmatpush.bf16.xpose.msra.mxu0 0
        %2160 = vmatpush.bf16.xpose.msra.mxu0 0
        %2161 = vmatpush.bf16.xpose.msra.mxu0 0
        %2162 = vmatpush.bf16.xpose.msra.mxu0 0
        %2163 = vmatpush.bf16.xpose.msra.mxu0 %v2154
        %2164 = vmatmul.bf16.gmra.mxu0 %v2151
        %v2165 = vpop.f32.mrf.mxu0
        %v2166 = vadd.f32 0.0, %v2165
        %v2167 = vpop.f32.mrf.mxu0
        %2168 = vdwg.mxu0
        %v2170 = vsel %vm1264, %v2079, 0
        %v2173 = vsel %vm1264, %v2107, 0
        %2175 = vmatpush.bf16.xpose.msra.mxu0 0
        %2176 = vmatpush.bf16.xpose.msra.mxu0 0
        %2177 = vmatpush.bf16.xpose.msra.mxu0 0
        %2178 = vmatpush.bf16.xpose.msra.mxu0 0
        %2179 = vmatpush.bf16.xpose.msra.mxu0 0
        %2180 = vmatpush.bf16.xpose.msra.mxu0 0
        %2181 = vmatpush.bf16.xpose.msra.mxu0 0
        %2182 = vmatpush.bf16.xpose.msra.mxu0 %v2173
        %2183 = vmatmul.bf16.gmra.mxu0 %v2170
        %v2184 = vpop.f32.mrf.mxu0
        %v2185 = vadd.f32 0.0, %v2184
        %v2186 = vpop.f32.mrf.mxu0
        %2187 = vdwg.mxu0
        %v2189 = vsel %vm1264, %v2080, 0
        %v2192 = vsel %vm1264, %v2108, 0
        %2194 = vmatpush.bf16.xpose.msra.mxu0 0
        %2195 = vmatpush.bf16.xpose.msra.mxu0 0
        %2196 = vmatpush.bf16.xpose.msra.mxu0 0
        %2197 = vmatpush.bf16.xpose.msra.mxu0 0
        %2198 = vmatpush.bf16.xpose.msra.mxu0 0
        %2199 = vmatpush.bf16.xpose.msra.mxu0 0
        %2200 = vmatpush.bf16.xpose.msra.mxu0 0
        %2201 = vmatpush.bf16.xpose.msra.mxu0 %v2192
        %2202 = vmatmul.bf16.gmra.mxu0 %v2189
        %v2203 = vpop.f32.mrf.mxu0
        %v2204 = vadd.f32 0.0, %v2203
        %v2205 = vpop.f32.mrf.mxu0
        %2206 = vdwg.mxu0
        %v2208 = vsel %vm1264, %v2081, 0
        %v2211 = vsel %vm1264, %v2109, 0
        %2213 = vmatpush.bf16.xpose.msra.mxu0 0
        %2214 = vmatpush.bf16.xpose.msra.mxu0 0
        %2215 = vmatpush.bf16.xpose.msra.mxu0 0
        %2216 = vmatpush.bf16.xpose.msra.mxu0 0
        %2217 = vmatpush.bf16.xpose.msra.mxu0 0
        %2218 = vmatpush.bf16.xpose.msra.mxu0 0
        %2219 = vmatpush.bf16.xpose.msra.mxu0 0
        %2220 = vmatpush.bf16.xpose.msra.mxu0 %v2211
        %2221 = vmatmul.bf16.gmra.mxu0 %v2208
        %v2222 = vpop.f32.mrf.mxu0
        %v2223 = vadd.f32 0.0, %v2222
        %v2224 = vpop.f32.mrf.mxu0
        %2225 = vdwg.mxu0
        %v2227 = vsel %vm1264, %v2082, 0
        %v2230 = vsel %vm1264, %v2110, 0
        %2232 = vmatpush.bf16.xpose.msra.mxu0 0
        %2233 = vmatpush.bf16.xpose.msra.mxu0 0
        %2234 = vmatpush.bf16.xpose.msra.mxu0 0
        %2235 = vmatpush.bf16.xpose.msra.mxu0 0
        %2236 = vmatpush.bf16.xpose.msra.mxu0 0
        %2237 = vmatpush.bf16.xpose.msra.mxu0 0
        %2238 = vmatpush.bf16.xpose.msra.mxu0 0
        %2239 = vmatpush.bf16.xpose.msra.mxu0 %v2230
        %2240 = vmatmul.bf16.gmra.mxu0 %v2227
        %v2241 = vpop.f32.mrf.mxu0
        %v2242 = vadd.f32 0.0, %v2241
        %v2243 = vpop.f32.mrf.mxu0
        %2244 = vdwg.mxu0
        %v2246 = vsel %vm1264, %v2083, 0
        %v2249 = vsel %vm1264, %v2111, 0
        %2251 = vmatpush.bf16.xpose.msra.mxu0 0
        %2252 = vmatpush.bf16.xpose.msra.mxu0 0
        %2253 = vmatpush.bf16.xpose.msra.mxu0 0
        %2254 = vmatpush.bf16.xpose.msra.mxu0 0
        %2255 = vmatpush.bf16.xpose.msra.mxu0 0
        %2256 = vmatpush.bf16.xpose.msra.mxu0 0
        %2257 = vmatpush.bf16.xpose.msra.mxu0 0
        %2258 = vmatpush.bf16.xpose.msra.mxu0 %v2249
        %2259 = vmatmul.bf16.gmra.mxu0 %v2246
        %v2260 = vpop.f32.mrf.mxu0
        %v2261 = vadd.f32 0.0, %v2260
        %v2262 = vpop.f32.mrf.mxu0
        %2263 = vdwg.mxu0
        %v2264 = vmul.f32 %v2128, 0.35355338
        %v2265 = vmul.f32 %v2147, 0.35355338
        %v2266 = vmul.f32 %v2166, 0.35355338
        %v2267 = vmul.f32 %v2185, 0.35355338
        %v2268 = vmul.f32 %v2204, 0.35355338
        %v2269 = vmul.f32 %v2223, 0.35355338
        %v2270 = vmul.f32 %v2242, 0.35355338
        %v2271 = vmul.f32 %v2261, 0.35355338
        %v2274 = vperm.slane %v1187, 0
        %v2275 = vperm.slane %v1188, 0
        %v2278 = vadd.f32 %v2264, %v2274
        %v2279 = vadd.f32 %v2265, %v2275
        %v2280 = vadd.f32 %v2266, %v2274
        %v2281 = vadd.f32 %v2267, %v2275
        %v2282 = vadd.f32 %v2268, %v2274
        %v2283 = vadd.f32 %v2269, %v2275
        %v2284 = vadd.f32 %v2270, %v2274
        %v2285 = vadd.f32 %v2271, %v2275
        %v2286 = vsel %vm1264, %v2278, -inf
        %2287 = vmax.xlane.f32.xlu0 %v2286
        %v2288 = vpop.xlane.xlu0 %2287
        %v2289 = vsel %vm1264, %v2279, -inf
        %2290 = vmax.xlane.f32.xlu0 %v2289
        %v2291 = vpop.xlane.xlu0 %2290
        %v2292 = vsel %vm1264, %v2280, -inf
        %2293 = vmax.xlane.f32.xlu0 %v2292
        %v2294 = vpop.xlane.xlu0 %2293
        %v2295 = vsel %vm1264, %v2281, -inf
        %2296 = vmax.xlane.f32.xlu0 %v2295
        %v2297 = vpop.xlane.xlu0 %2296
        %v2298 = vsel %vm1264, %v2282, -inf
        %2299 = vmax.xlane.f32.xlu0 %v2298
        %v2300 = vpop.xlane.xlu0 %2299
        %v2301 = vsel %vm1264, %v2283, -inf
        %2302 = vmax.xlane.f32.xlu0 %v2301
        %v2303 = vpop.xlane.xlu0 %2302
        %v2304 = vsel %vm1264, %v2284, -inf
        %2305 = vmax.xlane.f32.xlu0 %v2304
        %v2306 = vpop.xlane.xlu0 %2305
        %v2307 = vsel %vm1264, %v2285, -inf
        %2308 = vmax.xlane.f32.xlu0 %v2307
        %v2309 = vpop.xlane.xlu0 %2308
        %v2310 = vsub.f32 %v2278, %v2288
        %v2311 = vsub.f32 %v2279, %v2291
        %v2312 = vsub.f32 %v2280, %v2294
        %v2313 = vsub.f32 %v2281, %v2297
        %v2314 = vsub.f32 %v2282, %v2300
        %v2315 = vsub.f32 %v2283, %v2303
        %v2316 = vsub.f32 %v2284, %v2306
        %v2317 = vsub.f32 %v2285, %v2309
        %v2318 = vmul.f32 %v2310, 1.442695
        %v2319 = vpow.pop %v2318
        %v2320 = vmul.f32 %v2311, 1.442695
        %v2321 = vpow.pop %v2320
        %v2322 = vmul.f32 %v2312, 1.442695
        %v2323 = vpow.pop %v2322
        %v2324 = vmul.f32 %v2313, 1.442695
        %v2325 = vpow.pop %v2324
        %v2326 = vmul.f32 %v2314, 1.442695
        %v2327 = vpow.pop %v2326
        %v2328 = vmul.f32 %v2315, 1.442695
        %v2329 = vpow.pop %v2328
        %v2330 = vmul.f32 %v2316, 1.442695
        %v2331 = vpow.pop %v2330
        %v2332 = vmul.f32 %v2317, 1.442695
        %v2333 = vpow.pop %v2332
        %v2334 = vsel %vm1264, %v2319, 0.0
        %2335 = vadd.xlane.f32.xlu0 %v2334
        %v2336 = vpop.xlane.xlu0 %2335
        %v2337 = vsel %vm1264, %v2321, 0.0
        %2338 = vadd.xlane.f32.xlu0 %v2337
        %v2339 = vpop.xlane.xlu0 %2338
        %v2340 = vsel %vm1264, %v2323, 0.0
        %2341 = vadd.xlane.f32.xlu0 %v2340
        %v2342 = vpop.xlane.xlu0 %2341
        %v2343 = vsel %vm1264, %v2325, 0.0
        %2344 = vadd.xlane.f32.xlu0 %v2343
        %v2345 = vpop.xlane.xlu0 %2344
        %v2346 = vsel %vm1264, %v2327, 0.0
        %2347 = vadd.xlane.f32.xlu0 %v2346
        %v2348 = vpop.xlane.xlu0 %2347
        %v2349 = vsel %vm1264, %v2329, 0.0
        %2350 = vadd.xlane.f32.xlu0 %v2349
        %v2351 = vpop.xlane.xlu0 %2350
        %v2352 = vsel %vm1264, %v2331, 0.0
        %2353 = vadd.xlane.f32.xlu0 %v2352
        %v2354 = vpop.xlane.xlu0 %2353
        %v2355 = vsel %vm1264, %v2333, 0.0
        %2356 = vadd.xlane.f32.xlu0 %v2355
        %v2357 = vpop.xlane.xlu0 %2356
        %v2358 = vrcp.pop %v2336
        %v2359 = vmul.f32 %v2336, %v2358
        %v2360 = vsub.f32 1.0, %v2359
        %v2361 = vmul.f32 %v2358, %v2360
        %v2362 = vadd.f32 %v2358, %v2361
        %vm2363 = vweird.f32 %v2336
        %vm2364 = vweird.f32 %v2358
        %vm2365 = vmor %vm2363, %vm2364
        %v2366 = vsel %vm2365, %v2358, %v2362
        %v2367 = vand.u32 2147483647, %v2336
        %vm2368 = vcmp.eq.f32.partialorder %v2367, 8.507059e+37
        %v2369 = vand.u32 %v2336, 2147483648
        %v2370 = vor.u32 1.1754944e-38, %v2369
        %v2371 = vsel %vm2368, %v2370, %v2366
        %v2372 = vmul.f32 %v2319, %v2371
        %v2373 = vrcp.pop %v2339
        %v2374 = vmul.f32 %v2339, %v2373
        %v2375 = vsub.f32 1.0, %v2374
        %v2376 = vmul.f32 %v2373, %v2375
        %v2377 = vadd.f32 %v2373, %v2376
        %vm2378 = vweird.f32 %v2339
        %vm2379 = vweird.f32 %v2373
        %vm2380 = vmor %vm2378, %vm2379
        %v2381 = vsel %vm2380, %v2373, %v2377
        %v2382 = vand.u32 2147483647, %v2339
        %vm2383 = vcmp.eq.f32.partialorder %v2382, 8.507059e+37
        %v2384 = vand.u32 %v2339, 2147483648
        %v2385 = vor.u32 1.1754944e-38, %v2384
        %v2386 = vsel %vm2383, %v2385, %v2381
        %v2387 = vmul.f32 %v2321, %v2386
        %v2388 = vrcp.pop %v2342
        %v2389 = vmul.f32 %v2342, %v2388
        %v2390 = vsub.f32 1.0, %v2389
        %v2391 = vmul.f32 %v2388, %v2390
        %v2392 = vadd.f32 %v2388, %v2391
        %vm2393 = vweird.f32 %v2342
        %vm2394 = vweird.f32 %v2388
        %vm2395 = vmor %vm2393, %vm2394
        %v2396 = vsel %vm2395, %v2388, %v2392
        %v2397 = vand.u32 2147483647, %v2342
        %vm2398 = vcmp.eq.f32.partialorder %v2397, 8.507059e+37
        %v2399 = vand.u32 %v2342, 2147483648
        %v2400 = vor.u32 1.1754944e-38, %v2399
        %v2401 = vsel %vm2398, %v2400, %v2396
        %v2402 = vmul.f32 %v2323, %v2401
        %v2403 = vrcp.pop %v2345
        %v2404 = vmul.f32 %v2345, %v2403
        %v2405 = vsub.f32 1.0, %v2404
        %v2406 = vmul.f32 %v2403, %v2405
        %v2407 = vadd.f32 %v2403, %v2406
        %vm2408 = vweird.f32 %v2345
        %vm2409 = vweird.f32 %v2403
        %vm2410 = vmor %vm2408, %vm2409
        %v2411 = vsel %vm2410, %v2403, %v2407
        %v2412 = vand.u32 2147483647, %v2345
        %vm2413 = vcmp.eq.f32.partialorder %v2412, 8.507059e+37
        %v2414 = vand.u32 %v2345, 2147483648
        %v2415 = vor.u32 1.1754944e-38, %v2414
        %v2416 = vsel %vm2413, %v2415, %v2411
        %v2417 = vmul.f32 %v2325, %v2416
        %v2418 = vrcp.pop %v2348
        %v2419 = vmul.f32 %v2348, %v2418
        %v2420 = vsub.f32 1.0, %v2419
        %v2421 = vmul.f32 %v2418, %v2420
        %v2422 = vadd.f32 %v2418, %v2421
        %vm2423 = vweird.f32 %v2348
        %vm2424 = vweird.f32 %v2418
        %vm2425 = vmor %vm2423, %vm2424
        %v2426 = vsel %vm2425, %v2418, %v2422
        %v2427 = vand.u32 2147483647, %v2348
        %vm2428 = vcmp.eq.f32.partialorder %v2427, 8.507059e+37
        %v2429 = vand.u32 %v2348, 2147483648
        %v2430 = vor.u32 1.1754944e-38, %v2429
        %v2431 = vsel %vm2428, %v2430, %v2426
        %v2432 = vmul.f32 %v2327, %v2431
        %v2433 = vrcp.pop %v2351
        %v2434 = vmul.f32 %v2351, %v2433
        %v2435 = vsub.f32 1.0, %v2434
        %v2436 = vmul.f32 %v2433, %v2435
        %v2437 = vadd.f32 %v2433, %v2436
        %vm2438 = vweird.f32 %v2351
        %vm2439 = vweird.f32 %v2433
        %vm2440 = vmor %vm2438, %vm2439
        %v2441 = vsel %vm2440, %v2433, %v2437
        %v2442 = vand.u32 2147483647, %v2351
        %vm2443 = vcmp.eq.f32.partialorder %v2442, 8.507059e+37
        %v2444 = vand.u32 %v2351, 2147483648
        %v2445 = vor.u32 1.1754944e-38, %v2444
        %v2446 = vsel %vm2443, %v2445, %v2441
        %v2447 = vmul.f32 %v2329, %v2446
        %v2448 = vrcp.pop %v2354
        %v2449 = vmul.f32 %v2354, %v2448
        %v2450 = vsub.f32 1.0, %v2449
        %v2451 = vmul.f32 %v2448, %v2450
        %v2452 = vadd.f32 %v2448, %v2451
        %vm2453 = vweird.f32 %v2354
        %vm2454 = vweird.f32 %v2448
        %vm2455 = vmor %vm2453, %vm2454
        %v2456 = vsel %vm2455, %v2448, %v2452
        %v2457 = vand.u32 2147483647, %v2354
        %vm2458 = vcmp.eq.f32.partialorder %v2457, 8.507059e+37
        %v2459 = vand.u32 %v2354, 2147483648
        %v2460 = vor.u32 1.1754944e-38, %v2459
        %v2461 = vsel %vm2458, %v2460, %v2456
        %v2462 = vmul.f32 %v2331, %v2461
        %v2463 = vrcp.pop %v2357
        %v2464 = vmul.f32 %v2357, %v2463
        %v2465 = vsub.f32 1.0, %v2464
        %v2466 = vmul.f32 %v2463, %v2465
        %v2467 = vadd.f32 %v2463, %v2466
        %vm2468 = vweird.f32 %v2357
        %vm2469 = vweird.f32 %v2463
        %vm2470 = vmor %vm2468, %vm2469
        %v2471 = vsel %vm2470, %v2463, %v2467
        %v2472 = vand.u32 2147483647, %v2357
        %vm2473 = vcmp.eq.f32.partialorder %v2472, 8.507059e+37
        %v2474 = vand.u32 %v2357, 2147483648
        %v2475 = vor.u32 1.1754944e-38, %v2474
        %v2476 = vsel %vm2473, %v2475, %v2471
        %v2477 = vmul.f32 %v2333, %v2476
        %2478 = vst.msk [vmem:[%s1149] sm:$0xff] %vm1264, %v2372
        %2479 = vst.msk [vmem:[%s1149 + $0x8] sm:$0xff] %vm1264, %v2387
        %2480 = vst.msk [vmem:[%s1149 + $0x10] sm:$0xff] %vm1264, %v2402
        %2481 = vst.msk [vmem:[%s1149 + $0x18] sm:$0xff] %vm1264, %v2417
        %2482 = vst.msk [vmem:[%s1149 + $0x20] sm:$0xff] %vm1264, %v2432
        %2483 = vst.msk [vmem:[%s1149 + $0x28] sm:$0xff] %vm1264, %v2447
        %2484 = vst.msk [vmem:[%s1149 + $0x30] sm:$0xff] %vm1264, %v2462
        %2485 = vst.msk [vmem:[%s1149 + $0x38] sm:$0xff] %vm1264, %v2477
        %v2486 = vpack.c.bf16 %v2372, %v2372
        %v2487 = vpack.c.bf16 %v2387, %v2387
        %v2488 = vpack.c.bf16 %v2402, %v2402
        %v2489 = vpack.c.bf16 %v2417, %v2417
        %v2490 = vpack.c.bf16 %v2432, %v2432
        %v2491 = vpack.c.bf16 %v2447, %v2447
        %v2492 = vpack.c.bf16 %v2462, %v2462
        %v2493 = vpack.c.bf16 %v2477, %v2477
        %v2495 = vunpack.c.l.b16 %v2104
        %v2496 = vpack.c.b16 %v2495, %v2495
        %2497 = vrot.lane.b32.xlu0 %v2496, 96
        %v2498 = vpop.permute.xlu0 %2497
        %v2500 = vsel %vm1264, %v2486, 0
        %v2503 = vsel %vm1681, %v2498, 0
        %2505 = vmatpush.bf16.msra.mxu0 0
        %2506 = vmatpush.bf16.msra.mxu0 0
        %2507 = vmatpush.bf16.msra.mxu0 0
        %2508 = vmatpush.bf16.msra.mxu0 0
        %2509 = vmatpush.bf16.msra.mxu0 0
        %2510 = vmatpush.bf16.msra.mxu0 0
        %2511 = vmatpush.bf16.msra.mxu0 0
        %2512 = vmatpush.bf16.msra.mxu0 %v2503
        %2513 = vmatmul.bf16.gmra.mxu0 %v2500
        %v2514 = vpop.f32.mrf.mxu0
        %v2515 = vadd.f32 0.0, %v2514
        %v2516 = vpop.f32.mrf.mxu0
        %2517 = vdwg.mxu0
        %v2519 = vunpack.c.l.b16 %v2105
        %v2520 = vpack.c.b16 %v2519, %v2519
        %2521 = vrot.lane.b32.xlu0 %v2520, 96
        %v2522 = vpop.permute.xlu0 %2521
        %v2524 = vsel %vm1264, %v2487, 0
        %v2527 = vsel %vm1681, %v2522, 0
        %2529 = vmatpush.bf16.msra.mxu0 0
        %2530 = vmatpush.bf16.msra.mxu0 0
        %2531 = vmatpush.bf16.msra.mxu0 0
        %2532 = vmatpush.bf16.msra.mxu0 0
        %2533 = vmatpush.bf16.msra.mxu0 0
        %2534 = vmatpush.bf16.msra.mxu0 0
        %2535 = vmatpush.bf16.msra.mxu0 0
        %2536 = vmatpush.bf16.msra.mxu0 %v2527
        %2537 = vmatmul.bf16.gmra.mxu0 %v2524
        %v2538 = vpop.f32.mrf.mxu0
        %v2539 = vadd.f32 0.0, %v2538
        %v2540 = vpop.f32.mrf.mxu0
        %2541 = vdwg.mxu0
        %v2543 = vunpack.c.l.b16 %v2106
        %v2544 = vpack.c.b16 %v2543, %v2543
        %2545 = vrot.lane.b32.xlu0 %v2544, 96
        %v2546 = vpop.permute.xlu0 %2545
        %v2548 = vsel %vm1264, %v2488, 0
        %v2551 = vsel %vm1681, %v2546, 0
        %2553 = vmatpush.bf16.msra.mxu0 0
        %2554 = vmatpush.bf16.msra.mxu0 0
        %2555 = vmatpush.bf16.msra.mxu0 0
        %2556 = vmatpush.bf16.msra.mxu0 0
        %2557 = vmatpush.bf16.msra.mxu0 0
        %2558 = vmatpush.bf16.msra.mxu0 0
        %2559 = vmatpush.bf16.msra.mxu0 0
        %2560 = vmatpush.bf16.msra.mxu0 %v2551
        %2561 = vmatmul.bf16.gmra.mxu0 %v2548
        %v2562 = vpop.f32.mrf.mxu0
        %v2563 = vadd.f32 0.0, %v2562
        %v2564 = vpop.f32.mrf.mxu0
        %2565 = vdwg.mxu0
        %v2567 = vunpack.c.l.b16 %v2107
        %v2568 = vpack.c.b16 %v2567, %v2567
        %2569 = vrot.lane.b32.xlu0 %v2568, 96
        %v2570 = vpop.permute.xlu0 %2569
        %v2572 = vsel %vm1264, %v2489, 0
        %v2575 = vsel %vm1681, %v2570, 0
        %2577 = vmatpush.bf16.msra.mxu0 0
        %2578 = vmatpush.bf16.msra.mxu0 0
        %2579 = vmatpush.bf16.msra.mxu0 0
        %2580 = vmatpush.bf16.msra.mxu0 0
        %2581 = vmatpush.bf16.msra.mxu0 0
        %2582 = vmatpush.bf16.msra.mxu0 0
        %2583 = vmatpush.bf16.msra.mxu0 0
        %2584 = vmatpush.bf16.msra.mxu0 %v2575
        %2585 = vmatmul.bf16.gmra.mxu0 %v2572
        %v2586 = vpop.f32.mrf.mxu0
        %v2587 = vadd.f32 0.0, %v2586
        %v2588 = vpop.f32.mrf.mxu0
        %2589 = vdwg.mxu0
        %v2591 = vunpack.c.l.b16 %v2108
        %v2592 = vpack.c.b16 %v2591, %v2591
        %2593 = vrot.lane.b32.xlu0 %v2592, 96
        %v2594 = vpop.permute.xlu0 %2593
        %v2596 = vsel %vm1264, %v2490, 0
        %v2599 = vsel %vm1681, %v2594, 0
        %2601 = vmatpush.bf16.msra.mxu0 0
        %2602 = vmatpush.bf16.msra.mxu0 0
        %2603 = vmatpush.bf16.msra.mxu0 0
        %2604 = vmatpush.bf16.msra.mxu0 0
        %2605 = vmatpush.bf16.msra.mxu0 0
        %2606 = vmatpush.bf16.msra.mxu0 0
        %2607 = vmatpush.bf16.msra.mxu0 0
        %2608 = vmatpush.bf16.msra.mxu0 %v2599
        %2609 = vmatmul.bf16.gmra.mxu0 %v2596
        %v2610 = vpop.f32.mrf.mxu0
        %v2611 = vadd.f32 0.0, %v2610
        %v2612 = vpop.f32.mrf.mxu0
        %2613 = vdwg.mxu0
        %v2615 = vunpack.c.l.b16 %v2109
        %v2616 = vpack.c.b16 %v2615, %v2615
        %2617 = vrot.lane.b32.xlu0 %v2616, 96
        %v2618 = vpop.permute.xlu0 %2617
        %v2620 = vsel %vm1264, %v2491, 0
        %v2623 = vsel %vm1681, %v2618, 0
        %2625 = vmatpush.bf16.msra.mxu0 0
        %2626 = vmatpush.bf16.msra.mxu0 0
        %2627 = vmatpush.bf16.msra.mxu0 0
        %2628 = vmatpush.bf16.msra.mxu0 0
        %2629 = vmatpush.bf16.msra.mxu0 0
        %2630 = vmatpush.bf16.msra.mxu0 0
        %2631 = vmatpush.bf16.msra.mxu0 0
        %2632 = vmatpush.bf16.msra.mxu0 %v2623
        %2633 = vmatmul.bf16.gmra.mxu0 %v2620
        %v2634 = vpop.f32.mrf.mxu0
        %v2635 = vadd.f32 0.0, %v2634
        %v2636 = vpop.f32.mrf.mxu0
        %2637 = vdwg.mxu0
        %v2639 = vunpack.c.l.b16 %v2110
        %v2640 = vpack.c.b16 %v2639, %v2639
        %2641 = vrot.lane.b32.xlu0 %v2640, 96
        %v2642 = vpop.permute.xlu0 %2641
        %v2644 = vsel %vm1264, %v2492, 0
        %v2647 = vsel %vm1681, %v2642, 0
        %2649 = vmatpush.bf16.msra.mxu0 0
        %2650 = vmatpush.bf16.msra.mxu0 0
        %2651 = vmatpush.bf16.msra.mxu0 0
        %2652 = vmatpush.bf16.msra.mxu0 0
        %2653 = vmatpush.bf16.msra.mxu0 0
        %2654 = vmatpush.bf16.msra.mxu0 0
        %2655 = vmatpush.bf16.msra.mxu0 0
        %2656 = vmatpush.bf16.msra.mxu0 %v2647
        %2657 = vmatmul.bf16.gmra.mxu0 %v2644
        %v2658 = vpop.f32.mrf.mxu0
        %v2659 = vadd.f32 0.0, %v2658
        %v2660 = vpop.f32.mrf.mxu0
        %2661 = vdwg.mxu0
        %v2663 = vunpack.c.l.b16 %v2111
        %v2664 = vpack.c.b16 %v2663, %v2663
        %2665 = vrot.lane.b32.xlu0 %v2664, 96
        %v2666 = vpop.permute.xlu0 %2665
        %v2668 = vsel %vm1264, %v2493, 0
        %v2671 = vsel %vm1681, %v2666, 0
        %2673 = vmatpush.bf16.msra.mxu0 0
        %2674 = vmatpush.bf16.msra.mxu0 0
        %2675 = vmatpush.bf16.msra.mxu0 0
        %2676 = vmatpush.bf16.msra.mxu0 0
        %2677 = vmatpush.bf16.msra.mxu0 0
        %2678 = vmatpush.bf16.msra.mxu0 0
        %2679 = vmatpush.bf16.msra.mxu0 0
        %2680 = vmatpush.bf16.msra.mxu0 %v2671
        %2681 = vmatmul.bf16.gmra.mxu0 %v2668
        %v2682 = vpop.f32.mrf.mxu0
        %v2683 = vadd.f32 0.0, %v2682
        %v2684 = vpop.f32.mrf.mxu0
        %2685 = vdwg.mxu0
        %2688 = vrot.lane.b32.xlu0 %v2563, 8
        %v2689 = vpop.permute.xlu0 %2688
        %2690 = vrot.lane.b32.xlu0 %v2587, 8
        %v2691 = vpop.permute.xlu0 %2690
        %2696 = vrot.lane.b32.xlu0 %v2611, 16
        %v2697 = vpop.permute.xlu0 %2696
        %2698 = vrot.lane.b32.xlu0 %v2635, 16
        %v2699 = vpop.permute.xlu0 %2698
        %2704 = vrot.lane.b32.xlu0 %v2659, 24
        %v2705 = vpop.permute.xlu0 %2704
        %2706 = vrot.lane.b32.xlu0 %v2683, 24
        %v2707 = vpop.permute.xlu0 %2706
        %v2710 = vsel %vm1264, %v2515, %v2689
        %v2711 = vsel %vm1264, %v2539, %v2691
        %v2712 = vsel %vm1871, %v2710, %v2697
        %v2713 = vsel %vm1871, %v2711, %v2699
        %v2714 = vsel %vm1874, %v2712, %v2705
        %v2715 = vsel %vm1874, %v2713, %v2707
        %v2716 = vpack.c.bf16 %v2715, %v2714
        %v2717 = vld [vmem:[%s951] sm:$0xf]
        %v2718 = vld [vmem:[%s951 + $0x4] sm:$0xf]
        %v2719 = vld [vmem:[%s951 + $0x8] sm:$0xf]
        %v2720 = vld [vmem:[%s951 + $0xc] sm:$0xf]
        %v2721 = vld [vmem:[%s960] sm:$0x1]
        %v2723 = vperm.slane %v2721, 0
        %v2729 = vunpack.c.l.b16 %v2717
        %v2730 = vunpack.c.l.b16 %v2718
        %v2731 = vunpack.c.l.b16 %v2719
        %v2732 = vunpack.c.l.b16 %v2720
        %v2733 = vpack.c.b16 %v2730, %v2729
        %v2734 = vpack.c.b16 %v2732, %v2731
        %v2738 = vsel %vm1213, %v2716, 0
        %2740 = vmatpush.bf16.msra.mxu0 0
        %2741 = vmatpush.bf16.msra.mxu0 0
        %2742 = vmatpush.bf16.msra.mxu0 0
        %2743 = vmatpush.bf16.msra.mxu0 0
        %2744 = vmatpush.bf16.msra.mxu0 0
        %2745 = vmatpush.bf16.msra.mxu0 0
        %2746 = vmatpush.bf16.msra.mxu0 %v2734
        %2747 = vmatpush.bf16.msra.mxu0 %v2733
        %2748 = vmatmul.bf16.gmra.mxu0 %v2738
        %v2749 = vpop.f32.mrf.mxu0
        %v2750 = vadd.f32 %v2723, %v2749
        %v2751 = vpop.f32.mrf.mxu0
        %v2752 = vadd.f32 %v2723, %v2751
        %2753 = vdwg.mxu0
        %v2754 = vadd.f32 %v2750, %v1972
        %v2755 = vadd.f32 %v2752, %v1973
        %v2756 = vsel %vm1213, %v2754, 0.0
        %2757 = vadd.xlane.f32.xlu0 %v2756
        %v2758 = vpop.xlane.xlu0 %2757
        %v2759 = vsel %vm1213, %v2755, 0.0
        %2760 = vadd.xlane.f32.xlu0 %v2759
        %v2761 = vpop.xlane.xlu0 %2760
        %v2762 = vmul.f32 %v2758, %v1929
        %v2763 = vmul.f32 %v2761, %v1929
        %v2764 = vsub.f32 %v2754, %v2762
        %v2765 = vsub.f32 %v2755, %v2763
        %v2766 = vmul.f32 %v2764, %v2764
        %v2767 = vmul.f32 %v2765, %v2765
        %v2768 = vsel %vm1213, %v2766, 0.0
        %2769 = vadd.xlane.f32.xlu0 %v2768
        %v2770 = vpop.xlane.xlu0 %2769
        %v2771 = vsel %vm1213, %v2767, 0.0
        %2772 = vadd.xlane.f32.xlu0 %v2771
        %v2773 = vpop.xlane.xlu0 %2772
        %v2774 = vmul.f32 %v2770, %v1929
        %v2775 = vmul.f32 %v2773, %v1929
        %v2776 = vadd.f32 %v2774, 1e-05
        %v2777 = vadd.f32 %v2775, 1e-05
        %v2778 = vrsqrt.pop %v2776
        %v2779 = vmul.f32 %v2778, %v2776
        %v2780 = vmul.f32 %v2779, %v2778
        %v2781 = vmul.f32 0.5, %v2780
        %v2782 = vsub.f32 1.5, %v2781
        %v2783 = vmul.f32 %v2778, %v2782
        %vm2784 = vweird.f32 %v2776
        %vm2785 = vweird.f32 %v2778
        %vm2786 = vmor %vm2784, %vm2785
        %v2787 = vsel %vm2786, %v2778, %v2783
        %v2788 = vrsqrt.pop %v2777
        %v2789 = vmul.f32 %v2788, %v2777
        %v2790 = vmul.f32 %v2789, %v2788
        %v2791 = vmul.f32 0.5, %v2790
        %v2792 = vsub.f32 1.5, %v2791
        %v2793 = vmul.f32 %v2788, %v2792
        %vm2794 = vweird.f32 %v2777
        %vm2795 = vweird.f32 %v2788
        %vm2796 = vmor %vm2794, %vm2795
        %v2797 = vsel %vm2796, %v2788, %v2793
        %v2798 = vmul.f32 %v2764, %v2787
        %v2799 = vmul.f32 %v2765, %v2797
        %v2800 = vperm.slane %v1189, 2
        %v2801 = vmul.f32 %v2798, %v2800
        %v2802 = vmul.f32 %v2799, %v2800
        %v2803 = vperm.slane %v1189, 3
        %v2804 = vadd.f32 %v2801, %v2803
        %v2805 = vadd.f32 %v2802, %v2803
        %v2806 = vpack.c.bf16 %v2805, %v2804
        %v2807 = vld [vmem:[%s970] sm:$0xf]
        %v2808 = vld [vmem:[%s970 + $0x4] sm:$0xf]
        %v2809 = vld [vmem:[%s970 + $0x8] sm:$0xf]
        %v2810 = vld [vmem:[%s970 + $0xc] sm:$0xf]
        %v2811 = vld [vmem:[%s979] sm:$0x1]
        %v2813 = vperm.slane %v2811, 0
        %v2819 = vunpack.c.l.b16 %v2807
        %v2820 = vunpack.c.l.b16 %v2808
        %v2821 = vunpack.c.l.b16 %v2809
        %v2822 = vunpack.c.l.b16 %v2810
        %v2823 = vpack.c.b16 %v2820, %v2819
        %v2824 = vpack.c.b16 %v2822, %v2821
        %v2828 = vsel %vm1213, %v2806, 0
        %2830 = vmatpush.bf16.msra.mxu0 0
        %2831 = vmatpush.bf16.msra.mxu0 0
        %2832 = vmatpush.bf16.msra.mxu0 0
        %2833 = vmatpush.bf16.msra.mxu0 0
        %2834 = vmatpush.bf16.msra.mxu0 0
        %2835 = vmatpush.bf16.msra.mxu0 0
        %2836 = vmatpush.bf16.msra.mxu0 %v2824
        %2837 = vmatpush.bf16.msra.mxu0 %v2823
        %2838 = vmatmul.bf16.gmra.mxu0 %v2828
        %v2839 = vpop.f32.mrf.mxu0
        %v2840 = vadd.f32 %v2813, %v2839
        %v2841 = vpop.f32.mrf.mxu0
        %v2842 = vadd.f32 %v2813, %v2841
        %2843 = vdwg.mxu0
        %v2844 = vmax.f32 %v2840, 0.0
        %v2845 = vmax.f32 %v2842, 0.0
        %v2846 = vpack.c.bf16 %v2845, %v2844
        %v2847 = vld [vmem:[%s1134] sm:$0xf]
        %v2848 = vld [vmem:[%s1134 + $0x4] sm:$0xf]
        %v2849 = vld [vmem:[%s1134 + $0x8] sm:$0xf]
        %v2850 = vld [vmem:[%s1134 + $0xc] sm:$0xf]
        %v2851 = vld [vmem:[%s1134 + $0x10] sm:$0xf]
        %v2852 = vld [vmem:[%s1134 + $0x14] sm:$0xf]
        %v2853 = vld [vmem:[%s1134 + $0x18] sm:$0xf]
        %v2854 = vld [vmem:[%s1134 + $0x1c] sm:$0xf]
        %v2855 = vld [vmem:[%s988] sm:$0x1]
        %v2857 = vperm.slane %v2855, 0
        %v2867 = vunpack.c.l.b16 %v2847
        %v2868 = vunpack.c.l.b16 %v2848
        %v2869 = vunpack.c.l.b16 %v2849
        %v2870 = vunpack.c.l.b16 %v2850
        %v2871 = vunpack.c.l.b16 %v2851
        %v2872 = vunpack.c.l.b16 %v2852
        %v2873 = vunpack.c.l.b16 %v2853
        %v2874 = vunpack.c.l.b16 %v2854
        %v2875 = vpack.c.b16 %v2868, %v2867
        %v2876 = vpack.c.b16 %v2870, %v2869
        %v2877 = vpack.c.b16 %v2872, %v2871
        %v2878 = vpack.c.b16 %v2874, %v2873
        %vm2883 = vcmask 523264
        %v2885 = vsel %vm2883, %v2846, 0
        %2887 = vmatpush.bf16.msra.mxu0 0
        %2888 = vmatpush.bf16.msra.mxu0 0
        %2889 = vmatpush.bf16.msra.mxu0 0
        %2890 = vmatpush.bf16.msra.mxu0 0
        %2891 = vmatpush.bf16.msra.mxu0 %v2878
        %2892 = vmatpush.bf16.msra.mxu0 %v2877
        %2893 = vmatpush.bf16.msra.mxu0 %v2876
        %2894 = vmatpush.bf16.msra.mxu0 %v2875
        %2895 = vmatmul.bf16.gmra.mxu0 %v2885
        %v2896 = vpop.f32.mrf.mxu0
        %v2897 = vadd.f32 %v2857, %v2896
        %v2898 = vpop.f32.mrf.mxu0
        %v2899 = vadd.f32 %v2857, %v2898
        %2900 = vdwg.mxu0
        %v2901 = vadd.f32 %v2897, %v2804
        %v2902 = vadd.f32 %v2899, %v2805
        %v2903 = vsel %vm1213, %v2901, 0.0
        %2904 = vadd.xlane.f32.xlu0 %v2903
        %v2905 = vpop.xlane.xlu0 %2904
        %v2906 = vsel %vm1213, %v2902, 0.0
        %2907 = vadd.xlane.f32.xlu0 %v2906
        %v2908 = vpop.xlane.xlu0 %2907
        %v2909 = vmul.f32 %v2905, %v1929
        %v2910 = vmul.f32 %v2908, %v1929
        %v2911 = vsub.f32 %v2901, %v2909
        %v2912 = vsub.f32 %v2902, %v2910
        %v2913 = vmul.f32 %v2911, %v2911
        %v2914 = vmul.f32 %v2912, %v2912
        %v2915 = vsel %vm1213, %v2913, 0.0
        %2916 = vadd.xlane.f32.xlu0 %v2915
        %v2917 = vpop.xlane.xlu0 %2916
        %v2918 = vsel %vm1213, %v2914, 0.0
        %2919 = vadd.xlane.f32.xlu0 %v2918
        %v2920 = vpop.xlane.xlu0 %2919
        %v2921 = vmul.f32 %v2917, %v1929
        %v2922 = vmul.f32 %v2920, %v1929
        %v2923 = vadd.f32 %v2921, 1e-05
        %v2924 = vadd.f32 %v2922, 1e-05
        %v2925 = vrsqrt.pop %v2923
        %v2926 = vmul.f32 %v2925, %v2923
        %v2927 = vmul.f32 %v2926, %v2925
        %v2928 = vmul.f32 0.5, %v2927
        %v2929 = vsub.f32 1.5, %v2928
        %v2930 = vmul.f32 %v2925, %v2929
        %vm2931 = vweird.f32 %v2923
        %vm2932 = vweird.f32 %v2925
        %vm2933 = vmor %vm2931, %vm2932
        %v2934 = vsel %vm2933, %v2925, %v2930
        %v2935 = vrsqrt.pop %v2924
        %v2936 = vmul.f32 %v2935, %v2924
        %v2937 = vmul.f32 %v2936, %v2935
        %v2938 = vmul.f32 0.5, %v2937
        %v2939 = vsub.f32 1.5, %v2938
        %v2940 = vmul.f32 %v2935, %v2939
        %vm2941 = vweird.f32 %v2924
        %vm2942 = vweird.f32 %v2935
        %vm2943 = vmor %vm2941, %vm2942
        %v2944 = vsel %vm2943, %v2935, %v2940
        %v2945 = vmul.f32 %v2911, %v2934
        %v2946 = vmul.f32 %v2912, %v2944
        %v2947 = vperm.slane %v1189, 4
        %v2948 = vmul.f32 %v2945, %v2947
        %v2949 = vmul.f32 %v2946, %v2947
        %v2950 = vperm.slane %v1189, 5
        %v2951 = vadd.f32 %v2948, %v2950
        %v2952 = vadd.f32 %v2949, %v2950
        %2953 = vst.msk [vmem:[#allocation2] sm:$0xff] %vm1213, %v2951
        %2954 = vst.msk [vmem:[#allocation2 + $0x8] sm:$0xff] %vm1213, %v2952
        %p2955 = scmp.eq.s32.totalorder %s37, 1
        // Predicated region
        $region157: #{tpu_custom_call.1} parent=95 // pred_check
          %p2956 = pneg %p2955
        $region158: #{tpu_custom_call.1} parent=95 // pred_check_branch
          %2958 = sbr.rel (%p2956) target = $region160
        $region159: #{tpu_custom_call.1} parent=95 // pred_region
          %2959 = vst.msk [vmem:[#allocation21] sm:$0xff] %vm1213, %v2951
          %2960 = vst.msk [vmem:[#allocation21 + $0x8] sm:$0xff] %vm1213, %v2952
        $region160: #{tpu_custom_call.1} parent=95 // pred_fallthru
          _
        %s2961 = smul.u32 8, %s37
        %p2962 = scmp.lt.s32.totalorder %s2961, 15
        %s2963 = scalar_select %p2962, %s2961, 15
        %s2964 = smul.addr %s2963, 8
        %s2965 = scalar_lea.vmem %s20, %s2964
        %s2966 = smul.u32 8, %s37
        %p2967 = scmp.lt.s32.totalorder %s2966, 15
        %s2968 = scalar_select %p2967, %s2966, 15
        %s2969 = smul.addr %s2968, 8
        %s2970 = scalar_lea.vmem %s21, %s2969
        // Predicated region
        $region161: #{tpu_custom_call.1} parent=95 // pred_check
          %p2971 = pneg %p524
        $region162: #{tpu_custom_call.1} parent=95 // pred_check_branch
          %2973 = sbr.rel (%p2971) target = $region164
        $region163: #{tpu_custom_call.1} parent=95 // pred_region
          %2975 = vsyncadd [#allocation5], 0
          %s2976 = sshll.u32 [#allocation21], 4
          %s2977 = int_to_ptr.vmem [resolvable:$true] %s2976
          %s2978 = sshll.u32 %s19, 4
          %s2979 = int_to_ptr.hbm [resolvable:$true] %s2978
          %2984 = dma.vmem_to_hbm [thread:$0]  %s2977, 256, %s2979, [#allocation5], 128, 128, 8
        $region164: #{tpu_custom_call.1} parent=95 // pred_fallthru
          _
        // Predicated region
        $region165: #{tpu_custom_call.1} parent=95 // pred_check
          %p2985 = pneg %p550
        $region166: #{tpu_custom_call.1} parent=95 // pred_check_branch
          %2987 = sbr.rel (%p2985) target = $region168
        $region167: #{tpu_custom_call.1} parent=95 // pred_region
          %s2988 = smul.u32 8, %s37
        $region168: #{tpu_custom_call.1} parent=95 // pred_fallthru
          _
        // Predicated region
        $region169: #{tpu_custom_call.1} parent=95 // pred_check
          %p2989 = pneg %p576
        $region170: #{tpu_custom_call.1} parent=95 // pred_check_branch
          %2991 = sbr.rel (%p2989) target = $region172
        $region171: #{tpu_custom_call.1} parent=95 // pred_region
          %s2992 = smul.u32 8, %s37
        $region172: #{tpu_custom_call.1} parent=95 // pred_fallthru
          _
        // Predicated region
        $region173: #{tpu_custom_call.1} parent=95 // pred_check
          %p2993 = pneg %p524
        $region174: #{tpu_custom_call.1} parent=95 // pred_check_branch
          %2995 = sbr.rel (%p2993) target = $region176
        $region175: #{tpu_custom_call.1} parent=95 // pred_region
          %2997 = dma.done [#allocation5], 256
        $region176: #{tpu_custom_call.1} parent=95 // pred_fallthru
          _
      $region96: #{tpu_custom_call.1} parent=5 // pred_fallthru
        _
      %p2998 = scmp.le.s32.totalorder 2, %s32
      // Predicated region
      $region177: #{tpu_custom_call.1} parent=5 // pred_check
        %p2999 = pneg %p2998
      $region178: #{tpu_custom_call.1} parent=5 // pred_check_branch
        %3001 = sbr.rel (%p2999) target = $region180
      $region179: #{tpu_custom_call.1} parent=5 // pred_region
        %s3002 = ssub.s32 %s32, 2
        // Predicated region
        $region181: #{tpu_custom_call.1} parent=179 // pred_check
          %p3003 = pneg %p556
        $region182: #{tpu_custom_call.1} parent=179 // pred_check_branch
          %3005 = sbr.rel (%p3003) target = $region184
        $region183: #{tpu_custom_call.1} parent=179 // pred_region
          %s3006 = smul.u32 8, %s38
          %p3007 = scmp.lt.s32.totalorder %s3006, 15
          %s3008 = scalar_select %p3007, %s3006, 15
          %s3009 = smul.addr %s3008, 8
          %s3010 = scalar_lea.vmem %s20, %s3009
        $region184: #{tpu_custom_call.1} parent=179 // pred_fallthru
          _
        // Predicated region
        $region185: #{tpu_custom_call.1} parent=179 // pred_check
          %p3011 = pneg %p582
        $region186: #{tpu_custom_call.1} parent=179 // pred_check_branch
          %3013 = sbr.rel (%p3011) target = $region188
        $region187: #{tpu_custom_call.1} parent=179 // pred_region
          %s3014 = smul.u32 8, %s38
          %p3015 = scmp.lt.s32.totalorder %s3014, 15
          %s3016 = scalar_select %p3015, %s3014, 15
          %s3017 = smul.addr %s3016, 8
          %s3018 = scalar_lea.vmem %s21, %s3017
        $region188: #{tpu_custom_call.1} parent=179 // pred_fallthru
          _
      $region180: #{tpu_custom_call.1} parent=5 // pred_fallthru
        _
    $region6: #{tpu_custom_call.1} parent=1 // loop_footer
      %s36 = sadd.s32 1, %s32
    $region7: #{tpu_custom_call.1} parent=1 // loop_footer_branch
      %31 = sbr.rel target = $region3
    $region8: #{tpu_custom_call.1} parent=1 // loop_exit
      _
    %3019 = vsyncpa [#allocation4], 1
    %s3020 = scalar_lea.sflag [#allocation4], 1
    %3021 = vsyncpa %s3020, 1
    %3022 = vsyncpa [#allocation7], 1
    %3023 = vsyncpa [#allocation10], 1
    %3024 = vsyncpa [#allocation5], 1
    %s3025 = scalar_lea.sflag [#allocation5], 1
    %3026 = vsyncpa %s3025, 1

</llo_original>
